<compile_context>
chip_gen: v6e
topology: v6e:2x2x1
jax: 0.10.0
libtpu: 0.0.40
codegen_flags: <defaults>
</compile_context>

<pallas_src>
import functools

import jax
import jax.numpy as jnp
from jax.experimental import pallas as pl
from jax.experimental.pallas import tpu as pltpu


# ------------------------------- small helpers ------------------------------

def _round_up(x, m):
    return (x + m - 1) // m * m


def _pick_rows_tile(n_rows, *, cap):
    """Largest row tile <= cap; split large single-step grids so 2 TCs get work."""
    m8 = _round_up(max(n_rows, 1), 8)
    tile = min(cap, m8)
    if tile >= m8 and m8 > 8:
        tile = _round_up((m8 + 1) // 2, 16)     # >= 2 grid steps for megacore
    return tile


def _pick_cols_tile(n_cols, *, cap):
    for tile in (cap, 384, 256, 128):
        if tile <= n_cols and n_cols % tile == 0:
            return tile
    return n_cols


# ------------------------------- Pallas kernels -----------------------------

def _matmul_kernel(a_ref, b_ref, o_ref):
    # bf16 x bf16 -> f32 accumulate on the MXU
    o_ref[...] = jnp.dot(a_ref[...], b_ref[...], preferred_element_type=jnp.float32)


def _pallas_matmul(a, b, *, tm):
    """bf16 (M, Cin) @ bf16 (Cin, Nc) -> f32 (M, Nc); Nc is a multiple of 128."""
    M, Kd = a.shape
    Kd2, Nc = b.shape
    assert Kd == Kd2 and Nc % 128 == 0
    m_pad = _round_up(M, tm)
    if m_pad != M:
        a = jnp.pad(a, ((0, m_pad - M), (0, 0)))
    tn = _pick_cols_tile(Nc, cap=512)
    out = pl.pallas_call(
        _matmul_kernel,
        out_shape=jax.ShapeDtypeStruct((m_pad, Nc), jnp.float32),
        grid=(m_pad // tm, Nc // tn),
        in_specs=[
            pl.BlockSpec((tm, Kd), lambda i, j: (i, 0)),
            pl.BlockSpec((Kd, tn), lambda i, j: (0, j)),
        ],
        out_specs=pl.BlockSpec((tm, tn), lambda i, j: (i, j)),
        compiler_params=pltpu.CompilerParams(
            dimension_semantics=("parallel", "parallel"),
            vmem_limit_bytes=48 * 1024 * 1024,
        ),
    )(a, b)
    return out[:M]


def _bn_stats_kernel(x_ref, sum_ref, sq_ref):
    @pl.when(pl.program_id(0) == 0)
    def _init():
        sum_ref[...] = jnp.zeros_like(sum_ref)
        sq_ref[...] = jnp.zeros_like(sq_ref)

    x = x_ref[...]
    sum_ref[...] += jnp.sum(x, axis=0, keepdims=True)
    sq_ref[...] += jnp.sum(x * x, axis=0, keepdims=True)


def _pallas_col_sums(x2d, *, tr):
    """Per-column sum / sum-of-squares of an (R, L) f32 slab, row-tiled + accumulated."""
    R, L = x2d.shape
    r_pad = _round_up(R, tr)
    if r_pad != R:
        x2d = jnp.pad(x2d, ((0, r_pad - R), (0, 0)))     # zero rows don't change the sums
    return pl.pallas_call(
        _bn_stats_kernel,
        out_shape=(jax.ShapeDtypeStruct((1, L), jnp.float32),
                   jax.ShapeDtypeStruct((1, L), jnp.float32)),
        grid=(r_pad // tr,),
        in_specs=[pl.BlockSpec((tr, L), lambda i: (i, 0))],
        out_specs=(pl.BlockSpec((1, L), lambda i: (0, 0)),
                   pl.BlockSpec((1, L), lambda i: (0, 0))),
        compiler_params=pltpu.CompilerParams(dimension_semantics=("arbitrary",)),
    )(x2d)


def _apply_act(x, act):
    if act == "relu":
        return jnp.maximum(x, 0.0)
    if act == "tanh":
        return jnp.tanh(x)
    return x


def _scale_shift_act_kernel(x_ref, scale_ref, shift_ref, o_ref, *, act):
    x = x_ref[...] * scale_ref[...] + shift_ref[...]
    o_ref[...] = _apply_act(x, act).astype(o_ref.dtype)


def _act_only_kernel(x_ref, o_ref, *, act):
    o_ref[...] = _apply_act(x_ref[...], act).astype(o_ref.dtype)


def _pallas_scale_shift_act(x2d, scale_row, shift_row, *, act, out_dtype, tr):
    """Fused per-channel affine (BN apply / bias) + activation, row-tiled."""
    R, L = x2d.shape
    r_pad = _round_up(R, tr)
    if r_pad != R:
        x2d = jnp.pad(x2d, ((0, r_pad - R), (0, 0)))
    out = pl.pallas_call(
        functools.partial(_scale_shift_act_kernel, act=act),
        out_shape=jax.ShapeDtypeStruct((r_pad, L), out_dtype),
        grid=(r_pad // tr,),
        in_specs=[
            pl.BlockSpec((tr, L), lambda i: (i, 0)),
            pl.BlockSpec((1, L), lambda i: (0, 0)),
            pl.BlockSpec((1, L), lambda i: (0, 0)),
        ],
        out_specs=pl.BlockSpec((tr, L), lambda i: (i, 0)),
        compiler_params=pltpu.CompilerParams(dimension_semantics=("parallel",)),
    )(x2d, scale_row, shift_row)
    return out[:R]


def _pallas_act_only(x2d, *, act, out_dtype, tr):
    """Activation-only pass (final Tanh layer: no BN, no bias)."""
    R, L = x2d.shape
    r_pad = _round_up(R, tr)
    if r_pad != R:
        x2d = jnp.pad(x2d, ((0, r_pad - R), (0, 0)))
    out = pl.pallas_call(
        functools.partial(_act_only_kernel, act=act),
        out_shape=jax.ShapeDtypeStruct((r_pad, L), out_dtype),
        grid=(r_pad // tr,),
        in_specs=[pl.BlockSpec((tr, L), lambda i: (i, 0))],
        out_specs=pl.BlockSpec((tr, L), lambda i: (i, 0)),
        compiler_params=pltpu.CompilerParams(dimension_semantics=("parallel",)),
    )(x2d)
    return out[:R]


# ----------------------- ConvTranspose2d = GEMM + col2im --------------------

def _col2im_phase_add(y6, stride, pad, OH, OW):
    """Scatter-free overlap-add of the K*K tap planes (sub-pixel phase decomposition).

    y6: (N, H, W, K, K, C) float32; output position of tap (kh, kw) at input (h, w) is
    (h*stride + kh - pad, w*stride + kw - pad), i.e. PyTorch ConvTranspose2d semantics.
    """
    # TODO(synk): this overlap-add runs as fused XLA pad/adds; fold it into a Pallas
    # epilogue with manual DMA if it ever dominates the profile.
    N, H, W, K, _, C = y6.shape
    s = stride
    qmax = (K - 1) // s
    HQ, WQ = H + qmax, W + qmax
    rows = []
    for rh in range(s):
        cols = []
        for rw in range(s):
            acc = jnp.zeros((N, HQ, WQ, C), jnp.float32)
            for qh in range(qmax + 1):
                kh = s * qh + rh
                if kh >= K:
                    continue
                for qw in range(qmax + 1):
                    kw = s * qw + rw
                    if kw >= K:
                        continue
                    acc = acc + jnp.pad(
                        y6[:, :, :, kh, kw, :],
                        ((0, 0), (qh, HQ - H - qh), (qw, WQ - W - qw), (0, 0)))
            cols.append(acc)                       # phase (rh, rw): pixels (s*i+rh, s*j+rw)
        rows.append(jnp.stack(cols, axis=3))       # (N, HQ, WQ, s, C)
    full = jnp.stack(rows, axis=2)                 # (N, HQ, s, WQ, s, C)
    full = full.reshape(N, HQ * s, WQ * s, C)
    return full[:, pad:pad + OH, pad:pad + OW, :]


def _conv_transpose2d_gemm(x_nhwc, layer):
    """ConvTranspose2d via (N*H*W, Cin) @ (Cin, K*K*Cout) on the MXU + overlap-add."""
    N, H, W, Cin = x_nhwc.shape
    K, stride, pad, Cout = layer["K"], layer["stride"], layer["pad"], layer["Cout"]
    wmat = layer["wmat"]                                   # (Cin, Npad) bf16, prepped once
    M = N * H * W
    a = x_nhwc.reshape(M, Cin).astype(jnp.bfloat16)
    tm = _pick_rows_tile(M, cap=512)
    y = _pallas_matmul(a, wmat, tm=tm)                     # (M, Npad) f32
    y = y[:, :K * K * Cout].reshape(N, H, W, K, K, Cout)
    OH = (H - 1) * stride - 2 * pad + K
    OW = (W - 1) * stride - 2 * pad + K
    return _col2im_phase_add(y, stride, pad, OH, OW)       # (N, OH, OW, Cout) f32


# ----------------------------------- NetG -----------------------------------

_LAYER_CFG = (
    # name, stride, pad, has BN, activation
    ("l1", 1, 0, True, "relu"),    # nz    -> ngf*8, 1x1 -> 4x4
    ("l2", 2, 1, True, "relu"),    # ngf*8 -> ngf*4, 4   -> 8
    ("l3", 2, 1, True, "relu"),    # ngf*4 -> ngf*2, 8   -> 16  (conv bias)
    ("l4", 2, 1, True, "relu"),    # ngf*2 -> ngf,   16  -> 32
    ("l5", 3, 1, False, "tanh"),   # ngf   -> 3,     32  -> 96
)


def prepare_netg_params(params):
    """One-time GEMM weight prep (transpose/reshape/pad/bf16), hoisted out of forward."""
    glayers = []
    for name, stride, pad, do_bn, act in _LAYER_CFG:
        w = params[name + "_w"]                            # (Cin, Cout, K, K) PyTorch layout
        Cin, Cout, K, _ = w.shape
        kkc = K * K * Cout
        n_pad = _round_up(kkc, 128)                        # lane-dense GEMM output columns
        wmat = jnp.transpose(w, (0, 2, 3, 1)).reshape(Cin, kkc)
        if n_pad != kkc:
            wmat = jnp.pad(wmat, ((0, 0), (0, n_pad - kkc)))
        glayers.append(dict(
            K=K, stride=stride, pad=pad, Cout=Cout, do_bn=do_bn, act=act,
            wmat=wmat.astype(jnp.bfloat16),                # bf16 MXU operand
            bias=params.get(name + "_b"),
            gamma=params.get(name + "_gamma"),
            beta=params.get(name + "_beta"),
        ))
    return glayers


def netg_forward(x_nchw, glayers):
    """NetG forward. `glayers` comes from prepare_netg_params(). NCHW in / NCHW out."""
    x = jnp.transpose(x_nchw, (0, 2, 3, 1)).astype(jnp.float32)     # NCHW -> NHWC
    last = len(glayers) - 1
    for li, layer in enumerate(glayers):
        y = _conv_transpose2d_gemm(x, layer)               # (N, OH, OW, C) f32
        N, OH, OW, C = y.shape
        y2d = y.reshape(N * OH, OW * C)                    # lane-dense channels-last view
        tr = _pick_rows_tile(N * OH, cap=256)
        out_dtype = jnp.float32 if li == last else jnp.bfloat16     # bf16 intermediates

        if layer["do_bn"]:
            # training-mode BatchNorm2d: biased batch stats over all N*OH*OW positions.
            # (A conv bias preceding training-mode BN is absorbed exactly by the mean
            #  subtraction, so it is dropped here -- relevant only for layer l3.)
            col_sum, col_sq = _pallas_col_sums(y2d, tr=tr)
            inv_cnt = 1.0 / float(N * OH * OW)
            csum = jnp.sum(col_sum.reshape(OW, C), axis=0)
            csq = jnp.sum(col_sq.reshape(OW, C), axis=0)
            mean = csum * inv_cnt
            var = jnp.maximum(csq * inv_cnt - mean * mean, 0.0)
            scale_c = layer["gamma"] * jax.lax.rsqrt(var + 1e-5)
            shift_c = layer["beta"] - mean * scale_c
            scale_row = jnp.tile(scale_c.reshape(1, 1, C), (1, OW, 1)).reshape(1, OW * C)
            shift_row = jnp.tile(shift_c.reshape(1, 1, C), (1, OW, 1)).reshape(1, OW * C)
            y2d = _pallas_scale_shift_act(y2d, scale_row, shift_row,
                                          act=layer["act"], out_dtype=out_dtype, tr=tr)
        elif layer["bias"] is not None:
            # bias (no BN): fold the bias into the affine apply pass.
            scale_row = jnp.ones((1, OW * C), jnp.float32)
            shift_row = jnp.tile(layer["bias"].astype(jnp.float32).reshape(1, 1, C),
                                 (1, OW, 1)).reshape(1, OW * C)
            y2d = _pallas_scale_shift_act(y2d, scale_row, shift_row,
                                          act=layer["act"], out_dtype=out_dtype, tr=tr)
        else:
            # final Tanh layer: no BN, no bias -> activation-only pass (no identity affine).
            y2d = _pallas_act_only(y2d, act=layer["act"], out_dtype=out_dtype, tr=tr)

        x = y2d.reshape(N, OH, OW, C)
    return jnp.transpose(x, (0, 3, 1, 2)).astype(jnp.float32)       # NHWC -> NCHW


def init_params(key, nz, ngf):
    """PyTorch-layout parameters, like NetG's state_dict."""
    layers = [
        ("l1", nz,      ngf * 8, 4, False),
        ("l2", ngf * 8, ngf * 4, 4, False),
        ("l3", ngf * 4, ngf * 2, 4, True),
        ("l4", ngf * 2, ngf,     4, False),
        ("l5", ngf,     3,       5, False),
    ]
    params = {}
    for name, cin, cout, k, has_bias in layers:
        key, wk, bk = jax.random.split(key, 3)
        params[name + "_w"] = 0.02 * jax.random.normal(wk, (cin, cout, k, k), jnp.float32)
        if has_bias:
            params[name + "_b"] = 0.02 * jax.random.normal(bk, (cout,), jnp.float32)
        if name != "l5":  # BatchNorm default init: weight=1, bias=0
            params[name + "_gamma"] = jnp.ones((cout,), jnp.float32)
            params[name + "_beta"] = jnp.zeros((cout,), jnp.float32)
    return params


# ---------------------- pure-JAX float32 reference (checks) -----------------

def _reference_netg(x_nchw, params):
    """Pure-jnp f32 reference with PyTorch ConvTranspose2d / training-mode BN semantics."""
    x = jnp.transpose(x_nchw, (0, 2, 3, 1)).astype(jnp.float32)
    for name, stride, pad, do_bn, act in _LAYER_CFG:
        w = params[name + "_w"].astype(jnp.float32)        # (Cin, Cout, K, K)
        Cin, Cout, K, _ = w.shape
        N, H, W, _ = x.shape
        s = stride
        Hd, Wd = (H - 1) * s + 1, (W - 1) * s + 1
        xd = jnp.zeros((N, Hd, Wd, Cin), jnp.float32).at[:, ::s, ::s, :].set(x)
        p = K - 1 - pad
        xp = jnp.pad(xd, ((0, 0), (p, p), (p, p), (0, 0)))
        OH = (H - 1) * s - 2 * pad + K
        OW = (W - 1) * s - 2 * pad + K
        wf = w[:, :, ::-1, ::-1]                           # spatially flipped kernel
        y = jnp.zeros((N, OH, OW, Cout), jnp.float32)
        for kh in range(K):
            for kw in range(K):
                y = y + jnp.einsum("nhwc,cd->nhwd",
                                   xp[:, kh:kh + OH, kw:kw + OW, :], wf[:, :, kh, kw])
        if name + "_b" in params:
            y = y + params[name + "_b"]
        if do_bn:
            mean = jnp.mean(y, axis=(0, 1, 2))
            var = jnp.mean((y - mean) ** 2, axis=(0, 1, 2))
            y = (y - mean) * jax.lax.rsqrt(var + 1e-5)
            y = y * params[name + "_gamma"] + params[name + "_beta"]
        x = jnp.maximum(y, 0.0) if act == "relu" else jnp.tanh(y)
    return jnp.transpose(x, (0, 3, 1, 2))


# ------------------------------------ main -----------------------------------

if __name__ == "__main__":
    nz, ngf, batch = 8, 8, 2
    key = jax.random.PRNGKey(0)
    pkey, xkey = jax.random.split(key)
    params = init_params(pkey, nz, ngf)
    glayers = prepare_netg_params(params)                  # weight prep hoisted out of forward
    x = jax.random.normal(xkey, (batch, nz, 1, 1), jnp.float32)

    forward = jax.jit(lambda inp: netg_forward(inp, glayers))
    out = jax.block_until_ready(forward(x))

    assert out.shape == (batch, 3, 96, 96), out.shape
    assert bool(jnp.all(jnp.isfinite(out)))
    assert bool(jnp.max(jnp.abs(out)) <= 1.0 + 1e-6)       # tanh output range

    # numerical cross-check against an f32 reference of the PyTorch module
    ref = jax.block_until_ready(jax.jit(_reference_netg)(x, params))
    max_diff = float(jnp.max(jnp.abs(out - ref)))
    assert max_diff < 0.1, f"max |pallas - reference| = {max_diff}"

    print("KERNEL_OK")
</pallas_src>

<mosaic_0001>
module attributes {stable_mosaic.version = 11 : i64} {
  func.func @_matmul_kernel(%arg0: i32, %arg1: i32, %arg2: memref<8x8xbf16, #tpu.memory_space<vmem>>, %arg3: memref<8x512xbf16, #tpu.memory_space<vmem>>, %arg4: memref<8x512xf32, #tpu.memory_space<vmem>>) attributes {dimension_semantics = [#tpu.dimension_semantics<parallel>, #tpu.dimension_semantics<parallel>], iteration_bounds = array<i64: 1, 2>, scalar_prefetch = 0 : i64, scratch_operands = 0 : i64, tpu.core_type = #tpu.core_type<tc>, window_params = [{transform_indices = @transform_0, window_bounds = array<i64: 8, 8>}, {transform_indices = @transform_1, window_bounds = array<i64: 8, 512>}, {transform_indices = @transform_2, window_bounds = array<i64: 8, 512>}]} {
    %c0 = arith.constant 0 : index
    %c0_0 = arith.constant 0 : index
    %0 = vector.load %arg2[%c0, %c0_0] : memref<8x8xbf16, #tpu.memory_space<vmem>>, vector<8x8xbf16>
    %c0_1 = arith.constant 0 : index
    %c0_2 = arith.constant 0 : index
    %1 = vector.load %arg3[%c0_1, %c0_2] : memref<8x512xbf16, #tpu.memory_space<vmem>>, vector<8x512xbf16>
    %cst = arith.constant dense<0.000000e+00> : vector<8x512xf32>
    %2 = tpu.matmul %0, %1, %cst {dimension_numbers = #tpu.dot_dimension_numbers<[1], [0], [0], [1], [0, 0, 1, 1], [], []>} : vector<8x8xbf16>, vector<8x512xbf16>, vector<8x512xf32> -> vector<8x512xf32>
    %c0_3 = arith.constant 0 : index
    %c0_4 = arith.constant 0 : index
    %3 = vector.load %arg4[%c0_3, %c0_4] : memref<8x512xf32, #tpu.memory_space<vmem>>, vector<8x512xf32>
    tpu.vector_store %arg4[%c0_3, %c0_4], %2 {strides = array<i32>} : memref<8x512xf32, #tpu.memory_space<vmem>>, vector<8x512xf32>,
    return
  }
  func.func @transform_0(%arg0: i32, %arg1: i32) -> (i32, i32) {
    %c0_i32 = arith.constant 0 : i32
    %c0_i32_0 = arith.constant 0 : i32
    return %arg0, %c0_i32 : i32, i32
  }
  func.func @transform_1(%arg0: i32, %arg1: i32) -> (i32, i32) {
    %c0_i32 = arith.constant 0 : i32
    %c0_i32_0 = arith.constant 0 : i32
    return %c0_i32, %arg1 : i32, i32
  }
  func.func @transform_2(%arg0: i32, %arg1: i32) -> (i32, i32) {
    %c0_i32 = arith.constant 0 : i32
    return %arg0, %arg1 : i32, i32
  }
}

module attributes {stable_mosaic.version = 11 : i64} {
  func.func @_bn_stats_kernel(%arg0: i32, %arg1: memref<8x256xf32, #tpu.memory_space<vmem>>, %arg2: memref<1x256xf32, #tpu.memory_space<vmem>>, %arg3: memref<1x256xf32, #tpu.memory_space<vmem>>) attributes {dimension_semantics = [#tpu.dimension_semantics<arbitrary>], iteration_bounds = array<i64: 1>, scalar_prefetch = 0 : i64, scratch_operands = 0 : i64, tpu.core_type = #tpu.core_type<tc>, window_params = [{transform_indices = @transform_0, window_bounds = array<i64: 8, 256>}, {pipeline_mode = #tpu.pipeline_mode<synchronous>, transform_indices = @transform_1, window_bounds = array<i64: 1, 256>}, {pipeline_mode = #tpu.pipeline_mode<synchronous>, transform_indices = @transform_2, window_bounds = array<i64: 1, 256>}]} {
    %c0_i32 = arith.constant 0 : i32
    %0 = arith.cmpi eq, %arg0, %c0_i32 : i32
    %1 = arith.extui %0 : i1 to i32
    %c0_i32_0 = arith.constant 0 : i32
    %2 = arith.cmpi ne, %1, %c0_i32_0 : i32
    scf.if %2 {
      %cst_11 = arith.constant 0.000000e+00 : f32
      %15 = vector.broadcast %cst_11 : f32 to vector<1x256xf32>
      %c0_12 = arith.constant 0 : index
      %c0_13 = arith.constant 0 : index
      %16 = vector.load %arg2[%c0_12, %c0_13] : memref<1x256xf32, #tpu.memory_space<vmem>>, vector<1x256xf32>
      tpu.vector_store %arg2[%c0_12, %c0_13], %15 {strides = array<i32>} : memref<1x256xf32, #tpu.memory_space<vmem>>, vector<1x256xf32>,
      %cst_14 = arith.constant 0.000000e+00 : f32
      %17 = vector.broadcast %cst_14 : f32 to vector<1x256xf32>
      %c0_15 = arith.constant 0 : index
      %c0_16 = arith.constant 0 : index
      %18 = vector.load %arg3[%c0_15, %c0_16] : memref<1x256xf32, #tpu.memory_space<vmem>>, vector<1x256xf32>
      tpu.vector_store %arg3[%c0_15, %c0_16], %17 {strides = array<i32>} : memref<1x256xf32, #tpu.memory_space<vmem>>, vector<1x256xf32>,
    } else {
    }
    %c0 = arith.constant 0 : index
    %c0_1 = arith.constant 0 : index
    %3 = vector.load %arg1[%c0, %c0_1] : memref<8x256xf32, #tpu.memory_space<vmem>>, vector<8x256xf32>
    %c0_2 = arith.constant 0 : index
    %c0_3 = arith.constant 0 : index
    %4 = vector.load %arg2[%c0_2, %c0_3] : memref<1x256xf32, #tpu.memory_space<vmem>>, vector<1x256xf32>
    %cst = arith.constant dense<0.000000e+00> : vector<256xf32>
    %5 = vector.multi_reduction <add>, %3, %cst [0] : vector<8x256xf32> to vector<256xf32>
    %6 = vector.shape_cast %5 : vector<256xf32> to vector<1x256xf32>
    %7 = arith.addf %4, %6 : vector<1x256xf32>
    %c0_4 = arith.constant 0 : index
    %c0_5 = arith.constant 0 : index
    %8 = vector.load %arg2[%c0_4, %c0_5] : memref<1x256xf32, #tpu.memory_space<vmem>>, vector<1x256xf32>
    tpu.vector_store %arg2[%c0_4, %c0_5], %7 {strides = array<i32>} : memref<1x256xf32, #tpu.memory_space<vmem>>, vector<1x256xf32>,
    %c0_6 = arith.constant 0 : index
    %c0_7 = arith.constant 0 : index
    %9 = vector.load %arg3[%c0_6, %c0_7] : memref<1x256xf32, #tpu.memory_space<vmem>>, vector<1x256xf32>
    %10 = arith.mulf %3, %3 : vector<8x256xf32>
    %cst_8 = arith.constant dense<0.000000e+00> : vector<256xf32>
    %11 = vector.multi_reduction <add>, %10, %cst_8 [0] : vector<8x256xf32> to vector<256xf32>
    %12 = vector.shape_cast %11 : vector<256xf32> to vector<1x256xf32>
    %13 = arith.addf %9, %12 : vector<1x256xf32>
    %c0_9 = arith.constant 0 : index
    %c0_10 = arith.constant 0 : index
    %14 = vector.load %arg3[%c0_9, %c0_10] : memref<1x256xf32, #tpu.memory_space<vmem>>, vector<1x256xf32>
    tpu.vector_store %arg3[%c0_9, %c0_10], %13 {strides = array<i32>} : memref<1x256xf32, #tpu.memory_space<vmem>>, vector<1x256xf32>,
    return
  }
  func.func @transform_0(%arg0: i32) -> (i32, i32) {
    %c0_i32 = arith.constant 0 : i32
    %c0_i32_0 = arith.constant 0 : i32
    return %arg0, %c0_i32 : i32, i32
  }
  func.func @transform_1(%arg0: i32) -> (i32, i32) {
    %c0_i32 = arith.constant 0 : i32
    %c0_i32_0 = arith.constant 0 : i32
    %c0_i32_1 = arith.constant 0 : i32
    return %c0_i32, %c0_i32_0 : i32, i32
  }
  func.func @transform_2(%arg0: i32) -> (i32, i32) {
    %c0_i32 = arith.constant 0 : i32
    %c0_i32_0 = arith.constant 0 : i32
    %c0_i32_1 = arith.constant 0 : i32
    return %c0_i32, %c0_i32_0 : i32, i32
  }
}

module attributes {stable_mosaic.version = 11 : i64} {
  func.func @_scale_shift_act_kernel(%arg0: i32, %arg1: memref<8x256xf32, #tpu.memory_space<vmem>>, %arg2: memref<1x256xf32, #tpu.memory_space<vmem>>, %arg3: memref<1x256xf32, #tpu.memory_space<vmem>>, %arg4: memref<8x256xbf16, #tpu.memory_space<vmem>>) attributes {dimension_semantics = [#tpu.dimension_semantics<parallel>], iteration_bounds = array<i64: 1>, scalar_prefetch = 0 : i64, scratch_operands = 0 : i64, tpu.core_type = #tpu.core_type<tc>, window_params = [{transform_indices = @transform_0, window_bounds = array<i64: 8, 256>}, {pipeline_mode = #tpu.pipeline_mode<synchronous>, transform_indices = @transform_1, window_bounds = array<i64: 1, 256>}, {pipeline_mode = #tpu.pipeline_mode<synchronous>, transform_indices = @transform_2, window_bounds = array<i64: 1, 256>}, {transform_indices = @transform_3, window_bounds = array<i64: 8, 256>}]} {
    %c0 = arith.constant 0 : index
    %c0_0 = arith.constant 0 : index
    %0 = vector.load %arg1[%c0, %c0_0] : memref<8x256xf32, #tpu.memory_space<vmem>>, vector<8x256xf32>
    %c0_1 = arith.constant 0 : index
    %c0_2 = arith.constant 0 : index
    %1 = vector.load %arg2[%c0_1, %c0_2] : memref<1x256xf32, #tpu.memory_space<vmem>>, vector<1x256xf32>
    %2 = vector.broadcast %1 : vector<1x256xf32> to vector<8x256xf32>
    %3 = arith.mulf %0, %2 : vector<8x256xf32>
    %c0_3 = arith.constant 0 : index
    %c0_4 = arith.constant 0 : index
    %4 = vector.load %arg3[%c0_3, %c0_4] : memref<1x256xf32, #tpu.memory_space<vmem>>, vector<1x256xf32>
    %5 = vector.broadcast %4 : vector<1x256xf32> to vector<8x256xf32>
    %6 = arith.addf %3, %5 : vector<8x256xf32>
    %cst = arith.constant 0.000000e+00 : f32
    %7 = vector.broadcast %cst : f32 to vector<8x256xf32>
    %8 = arith.maximumf %6, %7 : vector<8x256xf32>
    %9 = arith.truncf %8 : vector<8x256xf32> to vector<8x256xbf16>
    %c0_5 = arith.constant 0 : index
    %c0_6 = arith.constant 0 : index
    %10 = vector.load %arg4[%c0_5, %c0_6] : memref<8x256xbf16, #tpu.memory_space<vmem>>, vector<8x256xbf16>
    tpu.vector_store %arg4[%c0_5, %c0_6], %9 {strides = array<i32>} : memref<8x256xbf16, #tpu.memory_space<vmem>>, vector<8x256xbf16>,
    return
  }
  func.func @transform_0(%arg0: i32) -> (i32, i32) {
    %c0_i32 = arith.constant 0 : i32
    %c0_i32_0 = arith.constant 0 : i32
    return %arg0, %c0_i32 : i32, i32
  }
  func.func @transform_1(%arg0: i32) -> (i32, i32) {
    %c0_i32 = arith.constant 0 : i32
    %c0_i32_0 = arith.constant 0 : i32
    %c0_i32_1 = arith.constant 0 : i32
    return %c0_i32, %c0_i32_0 : i32, i32
  }
  func.func @transform_2(%arg0: i32) -> (i32, i32) {
    %c0_i32 = arith.constant 0 : i32
    %c0_i32_0 = arith.constant 0 : i32
    %c0_i32_1 = arith.constant 0 : i32
    return %c0_i32, %c0_i32_0 : i32, i32
  }
  func.func @transform_3(%arg0: i32) -> (i32, i32) {
    %c0_i32 = arith.constant 0 : i32
    %c0_i32_0 = arith.constant 0 : i32
    return %arg0, %c0_i32 : i32, i32
  }
}

module attributes {stable_mosaic.version = 11 : i64} {
  func.func @_matmul_kernel(%arg0: i32, %arg1: i32, %arg2: memref<16x64xbf16, #tpu.memory_space<vmem>>, %arg3: memref<64x512xbf16, #tpu.memory_space<vmem>>, %arg4: memref<16x512xf32, #tpu.memory_space<vmem>>) attributes {dimension_semantics = [#tpu.dimension_semantics<parallel>, #tpu.dimension_semantics<parallel>], iteration_bounds = array<i64: 2, 1>, scalar_prefetch = 0 : i64, scratch_operands = 0 : i64, tpu.core_type = #tpu.core_type<tc>, window_params = [{transform_indices = @transform_0, window_bounds = array<i64: 16, 64>}, {transform_indices = @transform_1, window_bounds = array<i64: 64, 512>}, {transform_indices = @transform_2, window_bounds = array<i64: 16, 512>}]} {
    %c0 = arith.constant 0 : index
    %c0_0 = arith.constant 0 : index
    %0 = vector.load %arg2[%c0, %c0_0] : memref<16x64xbf16, #tpu.memory_space<vmem>>, vector<16x64xbf16>
    %c0_1 = arith.constant 0 : index
    %c0_2 = arith.constant 0 : index
    %1 = vector.load %arg3[%c0_1, %c0_2] : memref<64x512xbf16, #tpu.memory_space<vmem>>, vector<64x512xbf16>
    %cst = arith.constant dense<0.000000e+00> : vector<16x512xf32>
    %2 = tpu.matmul %0, %1, %cst {dimension_numbers = #tpu.dot_dimension_numbers<[1], [0], [0], [1], [0, 0, 1, 1], [], []>} : vector<16x64xbf16>, vector<64x512xbf16>, vector<16x512xf32> -> vector<16x512xf32>
    %c0_3 = arith.constant 0 : index
    %c0_4 = arith.constant 0 : index
    %3 = vector.load %arg4[%c0_3, %c0_4] : memref<16x512xf32, #tpu.memory_space<vmem>>, vector<16x512xf32>
    tpu.vector_store %arg4[%c0_3, %c0_4], %2 {strides = array<i32>} : memref<16x512xf32, #tpu.memory_space<vmem>>, vector<16x512xf32>,
    return
  }
  func.func @transform_0(%arg0: i32, %arg1: i32) -> (i32, i32) {
    %c0_i32 = arith.constant 0 : i32
    %c0_i32_0 = arith.constant 0 : i32
    return %arg0, %c0_i32 : i32, i32
  }
  func.func @transform_1(%arg0: i32, %arg1: i32) -> (i32, i32) {
    %c0_i32 = arith.constant 0 : i32
    %c0_i32_0 = arith.constant 0 : i32
    return %c0_i32, %arg1 : i32, i32
  }
  func.func @transform_2(%arg0: i32, %arg1: i32) -> (i32, i32) {
    %c0_i32 = arith.constant 0 : i32
    return %arg0, %arg1 : i32, i32
  }
}

module attributes {stable_mosaic.version = 11 : i64} {
  func.func @_bn_stats_kernel(%arg0: i32, %arg1: memref<16x256xf32, #tpu.memory_space<vmem>>, %arg2: memref<1x256xf32, #tpu.memory_space<vmem>>, %arg3: memref<1x256xf32, #tpu.memory_space<vmem>>) attributes {dimension_semantics = [#tpu.dimension_semantics<arbitrary>], iteration_bounds = array<i64: 1>, scalar_prefetch = 0 : i64, scratch_operands = 0 : i64, tpu.core_type = #tpu.core_type<tc>, window_params = [{transform_indices = @transform_0, window_bounds = array<i64: 16, 256>}, {pipeline_mode = #tpu.pipeline_mode<synchronous>, transform_indices = @transform_1, window_bounds = array<i64: 1, 256>}, {pipeline_mode = #tpu.pipeline_mode<synchronous>, transform_indices = @transform_2, window_bounds = array<i64: 1, 256>}]} {
    %c0_i32 = arith.constant 0 : i32
    %0 = arith.cmpi eq, %arg0, %c0_i32 : i32
    %1 = arith.extui %0 : i1 to i32
    %c0_i32_0 = arith.constant 0 : i32
    %2 = arith.cmpi ne, %1, %c0_i32_0 : i32
    scf.if %2 {
      %cst_11 = arith.constant 0.000000e+00 : f32
      %15 = vector.broadcast %cst_11 : f32 to vector<1x256xf32>
      %c0_12 = arith.constant 0 : index
      %c0_13 = arith.constant 0 : index
      %16 = vector.load %arg2[%c0_12, %c0_13] : memref<1x256xf32, #tpu.memory_space<vmem>>, vector<1x256xf32>
      tpu.vector_store %arg2[%c0_12, %c0_13], %15 {strides = array<i32>} : memref<1x256xf32, #tpu.memory_space<vmem>>, vector<1x256xf32>,
      %cst_14 = arith.constant 0.000000e+00 : f32
      %17 = vector.broadcast %cst_14 : f32 to vector<1x256xf32>
      %c0_15 = arith.constant 0 : index
      %c0_16 = arith.constant 0 : index
      %18 = vector.load %arg3[%c0_15, %c0_16] : memref<1x256xf32, #tpu.memory_space<vmem>>, vector<1x256xf32>
      tpu.vector_store %arg3[%c0_15, %c0_16], %17 {strides = array<i32>} : memref<1x256xf32, #tpu.memory_space<vmem>>, vector<1x256xf32>,
    } else {
    }
    %c0 = arith.constant 0 : index
    %c0_1 = arith.constant 0 : index
    %3 = vector.load %arg1[%c0, %c0_1] : memref<16x256xf32, #tpu.memory_space<vmem>>, vector<16x256xf32>
    %c0_2 = arith.constant 0 : index
    %c0_3 = arith.constant 0 : index
    %4 = vector.load %arg2[%c0_2, %c0_3] : memref<1x256xf32, #tpu.memory_space<vmem>>, vector<1x256xf32>
    %cst = arith.constant dense<0.000000e+00> : vector<256xf32>
    %5 = vector.multi_reduction <add>, %3, %cst [0] : vector<16x256xf32> to vector<256xf32>
    %6 = vector.shape_cast %5 : vector<256xf32> to vector<1x256xf32>
    %7 = arith.addf %4, %6 : vector<1x256xf32>
    %c0_4 = arith.constant 0 : index
    %c0_5 = arith.constant 0 : index
    %8 = vector.load %arg2[%c0_4, %c0_5] : memref<1x256xf32, #tpu.memory_space<vmem>>, vector<1x256xf32>
    tpu.vector_store %arg2[%c0_4, %c0_5], %7 {strides = array<i32>} : memref<1x256xf32, #tpu.memory_space<vmem>>, vector<1x256xf32>,
    %c0_6 = arith.constant 0 : index
    %c0_7 = arith.constant 0 : index
    %9 = vector.load %arg3[%c0_6, %c0_7] : memref<1x256xf32, #tpu.memory_space<vmem>>, vector<1x256xf32>
    %10 = arith.mulf %3, %3 : vector<16x256xf32>
    %cst_8 = arith.constant dense<0.000000e+00> : vector<256xf32>
    %11 = vector.multi_reduction <add>, %10, %cst_8 [0] : vector<16x256xf32> to vector<256xf32>
    %12 = vector.shape_cast %11 : vector<256xf32> to vector<1x256xf32>
    %13 = arith.addf %9, %12 : vector<1x256xf32>
    %c0_9 = arith.constant 0 : index
    %c0_10 = arith.constant 0 : index
    %14 = vector.load %arg3[%c0_9, %c0_10] : memref<1x256xf32, #tpu.memory_space<vmem>>, vector<1x256xf32>
    tpu.vector_store %arg3[%c0_9, %c0_10], %13 {strides = array<i32>} : memref<1x256xf32, #tpu.memory_space<vmem>>, vector<1x256xf32>,
    return
  }
  func.func @transform_0(%arg0: i32) -> (i32, i32) {
    %c0_i32 = arith.constant 0 : i32
    %c0_i32_0 = arith.constant 0 : i32
    return %arg0, %c0_i32 : i32, i32
  }
  func.func @transform_1(%arg0: i32) -> (i32, i32) {
    %c0_i32 = arith.constant 0 : i32
    %c0_i32_0 = arith.constant 0 : i32
    %c0_i32_1 = arith.constant 0 : i32
    return %c0_i32, %c0_i32_0 : i32, i32
  }
  func.func @transform_2(%arg0: i32) -> (i32, i32) {
    %c0_i32 = arith.constant 0 : i32
    %c0_i32_0 = arith.constant 0 : i32
    %c0_i32_1 = arith.constant 0 : i32
    return %c0_i32, %c0_i32_0 : i32, i32
  }
}

module attributes {stable_mosaic.version = 11 : i64} {
  func.func @_scale_shift_act_kernel(%arg0: i32, %arg1: memref<16x256xf32, #tpu.memory_space<vmem>>, %arg2: memref<1x256xf32, #tpu.memory_space<vmem>>, %arg3: memref<1x256xf32, #tpu.memory_space<vmem>>, %arg4: memref<16x256xbf16, #tpu.memory_space<vmem>>) attributes {dimension_semantics = [#tpu.dimension_semantics<parallel>], iteration_bounds = array<i64: 1>, scalar_prefetch = 0 : i64, scratch_operands = 0 : i64, tpu.core_type = #tpu.core_type<tc>, window_params = [{transform_indices = @transform_0, window_bounds = array<i64: 16, 256>}, {pipeline_mode = #tpu.pipeline_mode<synchronous>, transform_indices = @transform_1, window_bounds = array<i64: 1, 256>}, {pipeline_mode = #tpu.pipeline_mode<synchronous>, transform_indices = @transform_2, window_bounds = array<i64: 1, 256>}, {transform_indices = @transform_3, window_bounds = array<i64: 16, 256>}]} {
    %c0 = arith.constant 0 : index
    %c0_0 = arith.constant 0 : index
    %0 = vector.load %arg1[%c0, %c0_0] : memref<16x256xf32, #tpu.memory_space<vmem>>, vector<16x256xf32>
    %c0_1 = arith.constant 0 : index
    %c0_2 = arith.constant 0 : index
    %1 = vector.load %arg2[%c0_1, %c0_2] : memref<1x256xf32, #tpu.memory_space<vmem>>, vector<1x256xf32>
    %2 = vector.broadcast %1 : vector<1x256xf32> to vector<16x256xf32>
    %3 = arith.mulf %0, %2 : vector<16x256xf32>
    %c0_3 = arith.constant 0 : index
    %c0_4 = arith.constant 0 : index
    %4 = vector.load %arg3[%c0_3, %c0_4] : memref<1x256xf32, #tpu.memory_space<vmem>>, vector<1x256xf32>
    %5 = vector.broadcast %4 : vector<1x256xf32> to vector<16x256xf32>
    %6 = arith.addf %3, %5 : vector<16x256xf32>
    %cst = arith.constant 0.000000e+00 : f32
    %7 = vector.broadcast %cst : f32 to vector<16x256xf32>
    %8 = arith.maximumf %6, %7 : vector<16x256xf32>
    %9 = arith.truncf %8 : vector<16x256xf32> to vector<16x256xbf16>
    %c0_5 = arith.constant 0 : index
    %c0_6 = arith.constant 0 : index
    %10 = vector.load %arg4[%c0_5, %c0_6] : memref<16x256xbf16, #tpu.memory_space<vmem>>, vector<16x256xbf16>
    tpu.vector_store %arg4[%c0_5, %c0_6], %9 {strides = array<i32>} : memref<16x256xbf16, #tpu.memory_space<vmem>>, vector<16x256xbf16>,
    return
  }
  func.func @transform_0(%arg0: i32) -> (i32, i32) {
    %c0_i32 = arith.constant 0 : i32
    %c0_i32_0 = arith.constant 0 : i32
    return %arg0, %c0_i32 : i32, i32
  }
  func.func @transform_1(%arg0: i32) -> (i32, i32) {
    %c0_i32 = arith.constant 0 : i32
    %c0_i32_0 = arith.constant 0 : i32
    %c0_i32_1 = arith.constant 0 : i32
    return %c0_i32, %c0_i32_0 : i32, i32
  }
  func.func @transform_2(%arg0: i32) -> (i32, i32) {
    %c0_i32 = arith.constant 0 : i32
    %c0_i32_0 = arith.constant 0 : i32
    %c0_i32_1 = arith.constant 0 : i32
    return %c0_i32, %c0_i32_0 : i32, i32
  }
  func.func @transform_3(%arg0: i32) -> (i32, i32) {
    %c0_i32 = arith.constant 0 : i32
    %c0_i32_0 = arith.constant 0 : i32
    return %arg0, %c0_i32 : i32, i32
  }
}

module attributes {stable_mosaic.version = 11 : i64} {
  func.func @_matmul_kernel(%arg0: i32, %arg1: i32, %arg2: memref<64x32xbf16, #tpu.memory_space<vmem>>, %arg3: memref<32x256xbf16, #tpu.memory_space<vmem>>, %arg4: memref<64x256xf32, #tpu.memory_space<vmem>>) attributes {dimension_semantics = [#tpu.dimension_semantics<parallel>, #tpu.dimension_semantics<parallel>], iteration_bounds = array<i64: 2, 1>, scalar_prefetch = 0 : i64, scratch_operands = 0 : i64, tpu.core_type = #tpu.core_type<tc>, window_params = [{transform_indices = @transform_0, window_bounds = array<i64: 64, 32>}, {transform_indices = @transform_1, window_bounds = array<i64: 32, 256>}, {transform_indices = @transform_2, window_bounds = array<i64: 64, 256>}]} {
    %c0 = arith.constant 0 : index
    %c0_0 = arith.constant 0 : index
    %0 = vector.load %arg2[%c0, %c0_0] : memref<64x32xbf16, #tpu.memory_space<vmem>>, vector<64x32xbf16>
    %c0_1 = arith.constant 0 : index
    %c0_2 = arith.constant 0 : index
    %1 = vector.load %arg3[%c0_1, %c0_2] : memref<32x256xbf16, #tpu.memory_space<vmem>>, vector<32x256xbf16>
    %cst = arith.constant dense<0.000000e+00> : vector<64x256xf32>
    %2 = tpu.matmul %0, %1, %cst {dimension_numbers = #tpu.dot_dimension_numbers<[1], [0], [0], [1], [0, 0, 1, 1], [], []>} : vector<64x32xbf16>, vector<32x256xbf16>, vector<64x256xf32> -> vector<64x256xf32>
    %c0_3 = arith.constant 0 : index
    %c0_4 = arith.constant 0 : index
    %3 = vector.load %arg4[%c0_3, %c0_4] : memref<64x256xf32, #tpu.memory_space<vmem>>, vector<64x256xf32>
    tpu.vector_store %arg4[%c0_3, %c0_4], %2 {strides = array<i32>} : memref<64x256xf32, #tpu.memory_space<vmem>>, vector<64x256xf32>,
    return
  }
  func.func @transform_0(%arg0: i32, %arg1: i32) -> (i32, i32) {
    %c0_i32 = arith.constant 0 : i32
    %c0_i32_0 = arith.constant 0 : i32
    return %arg0, %c0_i32 : i32, i32
  }
  func.func @transform_1(%arg0: i32, %arg1: i32) -> (i32, i32) {
    %c0_i32 = arith.constant 0 : i32
    %c0_i32_0 = arith.constant 0 : i32
    return %c0_i32, %arg1 : i32, i32
  }
  func.func @transform_2(%arg0: i32, %arg1: i32) -> (i32, i32) {
    %c0_i32 = arith.constant 0 : i32
    return %arg0, %arg1 : i32, i32
  }
}

module attributes {stable_mosaic.version = 11 : i64} {
  func.func @_bn_stats_kernel(%arg0: i32, %arg1: memref<16x256xf32, #tpu.memory_space<vmem>>, %arg2: memref<1x256xf32, #tpu.memory_space<vmem>>, %arg3: memref<1x256xf32, #tpu.memory_space<vmem>>) attributes {dimension_semantics = [#tpu.dimension_semantics<arbitrary>], iteration_bounds = array<i64: 2>, scalar_prefetch = 0 : i64, scratch_operands = 0 : i64, tpu.core_type = #tpu.core_type<tc>, window_params = [{transform_indices = @transform_0, window_bounds = array<i64: 16, 256>}, {pipeline_mode = #tpu.pipeline_mode<synchronous>, transform_indices = @transform_1, window_bounds = array<i64: 1, 256>}, {pipeline_mode = #tpu.pipeline_mode<synchronous>, transform_indices = @transform_2, window_bounds = array<i64: 1, 256>}]} {
    %c0_i32 = arith.constant 0 : i32
    %0 = arith.cmpi eq, %arg0, %c0_i32 : i32
    %1 = arith.extui %0 : i1 to i32
    %c0_i32_0 = arith.constant 0 : i32
    %2 = arith.cmpi ne, %1, %c0_i32_0 : i32
    scf.if %2 {
      %cst_11 = arith.constant 0.000000e+00 : f32
      %15 = vector.broadcast %cst_11 : f32 to vector<1x256xf32>
      %c0_12 = arith.constant 0 : index
      %c0_13 = arith.constant 0 : index
      %16 = vector.load %arg2[%c0_12, %c0_13] : memref<1x256xf32, #tpu.memory_space<vmem>>, vector<1x256xf32>
      tpu.vector_store %arg2[%c0_12, %c0_13], %15 {strides = array<i32>} : memref<1x256xf32, #tpu.memory_space<vmem>>, vector<1x256xf32>,
      %cst_14 = arith.constant 0.000000e+00 : f32
      %17 = vector.broadcast %cst_14 : f32 to vector<1x256xf32>
      %c0_15 = arith.constant 0 : index
      %c0_16 = arith.constant 0 : index
      %18 = vector.load %arg3[%c0_15, %c0_16] : memref<1x256xf32, #tpu.memory_space<vmem>>, vector<1x256xf32>
      tpu.vector_store %arg3[%c0_15, %c0_16], %17 {strides = array<i32>} : memref<1x256xf32, #tpu.memory_space<vmem>>, vector<1x256xf32>,
    } else {
    }
    %c0 = arith.constant 0 : index
    %c0_1 = arith.constant 0 : index
    %3 = vector.load %arg1[%c0, %c0_1] : memref<16x256xf32, #tpu.memory_space<vmem>>, vector<16x256xf32>
    %c0_2 = arith.constant 0 : index
    %c0_3 = arith.constant 0 : index
    %4 = vector.load %arg2[%c0_2, %c0_3] : memref<1x256xf32, #tpu.memory_space<vmem>>, vector<1x256xf32>
    %cst = arith.constant dense<0.000000e+00> : vector<256xf32>
    %5 = vector.multi_reduction <add>, %3, %cst [0] : vector<16x256xf32> to vector<256xf32>
    %6 = vector.shape_cast %5 : vector<256xf32> to vector<1x256xf32>
    %7 = arith.addf %4, %6 : vector<1x256xf32>
    %c0_4 = arith.constant 0 : index
    %c0_5 = arith.constant 0 : index
    %8 = vector.load %arg2[%c0_4, %c0_5] : memref<1x256xf32, #tpu.memory_space<vmem>>, vector<1x256xf32>
    tpu.vector_store %arg2[%c0_4, %c0_5], %7 {strides = array<i32>} : memref<1x256xf32, #tpu.memory_space<vmem>>, vector<1x256xf32>,
    %c0_6 = arith.constant 0 : index
    %c0_7 = arith.constant 0 : index
    %9 = vector.load %arg3[%c0_6, %c0_7] : memref<1x256xf32, #tpu.memory_space<vmem>>, vector<1x256xf32>
    %10 = arith.mulf %3, %3 : vector<16x256xf32>
    %cst_8 = arith.constant dense<0.000000e+00> : vector<256xf32>
    %11 = vector.multi_reduction <add>, %10, %cst_8 [0] : vector<16x256xf32> to vector<256xf32>
    %12 = vector.shape_cast %11 : vector<256xf32> to vector<1x256xf32>
    %13 = arith.addf %9, %12 : vector<1x256xf32>
    %c0_9 = arith.constant 0 : index
    %c0_10 = arith.constant 0 : index
    %14 = vector.load %arg3[%c0_9, %c0_10] : memref<1x256xf32, #tpu.memory_space<vmem>>, vector<1x256xf32>
    tpu.vector_store %arg3[%c0_9, %c0_10], %13 {strides = array<i32>} : memref<1x256xf32, #tpu.memory_space<vmem>>, vector<1x256xf32>,
    return
  }
  func.func @transform_0(%arg0: i32) -> (i32, i32) {
    %c0_i32 = arith.constant 0 : i32
    %c0_i32_0 = arith.constant 0 : i32
    return %arg0, %c0_i32 : i32, i32
  }
  func.func @transform_1(%arg0: i32) -> (i32, i32) {
    %c0_i32 = arith.constant 0 : i32
    %c0_i32_0 = arith.constant 0 : i32
    %c0_i32_1 = arith.constant 0 : i32
    return %c0_i32, %c0_i32_0 : i32, i32
  }
  func.func @transform_2(%arg0: i32) -> (i32, i32) {
    %c0_i32 = arith.constant 0 : i32
    %c0_i32_0 = arith.constant 0 : i32
    %c0_i32_1 = arith.constant 0 : i32
    return %c0_i32, %c0_i32_0 : i32, i32
  }
}

module attributes {stable_mosaic.version = 11 : i64} {
  func.func @_scale_shift_act_kernel(%arg0: i32, %arg1: memref<16x256xf32, #tpu.memory_space<vmem>>, %arg2: memref<1x256xf32, #tpu.memory_space<vmem>>, %arg3: memref<1x256xf32, #tpu.memory_space<vmem>>, %arg4: memref<16x256xbf16, #tpu.memory_space<vmem>>) attributes {dimension_semantics = [#tpu.dimension_semantics<parallel>], iteration_bounds = array<i64: 2>, scalar_prefetch = 0 : i64, scratch_operands = 0 : i64, tpu.core_type = #tpu.core_type<tc>, window_params = [{transform_indices = @transform_0, window_bounds = array<i64: 16, 256>}, {pipeline_mode = #tpu.pipeline_mode<synchronous>, transform_indices = @transform_1, window_bounds = array<i64: 1, 256>}, {pipeline_mode = #tpu.pipeline_mode<synchronous>, transform_indices = @transform_2, window_bounds = array<i64: 1, 256>}, {transform_indices = @transform_3, window_bounds = array<i64: 16, 256>}]} {
    %c0 = arith.constant 0 : index
    %c0_0 = arith.constant 0 : index
    %0 = vector.load %arg1[%c0, %c0_0] : memref<16x256xf32, #tpu.memory_space<vmem>>, vector<16x256xf32>
    %c0_1 = arith.constant 0 : index
    %c0_2 = arith.constant 0 : index
    %1 = vector.load %arg2[%c0_1, %c0_2] : memref<1x256xf32, #tpu.memory_space<vmem>>, vector<1x256xf32>
    %2 = vector.broadcast %1 : vector<1x256xf32> to vector<16x256xf32>
    %3 = arith.mulf %0, %2 : vector<16x256xf32>
    %c0_3 = arith.constant 0 : index
    %c0_4 = arith.constant 0 : index
    %4 = vector.load %arg3[%c0_3, %c0_4] : memref<1x256xf32, #tpu.memory_space<vmem>>, vector<1x256xf32>
    %5 = vector.broadcast %4 : vector<1x256xf32> to vector<16x256xf32>
    %6 = arith.addf %3, %5 : vector<16x256xf32>
    %cst = arith.constant 0.000000e+00 : f32
    %7 = vector.broadcast %cst : f32 to vector<16x256xf32>
    %8 = arith.maximumf %6, %7 : vector<16x256xf32>
    %9 = arith.truncf %8 : vector<16x256xf32> to vector<16x256xbf16>
    %c0_5 = arith.constant 0 : index
    %c0_6 = arith.constant 0 : index
    %10 = vector.load %arg4[%c0_5, %c0_6] : memref<16x256xbf16, #tpu.memory_space<vmem>>, vector<16x256xbf16>
    tpu.vector_store %arg4[%c0_5, %c0_6], %9 {strides = array<i32>} : memref<16x256xbf16, #tpu.memory_space<vmem>>, vector<16x256xbf16>,
    return
  }
  func.func @transform_0(%arg0: i32) -> (i32, i32) {
    %c0_i32 = arith.constant 0 : i32
    %c0_i32_0 = arith.constant 0 : i32
    return %arg0, %c0_i32 : i32, i32
  }
  func.func @transform_1(%arg0: i32) -> (i32, i32) {
    %c0_i32 = arith.constant 0 : i32
    %c0_i32_0 = arith.constant 0 : i32
    %c0_i32_1 = arith.constant 0 : i32
    return %c0_i32, %c0_i32_0 : i32, i32
  }
  func.func @transform_2(%arg0: i32) -> (i32, i32) {
    %c0_i32 = arith.constant 0 : i32
    %c0_i32_0 = arith.constant 0 : i32
    %c0_i32_1 = arith.constant 0 : i32
    return %c0_i32, %c0_i32_0 : i32, i32
  }
  func.func @transform_3(%arg0: i32) -> (i32, i32) {
    %c0_i32 = arith.constant 0 : i32
    %c0_i32_0 = arith.constant 0 : i32
    return %arg0, %c0_i32 : i32, i32
  }
}

module attributes {stable_mosaic.version = 11 : i64} {
  func.func @_matmul_kernel(%arg0: i32, %arg1: i32, %arg2: memref<256x16xbf16, #tpu.memory_space<vmem>>, %arg3: memref<16x128xbf16, #tpu.memory_space<vmem>>, %arg4: memref<256x128xf32, #tpu.memory_space<vmem>>) attributes {dimension_semantics = [#tpu.dimension_semantics<parallel>, #tpu.dimension_semantics<parallel>], iteration_bounds = array<i64: 2, 1>, scalar_prefetch = 0 : i64, scratch_operands = 0 : i64, tpu.core_type = #tpu.core_type<tc>, window_params = [{transform_indices = @transform_0, window_bounds = array<i64: 256, 16>}, {transform_indices = @transform_1, window_bounds = array<i64: 16, 128>}, {transform_indices = @transform_2, window_bounds = array<i64: 256, 128>}]} {
    %c0 = arith.constant 0 : index
    %c0_0 = arith.constant 0 : index
    %0 = vector.load %arg2[%c0, %c0_0] : memref<256x16xbf16, #tpu.memory_space<vmem>>, vector<256x16xbf16>
    %c0_1 = arith.constant 0 : index
    %c0_2 = arith.constant 0 : index
    %1 = vector.load %arg3[%c0_1, %c0_2] : memref<16x128xbf16, #tpu.memory_space<vmem>>, vector<16x128xbf16>
    %cst = arith.constant dense<0.000000e+00> : vector<256x128xf32>
    %2 = tpu.matmul %0, %1, %cst {dimension_numbers = #tpu.dot_dimension_numbers<[1], [0], [0], [1], [0, 0, 1, 1], [], []>} : vector<256x16xbf16>, vector<16x128xbf16>, vector<256x128xf32> -> vector<256x128xf32>
    %c0_3 = arith.constant 0 : index
    %c0_4 = arith.constant 0 : index
    %3 = vector.load %arg4[%c0_3, %c0_4] : memref<256x128xf32, #tpu.memory_space<vmem>>, vector<256x128xf32>
    tpu.vector_store %arg4[%c0_3, %c0_4], %2 {strides = array<i32>} : memref<256x128xf32, #tpu.memory_space<vmem>>, vector<256x128xf32>,
    return
  }
  func.func @transform_0(%arg0: i32, %arg1: i32) -> (i32, i32) {
    %c0_i32 = arith.constant 0 : i32
    %c0_i32_0 = arith.constant 0 : i32
    return %arg0, %c0_i32 : i32, i32
  }
  func.func @transform_1(%arg0: i32, %arg1: i32) -> (i32, i32) {
    %c0_i32 = arith.constant 0 : i32
    %c0_i32_0 = arith.constant 0 : i32
    return %c0_i32, %arg1 : i32, i32
  }
  func.func @transform_2(%arg0: i32, %arg1: i32) -> (i32, i32) {
    %c0_i32 = arith.constant 0 : i32
    return %arg0, %arg1 : i32, i32
  }
}

module attributes {stable_mosaic.version = 11 : i64} {
  func.func @_bn_stats_kernel(%arg0: i32, %arg1: memref<32x256xf32, #tpu.memory_space<vmem>>, %arg2: memref<1x256xf32, #tpu.memory_space<vmem>>, %arg3: memref<1x256xf32, #tpu.memory_space<vmem>>) attributes {dimension_semantics = [#tpu.dimension_semantics<arbitrary>], iteration_bounds = array<i64: 2>, scalar_prefetch = 0 : i64, scratch_operands = 0 : i64, tpu.core_type = #tpu.core_type<tc>, window_params = [{transform_indices = @transform_0, window_bounds = array<i64: 32, 256>}, {pipeline_mode = #tpu.pipeline_mode<synchronous>, transform_indices = @transform_1, window_bounds = array<i64: 1, 256>}, {pipeline_mode = #tpu.pipeline_mode<synchronous>, transform_indices = @transform_2, window_bounds = array<i64: 1, 256>}]} {
    %c0_i32 = arith.constant 0 : i32
    %0 = arith.cmpi eq, %arg0, %c0_i32 : i32
    %1 = arith.extui %0 : i1 to i32
    %c0_i32_0 = arith.constant 0 : i32
    %2 = arith.cmpi ne, %1, %c0_i32_0 : i32
    scf.if %2 {
      %cst_11 = arith.constant 0.000000e+00 : f32
      %15 = vector.broadcast %cst_11 : f32 to vector<1x256xf32>
      %c0_12 = arith.constant 0 : index
      %c0_13 = arith.constant 0 : index
      %16 = vector.load %arg2[%c0_12, %c0_13] : memref<1x256xf32, #tpu.memory_space<vmem>>, vector<1x256xf32>
      tpu.vector_store %arg2[%c0_12, %c0_13], %15 {strides = array<i32>} : memref<1x256xf32, #tpu.memory_space<vmem>>, vector<1x256xf32>,
      %cst_14 = arith.constant 0.000000e+00 : f32
      %17 = vector.broadcast %cst_14 : f32 to vector<1x256xf32>
      %c0_15 = arith.constant 0 : index
      %c0_16 = arith.constant 0 : index
      %18 = vector.load %arg3[%c0_15, %c0_16] : memref<1x256xf32, #tpu.memory_space<vmem>>, vector<1x256xf32>
      tpu.vector_store %arg3[%c0_15, %c0_16], %17 {strides = array<i32>} : memref<1x256xf32, #tpu.memory_space<vmem>>, vector<1x256xf32>,
    } else {
    }
    %c0 = arith.constant 0 : index
    %c0_1 = arith.constant 0 : index
    %3 = vector.load %arg1[%c0, %c0_1] : memref<32x256xf32, #tpu.memory_space<vmem>>, vector<32x256xf32>
    %c0_2 = arith.constant 0 : index
    %c0_3 = arith.constant 0 : index
    %4 = vector.load %arg2[%c0_2, %c0_3] : memref<1x256xf32, #tpu.memory_space<vmem>>, vector<1x256xf32>
    %cst = arith.constant dense<0.000000e+00> : vector<256xf32>
    %5 = vector.multi_reduction <add>, %3, %cst [0] : vector<32x256xf32> to vector<256xf32>
    %6 = vector.shape_cast %5 : vector<256xf32> to vector<1x256xf32>
    %7 = arith.addf %4, %6 : vector<1x256xf32>
    %c0_4 = arith.constant 0 : index
    %c0_5 = arith.constant 0 : index
    %8 = vector.load %arg2[%c0_4, %c0_5] : memref<1x256xf32, #tpu.memory_space<vmem>>, vector<1x256xf32>
    tpu.vector_store %arg2[%c0_4, %c0_5], %7 {strides = array<i32>} : memref<1x256xf32, #tpu.memory_space<vmem>>, vector<1x256xf32>,
    %c0_6 = arith.constant 0 : index
    %c0_7 = arith.constant 0 : index
    %9 = vector.load %arg3[%c0_6, %c0_7] : memref<1x256xf32, #tpu.memory_space<vmem>>, vector<1x256xf32>
    %10 = arith.mulf %3, %3 : vector<32x256xf32>
    %cst_8 = arith.constant dense<0.000000e+00> : vector<256xf32>
    %11 = vector.multi_reduction <add>, %10, %cst_8 [0] : vector<32x256xf32> to vector<256xf32>
    %12 = vector.shape_cast %11 : vector<256xf32> to vector<1x256xf32>
    %13 = arith.addf %9, %12 : vector<1x256xf32>
    %c0_9 = arith.constant 0 : index
    %c0_10 = arith.constant 0 : index
    %14 = vector.load %arg3[%c0_9, %c0_10] : memref<1x256xf32, #tpu.memory_space<vmem>>, vector<1x256xf32>
    tpu.vector_store %arg3[%c0_9, %c0_10], %13 {strides = array<i32>} : memref<1x256xf32, #tpu.memory_space<vmem>>, vector<1x256xf32>,
    return
  }
  func.func @transform_0(%arg0: i32) -> (i32, i32) {
    %c0_i32 = arith.constant 0 : i32
    %c0_i32_0 = arith.constant 0 : i32
    return %arg0, %c0_i32 : i32, i32
  }
  func.func @transform_1(%arg0: i32) -> (i32, i32) {
    %c0_i32 = arith.constant 0 : i32
    %c0_i32_0 = arith.constant 0 : i32
    %c0_i32_1 = arith.constant 0 : i32
    return %c0_i32, %c0_i32_0 : i32, i32
  }
  func.func @transform_2(%arg0: i32) -> (i32, i32) {
    %c0_i32 = arith.constant 0 : i32
    %c0_i32_0 = arith.constant 0 : i32
    %c0_i32_1 = arith.constant 0 : i32
    return %c0_i32, %c0_i32_0 : i32, i32
  }
}

module attributes {stable_mosaic.version = 11 : i64} {
  func.func @_scale_shift_act_kernel(%arg0: i32, %arg1: memref<32x256xf32, #tpu.memory_space<vmem>>, %arg2: memref<1x256xf32, #tpu.memory_space<vmem>>, %arg3: memref<1x256xf32, #tpu.memory_space<vmem>>, %arg4: memref<32x256xbf16, #tpu.memory_space<vmem>>) attributes {dimension_semantics = [#tpu.dimension_semantics<parallel>], iteration_bounds = array<i64: 2>, scalar_prefetch = 0 : i64, scratch_operands = 0 : i64, tpu.core_type = #tpu.core_type<tc>, window_params = [{transform_indices = @transform_0, window_bounds = array<i64: 32, 256>}, {pipeline_mode = #tpu.pipeline_mode<synchronous>, transform_indices = @transform_1, window_bounds = array<i64: 1, 256>}, {pipeline_mode = #tpu.pipeline_mode<synchronous>, transform_indices = @transform_2, window_bounds = array<i64: 1, 256>}, {transform_indices = @transform_3, window_bounds = array<i64: 32, 256>}]} {
    %c0 = arith.constant 0 : index
    %c0_0 = arith.constant 0 : index
    %0 = vector.load %arg1[%c0, %c0_0] : memref<32x256xf32, #tpu.memory_space<vmem>>, vector<32x256xf32>
    %c0_1 = arith.constant 0 : index
    %c0_2 = arith.constant 0 : index
    %1 = vector.load %arg2[%c0_1, %c0_2] : memref<1x256xf32, #tpu.memory_space<vmem>>, vector<1x256xf32>
    %2 = vector.broadcast %1 : vector<1x256xf32> to vector<32x256xf32>
    %3 = arith.mulf %0, %2 : vector<32x256xf32>
    %c0_3 = arith.constant 0 : index
    %c0_4 = arith.constant 0 : index
    %4 = vector.load %arg3[%c0_3, %c0_4] : memref<1x256xf32, #tpu.memory_space<vmem>>, vector<1x256xf32>
    %5 = vector.broadcast %4 : vector<1x256xf32> to vector<32x256xf32>
    %6 = arith.addf %3, %5 : vector<32x256xf32>
    %cst = arith.constant 0.000000e+00 : f32
    %7 = vector.broadcast %cst : f32 to vector<32x256xf32>
    %8 = arith.maximumf %6, %7 : vector<32x256xf32>
    %9 = arith.truncf %8 : vector<32x256xf32> to vector<32x256xbf16>
    %c0_5 = arith.constant 0 : index
    %c0_6 = arith.constant 0 : index
    %10 = vector.load %arg4[%c0_5, %c0_6] : memref<32x256xbf16, #tpu.memory_space<vmem>>, vector<32x256xbf16>
    tpu.vector_store %arg4[%c0_5, %c0_6], %9 {strides = array<i32>} : memref<32x256xbf16, #tpu.memory_space<vmem>>, vector<32x256xbf16>,
    return
  }
  func.func @transform_0(%arg0: i32) -> (i32, i32) {
    %c0_i32 = arith.constant 0 : i32
    %c0_i32_0 = arith.constant 0 : i32
    return %arg0, %c0_i32 : i32, i32
  }
  func.func @transform_1(%arg0: i32) -> (i32, i32) {
    %c0_i32 = arith.constant 0 : i32
    %c0_i32_0 = arith.constant 0 : i32
    %c0_i32_1 = arith.constant 0 : i32
    return %c0_i32, %c0_i32_0 : i32, i32
  }
  func.func @transform_2(%arg0: i32) -> (i32, i32) {
    %c0_i32 = arith.constant 0 : i32
    %c0_i32_0 = arith.constant 0 : i32
    %c0_i32_1 = arith.constant 0 : i32
    return %c0_i32, %c0_i32_0 : i32, i32
  }
  func.func @transform_3(%arg0: i32) -> (i32, i32) {
    %c0_i32 = arith.constant 0 : i32
    %c0_i32_0 = arith.constant 0 : i32
    return %arg0, %c0_i32 : i32, i32
  }
}

module attributes {stable_mosaic.version = 11 : i64} {
  func.func @_matmul_kernel(%arg0: i32, %arg1: i32, %arg2: memref<512x8xbf16, #tpu.memory_space<vmem>>, %arg3: memref<8x128xbf16, #tpu.memory_space<vmem>>, %arg4: memref<512x128xf32, #tpu.memory_space<vmem>>) attributes {dimension_semantics = [#tpu.dimension_semantics<parallel>, #tpu.dimension_semantics<parallel>], iteration_bounds = array<i64: 4, 1>, scalar_prefetch = 0 : i64, scratch_operands = 0 : i64, tpu.core_type = #tpu.core_type<tc>, window_params = [{transform_indices = @transform_0, window_bounds = array<i64: 512, 8>}, {transform_indices = @transform_1, window_bounds = array<i64: 8, 128>}, {transform_indices = @transform_2, window_bounds = array<i64: 512, 128>}]} {
    %c0 = arith.constant 0 : index
    %c0_0 = arith.constant 0 : index
    %0 = vector.load %arg2[%c0, %c0_0] : memref<512x8xbf16, #tpu.memory_space<vmem>>, vector<512x8xbf16>
    %c0_1 = arith.constant 0 : index
    %c0_2 = arith.constant 0 : index
    %1 = vector.load %arg3[%c0_1, %c0_2] : memref<8x128xbf16, #tpu.memory_space<vmem>>, vector<8x128xbf16>
    %cst = arith.constant dense<0.000000e+00> : vector<512x128xf32>
    %2 = tpu.matmul %0, %1, %cst {dimension_numbers = #tpu.dot_dimension_numbers<[1], [0], [0], [1], [0, 0, 1, 1], [], []>} : vector<512x8xbf16>, vector<8x128xbf16>, vector<512x128xf32> -> vector<512x128xf32>
    %c0_3 = arith.constant 0 : index
    %c0_4 = arith.constant 0 : index
    %3 = vector.load %arg4[%c0_3, %c0_4] : memref<512x128xf32, #tpu.memory_space<vmem>>, vector<512x128xf32>
    tpu.vector_store %arg4[%c0_3, %c0_4], %2 {strides = array<i32>} : memref<512x128xf32, #tpu.memory_space<vmem>>, vector<512x128xf32>,
    return
  }
  func.func @transform_0(%arg0: i32, %arg1: i32) -> (i32, i32) {
    %c0_i32 = arith.constant 0 : i32
    %c0_i32_0 = arith.constant 0 : i32
    return %arg0, %c0_i32 : i32, i32
  }
  func.func @transform_1(%arg0: i32, %arg1: i32) -> (i32, i32) {
    %c0_i32 = arith.constant 0 : i32
    %c0_i32_0 = arith.constant 0 : i32
    return %c0_i32, %arg1 : i32, i32
  }
  func.func @transform_2(%arg0: i32, %arg1: i32) -> (i32, i32) {
    %c0_i32 = arith.constant 0 : i32
    return %arg0, %arg1 : i32, i32
  }
}

module attributes {stable_mosaic.version = 11 : i64} {
  func.func @_act_only_kernel(%arg0: i32, %arg1: memref<96x288xf32, #tpu.memory_space<vmem>>, %arg2: memref<96x288xf32, #tpu.memory_space<vmem>>) attributes {dimension_semantics = [#tpu.dimension_semantics<parallel>], iteration_bounds = array<i64: 2>, scalar_prefetch = 0 : i64, scratch_operands = 0 : i64, tpu.core_type = #tpu.core_type<tc>, window_params = [{transform_indices = @transform_0, window_bounds = array<i64: 96, 288>}, {transform_indices = @transform_1, window_bounds = array<i64: 96, 288>}]} {
    %c0 = arith.constant 0 : index
    %c0_0 = arith.constant 0 : index
    %0 = vector.load %arg1[%c0, %c0_0] : memref<96x288xf32, #tpu.memory_space<vmem>>, vector<96x288xf32>
    %1 = math.tanh %0 : vector<96x288xf32>
    %c0_1 = arith.constant 0 : index
    %c0_2 = arith.constant 0 : index
    %2 = vector.load %arg2[%c0_1, %c0_2] : memref<96x288xf32, #tpu.memory_space<vmem>>, vector<96x288xf32>
    tpu.vector_store %arg2[%c0_1, %c0_2], %1 {strides = array<i32>} : memref<96x288xf32, #tpu.memory_space<vmem>>, vector<96x288xf32>,
    return
  }
  func.func @transform_0(%arg0: i32) -> (i32, i32) {
    %c0_i32 = arith.constant 0 : i32
    %c0_i32_0 = arith.constant 0 : i32
    return %arg0, %c0_i32 : i32, i32
  }
  func.func @transform_1(%arg0: i32) -> (i32, i32) {
    %c0_i32 = arith.constant 0 : i32
    %c0_i32_0 = arith.constant 0 : i32
    return %arg0, %c0_i32 : i32, i32
  }
}

</mosaic_0001>

<llo_original>
// kernel: _lambda_.14
$region0: #{_lambda_.14}
  #allocation0 [shape = 'u32[]', space=smem, size = 0x4, offset = 0x4, fixed_abs, tag = 'smem constant byte address 0x4 - core index']
  #allocation1 [shape = 'u32[144,128]{1,0:T(1,128)}', space=vmem, size = 0x12000, scoped, tag = 'internal scratch']
  %s0 = inlined_call_operand.vmem [shape: bf16[8,8], index: 0, kind: input, shape index: {}]
  %s1 = inlined_call_operand.hbm [shape: bf16[8,1024], index: 1, kind: input, shape index: {}]
  %s2 = inlined_call_operand.vmem [shape: f32[8,1024], index: 2, kind: output, shape index: {}]
  %s3 = sld [smem:[#allocation0]]
  $region45: #{_lambda_.14} parent=0
    _
  %s5 = ssub.s32 1, %s3
  %s6 = scalar_select 0, %s5, %s3
  $region1: #{_lambda_.14} parent=0
    #allocation2 [shape = 'u8[16384]{0}', space=vmem, size = 0x4000, scoped, tag = 'input window, operand 1']
    #allocation3 [shape = 's32[2]{0}', space=sflag, size = 0x8, scoped, tag = 'scoped memory for _lambda_.14']
    %7 = vsyncpa [#allocation3], 0
    %s8 = scalar_lea.sflag [#allocation3], 1
    %9 = vsyncpa %s8, 0
    loop: start=0, step=1, limit=4
    $region2: #{_lambda_.14} parent=1 // loop_pre_header
      _
    $region3: #{_lambda_.14} parent=1 // loop_header
      %s11 = sphi 0, %s15
      %p12 = scmp.ge.s32.totalorder %s11, 4
      %s18 = sphi 0, %s30
      %s19 = sphi 0, %s26
      %s20 = sphi 0, %s18
      %s21 = sphi 0, %s19
      %s22 = sphi 0, %s20
      %s23 = sphi 0, %s21
      %s33 = sphi 0, %s35
      %s36 = sphi 0, %s33
      %s37 = sphi 0, %s36
      %s53 = sphi 0, %s37
      %s59 = sphi 0, %s61
      %s62 = sphi 0, %s59
      %s63 = sphi 0, %s62
      %s79 = sphi 0, %s63
      %s87 = sphi 0, %s89
      %s90 = sphi 0, %s87
      %s91 = sphi 0, %s90
      %s107 = sphi 0, %s91
    $region4: #{_lambda_.14} parent=1 // loop_header_branch
      %14 = sbr.rel (%p12) target = $region8
    $region5: #{_lambda_.14} parent=1 // loop_body
      %s16 = ssub.s32 %s11, 1
      %s17 = ssub.s32 %s11, 2
      %s24 = sadd.s32 1, %s19
      %p25 = scmp.ge.s32.totalorder %s24, 2
      %s26 = scalar_select %p25, 0, %s24
      %s27 = sadd.s32 1, %s18
      %s28 = scalar_select %p25, %s27, %s18
      %p29 = scmp.ge.s32.totalorder %s28, 1
      %s30 = scalar_select %p29, 0, %s28
      %s31 = ssub.s32 %s18, %s30
      %p32 = scmp.eq.s32.totalorder %s31, 0
      %s34 = sadd.s32 %s33, 1
      %s35 = scalar_select %p32, %s33, %s34
      %p38 = pneg %p32
      %p39 = scmp.eq.s32.totalorder %s11, 1
      %p40 = por %p38, %p39
      %p41 = scmp.ne.s32.totalorder %s33, %s36
      %p42 = scmp.eq.s32.totalorder %s11, 0
      %p43 = por %p41, %p42
      %p44 = scmp.ne.s32.totalorder %s33, %s36
      %p45 = scmp.eq.s32.totalorder %s16, 1
      %p46 = por %p44, %p45
      %p47 = scmp.ne.s32.totalorder %s36, %s37
      %p48 = scmp.eq.s32.totalorder %s16, 0
      %p49 = por %p47, %p48
      %p50 = scmp.ne.s32.totalorder %s36, %s37
      %p51 = scmp.eq.s32.totalorder %s17, 1
      %p52 = por %p50, %p51
      %p54 = scmp.ne.s32.totalorder %s37, %s53
      %p55 = scmp.eq.s32.totalorder %s17, 0
      %p56 = por %p54, %p55
      %s57 = ssub.s32 %s19, %s26
      %p58 = scmp.eq.s32.totalorder %s57, 0
      %s60 = sadd.s32 %s59, 1
      %s61 = scalar_select %p58, %s59, %s60
      %p64 = pneg %p58
      %p65 = scmp.eq.s32.totalorder %s11, 1
      %p66 = por %p64, %p65
      %p67 = scmp.ne.s32.totalorder %s59, %s62
      %p68 = scmp.eq.s32.totalorder %s11, 0
      %p69 = por %p67, %p68
      %p70 = scmp.ne.s32.totalorder %s59, %s62
      %p71 = scmp.eq.s32.totalorder %s16, 1
      %p72 = por %p70, %p71
      %p73 = scmp.ne.s32.totalorder %s62, %s63
      %p74 = scmp.eq.s32.totalorder %s16, 0
      %p75 = por %p73, %p74
      %p76 = scmp.ne.s32.totalorder %s62, %s63
      %p77 = scmp.eq.s32.totalorder %s17, 1
      %p78 = por %p76, %p77
      %p80 = scmp.ne.s32.totalorder %s63, %s79
      %p81 = scmp.eq.s32.totalorder %s17, 0
      %p82 = por %p80, %p81
      %s83 = ssub.s32 %s18, %s30
      %s84 = ssub.s32 %s19, %s26
      %s85 = sor.u32 %s83, %s84
      %p86 = scmp.eq.s32.totalorder %s85, 0
      %s88 = sadd.s32 %s87, 1
      %s89 = scalar_select %p86, %s87, %s88
      %p92 = pneg %p86
      %p93 = scmp.eq.s32.totalorder %s11, 1
      %p94 = por %p92, %p93
      %p95 = scmp.ne.s32.totalorder %s87, %s90
      %p96 = scmp.eq.s32.totalorder %s11, 0
      %p97 = por %p95, %p96
      %p98 = scmp.ne.s32.totalorder %s87, %s90
      %p99 = scmp.eq.s32.totalorder %s16, 1
      %p100 = por %p98, %p99
      %p101 = scmp.ne.s32.totalorder %s90, %s91
      %p102 = scmp.eq.s32.totalorder %s16, 0
      %p103 = por %p101, %p102
      %p104 = scmp.ne.s32.totalorder %s90, %s91
      %p105 = scmp.eq.s32.totalorder %s17, 1
      %p106 = por %p104, %p105
      %p108 = scmp.ne.s32.totalorder %s91, %s107
      %p109 = scmp.eq.s32.totalorder %s17, 0
      %p110 = por %p108, %p109
      %p111 = scmp.le.s32.totalorder 1, %s11
      %p112 = scmp.lt.s32.totalorder %s11, 3
      %p113 = pnand %p111, %p112
      %p114 = pneg %p113
      // Predicated region
      $region9: #{_lambda_.14} parent=5 // pred_check
        _
      $region10: #{_lambda_.14} parent=5 // pred_check_branch
        %116 = sbr.rel (%p113) target = $region12
      $region11: #{_lambda_.14} parent=5 // pred_region
        %s117 = ssub.s32 %s11, 1
        // Predicated region
        $region13: #{_lambda_.14} parent=11 // pred_check
          %p118 = pneg %p49
        $region14: #{_lambda_.14} parent=11 // pred_check_branch
          %120 = sbr.rel (%p118) target = $region16
        $region15: #{_lambda_.14} parent=11 // pred_region
          %p121 = scmp.lt.s32.totalorder %s20, 0
          %s122 = scalar_select %p121, %s20, 0
          %s123 = smul.addr %s122, 4
          %s124 = scalar_lea.vmem %s0, %s123
        $region16: #{_lambda_.14} parent=11 // pred_fallthru
          _
      $region12: #{_lambda_.14} parent=5 // pred_fallthru
        _
      %p125 = scmp.lt.s32.totalorder %s11, 2
      // Predicated region
      $region17: #{_lambda_.14} parent=5 // pred_check
        %p126 = pneg %p125
      $region18: #{_lambda_.14} parent=5 // pred_check_branch
        %128 = sbr.rel (%p126) target = $region20
      $region19: #{_lambda_.14} parent=5 // pred_region
        // Predicated region
        $region21: #{_lambda_.14} parent=19 // pred_check
          %p129 = pneg %p69
        $region22: #{_lambda_.14} parent=19 // pred_check_branch
          %131 = sbr.rel (%p129) target = $region24
        $region23: #{_lambda_.14} parent=19 // pred_region
          %s132 = sand.u32 %s59, 1
          %s133 = scalar_lea.sflag [#allocation3], %s132
          %s134 = sand.u32 %s59, 1
          %s135 = smul.addr %s134, 16
          %s136 = scalar_lea.vmem [#allocation2], %s135
          %s137 = smul.u32 4, %s19
          %s139 = ssub.s32 256, 256
          %140 = vsyncadd %s133, %s139
          %s141 = smul.addr %s137, 64
          %s142 = scalar_lea.hbm %s1, %s141
          %s144 = sshll.u32 %s136, 4
          %s145 = int_to_ptr.vmem [resolvable:$true] %s144
          %147 = dma.hbm_to_vmem [thread:$0]  %s142, 256, %s145, %s133
        $region24: #{_lambda_.14} parent=19 // pred_fallthru
          _
      $region20: #{_lambda_.14} parent=5 // pred_fallthru
        _
      %p148 = scmp.le.s32.totalorder 1, %s11
      %p149 = scmp.lt.s32.totalorder %s11, 3
      %p150 = pnand %p148, %p149
      %p151 = pneg %p150
      // Predicated region
      $region25: #{_lambda_.14} parent=5 // pred_check
        _
      $region26: #{_lambda_.14} parent=5 // pred_check_branch
        %153 = sbr.rel (%p150) target = $region28
      $region27: #{_lambda_.14} parent=5 // pred_region
        %s154 = ssub.s32 %s11, 1
        %s155 = sand.u32 %s62, 1
        %s156 = scalar_lea.sflag [#allocation3], %s155
        %s157 = sand.u32 %s62, 1
        %s158 = smul.addr %s157, 16
        %s159 = scalar_lea.vmem [#allocation2], %s158
        // Predicated region
        $region29: #{_lambda_.14} parent=27 // pred_check
          %p160 = pneg %p75
        $region30: #{_lambda_.14} parent=27 // pred_check_branch
          %162 = sbr.rel (%p160) target = $region32
        $region31: #{_lambda_.14} parent=27 // pred_region
          %163 = dma.done %s156, 256
        $region32: #{_lambda_.14} parent=27 // pred_fallthru
          _
        %p164 = scmp.lt.s32.totalorder %s20, 0
        %s165 = scalar_select %p164, %s20, 0
        %s166 = smul.addr %s165, 4
        %s167 = scalar_lea.vmem %s0, %s166
        %p168 = pneg %p49
        %p169 = pneg %p46
        %s170 = sand.u32 %s62, 1
        %s171 = scalar_lea.sflag [#allocation3], %s170
        %s172 = sand.u32 %s62, 1
        %s173 = smul.addr %s172, 16
        %s174 = scalar_lea.vmem [#allocation2], %s173
        %p175 = pneg %p75
        %p176 = pneg %p72
        %p177 = pneg %p103
        %p178 = pneg %p100
        %s179 = smul.u32 4, %s21
        %p180 = scmp.lt.s32.totalorder %s20, 0
        %s181 = scalar_select %p180, %s20, 0
        %p182 = scmp.lt.s32.totalorder %s179, 7
        %s183 = scalar_select %p182, %s179, 7
        %s184 = smul.addr %s181, 8
        %s185 = sadd.s32 %s183, %s184
        %s186 = smul.addr %s185, 8
        %s187 = scalar_lea.vmem %s2, %s186
        %p188 = scmp.lt.s32.totalorder %s20, 0
        %s189 = scalar_select %p188, %s20, 0
        %s190 = smul.addr %s189, 4
        %s191 = scalar_lea.vmem %s0, %s190
        %s192 = smul.u32 4, %s21
        %s193 = smul.u32 4, %s21
        %p194 = scmp.lt.s32.totalorder %s20, 0
        %s195 = scalar_select %p194, %s20, 0
        %p196 = scmp.lt.s32.totalorder %s193, 7
        %s197 = scalar_select %p196, %s193, 7
        %s198 = smul.addr %s195, 8
        %s199 = sadd.s32 %s197, %s198
        %s200 = smul.addr %s199, 8
        %s201 = scalar_lea.vmem %s2, %s200
        %s202 = smul.u32 4, %s21
        %v204 = vld [vmem:[%s191] sm:$0xf]
        %v205 = vld [vmem:[%s159] sm:$0xff]
        %v206 = vld [vmem:[%s159 + $0x8] sm:$0xff]
        %v209 = vunpack.c.l.b16 %v205
        %v210 = vunpack.c.h.b16 %v205
        %v211 = vunpack.c.l.b16 %v206
        %v212 = vunpack.c.h.b16 %v206
        %v213 = vpack.c.b16 %v209, %v209
        %v214 = vpack.c.b16 %v210, %v210
        %v215 = vpack.c.b16 %v211, %v211
        %v216 = vpack.c.b16 %v212, %v212
        %vm217 = vcmask 64512
        %v219 = vsel %vm217, %v204, 0
        %vm221 = vcmask 1043456
        %v223 = vsel %vm221, %v213, 0
        %v226 = vsel %vm221, %v214, 0
        %v229 = vsel %vm221, %v215, 0
        %v232 = vsel %vm221, %v216, 0
        %234 = vmatprep.subr.bf16.mxu0 0
        %235 = vmatpush1.bf16.msra.mxu0 0
        %236 = vmatprep.subr.bf16.mxu0 0
        %237 = vmatpush1.bf16.msra.mxu0 0
        %238 = vmatprep.subr.bf16.mxu0 0
        %239 = vmatpush1.bf16.msra.mxu0 0
        %240 = vmatprep.subr.bf16.mxu0 0
        %241 = vmatpush1.bf16.msra.mxu0 0
        %242 = vmatprep.subr.bf16.mxu0 0
        %243 = vmatpush1.bf16.msra.mxu0 0
        %244 = vmatprep.subr.bf16.mxu0 0
        %245 = vmatpush1.bf16.msra.mxu0 0
        %246 = vmatprep.subr.bf16.mxu0 0
        %247 = vmatpush1.bf16.msra.mxu0 0
        %248 = vmatprep.subr.bf16.mxu0 %v226
        %249 = vmatpush1.bf16.msra.mxu0 %v223
        %250 = vmatprep.subr.bf16.mxu0 0
        %251 = vmatpush2.bf16.msra.mxu0 0
        %252 = vmatprep.subr.bf16.mxu0 0
        %253 = vmatpush2.bf16.msra.mxu0 0
        %254 = vmatprep.subr.bf16.mxu0 0
        %255 = vmatpush2.bf16.msra.mxu0 0
        %256 = vmatprep.subr.bf16.mxu0 0
        %257 = vmatpush2.bf16.msra.mxu0 0
        %258 = vmatprep.subr.bf16.mxu0 0
        %259 = vmatpush2.bf16.msra.mxu0 0
        %260 = vmatprep.subr.bf16.mxu0 0
        %261 = vmatpush2.bf16.msra.mxu0 0
        %262 = vmatprep.subr.bf16.mxu0 0
        %263 = vmatpush2.bf16.msra.mxu0 0
        %264 = vmatprep.subr.bf16.mxu0 0
        %265 = vmatpush2.bf16.msra.mxu0 0
        %266 = vmatprep.mubr.bf16.mxu0 0
        %267 = vmatmul.mubr.bf16.gmra.mxu0 %v219
        %v268 = vpop.f32.mrf.mxu0
        %v269 = vadd.f32 0.0, %v268
        %v270 = vpop.f32.mrf.mxu0
        %v271 = vadd.f32 0.0, %v270
        %v272 = vpop.f32.mrf.mxu0
        %v273 = vpop.f32.mrf.mxu0
        %274 = vdwg.mxu0
        %275 = vmatprep.subr.bf16.mxu0 0
        %276 = vmatpush1.bf16.msra.mxu0 0
        %277 = vmatprep.subr.bf16.mxu0 0
        %278 = vmatpush1.bf16.msra.mxu0 0
        %279 = vmatprep.subr.bf16.mxu0 0
        %280 = vmatpush1.bf16.msra.mxu0 0
        %281 = vmatprep.subr.bf16.mxu0 0
        %282 = vmatpush1.bf16.msra.mxu0 0
        %283 = vmatprep.subr.bf16.mxu0 0
        %284 = vmatpush1.bf16.msra.mxu0 0
        %285 = vmatprep.subr.bf16.mxu0 0
        %286 = vmatpush1.bf16.msra.mxu0 0
        %287 = vmatprep.subr.bf16.mxu0 0
        %288 = vmatpush1.bf16.msra.mxu0 0
        %289 = vmatprep.subr.bf16.mxu0 %v232
        %290 = vmatpush1.bf16.msra.mxu0 %v229
        %291 = vmatprep.subr.bf16.mxu0 0
        %292 = vmatpush2.bf16.msra.mxu0 0
        %293 = vmatprep.subr.bf16.mxu0 0
        %294 = vmatpush2.bf16.msra.mxu0 0
        %295 = vmatprep.subr.bf16.mxu0 0
        %296 = vmatpush2.bf16.msra.mxu0 0
        %297 = vmatprep.subr.bf16.mxu0 0
        %298 = vmatpush2.bf16.msra.mxu0 0
        %299 = vmatprep.subr.bf16.mxu0 0
        %300 = vmatpush2.bf16.msra.mxu0 0
        %301 = vmatprep.subr.bf16.mxu0 0
        %302 = vmatpush2.bf16.msra.mxu0 0
        %303 = vmatprep.subr.bf16.mxu0 0
        %304 = vmatpush2.bf16.msra.mxu0 0
        %305 = vmatprep.subr.bf16.mxu0 0
        %306 = vmatpush2.bf16.msra.mxu0 0
        %307 = vmatprep.mubr.bf16.mxu0 0
        %308 = vmatmul.mubr.bf16.gmra.mxu0 %v219
        %v309 = vpop.f32.mrf.mxu0
        %v310 = vadd.f32 0.0, %v309
        %v311 = vpop.f32.mrf.mxu0
        %v312 = vadd.f32 0.0, %v311
        %v313 = vpop.f32.mrf.mxu0
        %v314 = vpop.f32.mrf.mxu0
        %315 = vdwg.mxu0
        %316 = vst [vmem:[%s201] sm:$0xff] %v269
        %317 = vst [vmem:[%s201 + $0x8] sm:$0xff] %v271
        %318 = vst [vmem:[%s201 + $0x10] sm:$0xff] %v310
        %319 = vst [vmem:[%s201 + $0x18] sm:$0xff] %v312
        %s320 = smul.u32 4, %s21
        %p321 = scmp.lt.s32.totalorder %s20, 0
        %s322 = scalar_select %p321, %s20, 0
        %p323 = scmp.lt.s32.totalorder %s320, 7
        %s324 = scalar_select %p323, %s320, 7
        %s325 = smul.addr %s322, 8
        %s326 = sadd.s32 %s324, %s325
        %s327 = smul.addr %s326, 8
        %s328 = scalar_lea.vmem %s2, %s327
        // Predicated region
        $region33: #{_lambda_.14} parent=27 // pred_check
          %p329 = pneg %p100
        $region34: #{_lambda_.14} parent=27 // pred_check_branch
          %331 = sbr.rel (%p329) target = $region36
        $region35: #{_lambda_.14} parent=27 // pred_region
          %s332 = smul.u32 4, %s21
        $region36: #{_lambda_.14} parent=27 // pred_fallthru
          _
      $region28: #{_lambda_.14} parent=5 // pred_fallthru
        _
      %p333 = scmp.le.s32.totalorder 2, %s11
      // Predicated region
      $region37: #{_lambda_.14} parent=5 // pred_check
        %p334 = pneg %p333
      $region38: #{_lambda_.14} parent=5 // pred_check_branch
        %336 = sbr.rel (%p334) target = $region40
      $region39: #{_lambda_.14} parent=5 // pred_region
        %s337 = ssub.s32 %s11, 2
        // Predicated region
        $region41: #{_lambda_.14} parent=39 // pred_check
          %p338 = pneg %p106
        $region42: #{_lambda_.14} parent=39 // pred_check_branch
          %340 = sbr.rel (%p338) target = $region44
        $region43: #{_lambda_.14} parent=39 // pred_region
          %s341 = smul.u32 4, %s23
          %p342 = scmp.lt.s32.totalorder %s22, 0
          %s343 = scalar_select %p342, %s22, 0
          %p344 = scmp.lt.s32.totalorder %s341, 7
          %s345 = scalar_select %p344, %s341, 7
          %s346 = smul.addr %s343, 8
          %s347 = sadd.s32 %s345, %s346
          %s348 = smul.addr %s347, 8
          %s349 = scalar_lea.vmem %s2, %s348
        $region44: #{_lambda_.14} parent=39 // pred_fallthru
          _
      $region40: #{_lambda_.14} parent=5 // pred_fallthru
        _
    $region6: #{_lambda_.14} parent=1 // loop_footer
      %s15 = sadd.s32 1, %s11
    $region7: #{_lambda_.14} parent=1 // loop_footer_branch
      %10 = sbr.rel target = $region3
    $region8: #{_lambda_.14} parent=1 // loop_exit
      _
    %350 = vsyncpa [#allocation3], 1
    %s351 = scalar_lea.sflag [#allocation3], 1
    %352 = vsyncpa %s351, 1

// kernel: _lambda_.15
$region0: #{_lambda_.15}
  #allocation0 [shape = 'u32[]', space=smem, size = 0x4, offset = 0x4, fixed_abs, tag = 'smem constant byte address 0x4 - core index']
  #allocation1 [shape = 'u32[144,128]{1,0:T(1,128)}', space=vmem, size = 0x12000, scoped, tag = 'internal scratch']
  %s0 = inlined_call_operand.vmem [shape: f32[8,256], index: 0, kind: input, shape index: {}]
  %s1 = inlined_call_operand.vmem [shape: f32[1,256], index: 1, kind: output, shape index: {0}]
  %s2 = inlined_call_operand.vmem [shape: f32[1,256], index: 2, kind: output, shape index: {1}]
  %3 = xla_tuple %s1, %s2
  %s4 = sld [smem:[#allocation0]]
  $region26: #{_lambda_.15} parent=0
    _
  %s6 = ssub.s32 1, %s4
  %s7 = scalar_select 0, %s6, %s4
  // Predicated region
  $region2: #{_lambda_.15} parent=0 // pred_check
    _
  $region3: #{_lambda_.15} parent=0 // pred_check_branch
    %9 = sbr.rel (0) target = $region5
  $region4: #{_lambda_.15} parent=0 // pred_region
    _
  $region5: #{_lambda_.15} parent=0 // pred_fallthru
    _
  %p10 = scmp.eq.s32.totalorder 0, 0
  // Predicated region
  $region6: #{_lambda_.15} parent=0 // pred_check
    %p11 = pneg %p10
  $region7: #{_lambda_.15} parent=0 // pred_check_branch
    %13 = sbr.rel (%p11) target = $region9
  $region8: #{_lambda_.15} parent=0 // pred_region
    %v14 = vlaneseq
    %vm15 = vcmp.ge.s32.totalorder %v14, 0
    %vm16 = vcmp.lt.s32.totalorder %v14, 256
    %vm17 = vmand %vm15, %vm16
    %18 = vst.msk [vmem:[%s1] sm:$0x3] %vm17, 0.0
    %19 = vst.msk [vmem:[%s2] sm:$0x3] %vm17, 0.0
  $region9: #{_lambda_.15} parent=0 // pred_fallthru
    _
  %v20 = vld [vmem:[%s0] sm:$0xff]
  %v21 = vld [vmem:[%s0 + $0x8] sm:$0xff]
  %v22 = vld [vmem:[%s1] sm:$0x3]
  %v23 = vrot.slane %v20, 4
  %v24 = vadd.f32 %v20, %v23
  %v25 = vrot.slane %v24, 2
  %v26 = vadd.f32 %v24, %v25
  %v27 = vrot.slane %v26, 1
  %v28 = vadd.f32 %v26, %v27
  %v29 = vrot.slane %v21, 4
  %v30 = vadd.f32 %v21, %v29
  %v31 = vrot.slane %v30, 2
  %v32 = vadd.f32 %v30, %v31
  %v33 = vrot.slane %v32, 1
  %v34 = vadd.f32 %v32, %v33
  %v37 = vcombine.low %v28, %v34
  %v39 = vunpack.c.l.s4 1966171168
  %v40 = vunpack.c.0.s8 %v39
  %v41 = vlaneseq
  %v42 = vshrl.u32 %v41, 7
  %v43 = vsub.s32 %v40, %v42
  %v44 = vrot.slane %v37, %v43
  %v46 = vunpack.c.l.s4 1966171168
  %v47 = vunpack.c.0.s8 %v46
  %v48 = vlaneseq
  %v49 = vshrl.u32 %v48, 7
  %v50 = vsub.s32 %v47, %v49
  %v51 = vrot.slane %v44, %v50
  %v53 = vadd.f32 %v22, %v51
  %v54 = vlaneseq
  %vm55 = vcmp.ge.s32.totalorder %v54, 0
  %vm56 = vcmp.lt.s32.totalorder %v54, 256
  %vm57 = vmand %vm55, %vm56
  %58 = vst.msk [vmem:[%s1] sm:$0x3] %vm57, %v53
  %v59 = vld [vmem:[%s2] sm:$0x3]
  %v60 = vmul.f32 %v20, %v20
  %v61 = vmul.f32 %v21, %v21
  %v62 = vrot.slane %v60, 4
  %v63 = vadd.f32 %v60, %v62
  %v64 = vrot.slane %v63, 2
  %v65 = vadd.f32 %v63, %v64
  %v66 = vrot.slane %v65, 1
  %v67 = vadd.f32 %v65, %v66
  %v68 = vrot.slane %v61, 4
  %v69 = vadd.f32 %v61, %v68
  %v70 = vrot.slane %v69, 2
  %v71 = vadd.f32 %v69, %v70
  %v72 = vrot.slane %v71, 1
  %v73 = vadd.f32 %v71, %v72
  %v76 = vcombine.low %v67, %v73
  %v78 = vunpack.c.l.s4 1966171168
  %v79 = vunpack.c.0.s8 %v78
  %v80 = vlaneseq
  %v81 = vshrl.u32 %v80, 7
  %v82 = vsub.s32 %v79, %v81
  %v83 = vrot.slane %v76, %v82
  %v85 = vunpack.c.l.s4 1966171168
  %v86 = vunpack.c.0.s8 %v85
  %v87 = vlaneseq
  %v88 = vshrl.u32 %v87, 7
  %v89 = vsub.s32 %v86, %v88
  %v90 = vrot.slane %v83, %v89
  %v92 = vadd.f32 %v59, %v90
  %93 = vst.msk [vmem:[%s2] sm:$0x3] %vm57, %v92
  // Predicated region
  $region10: #{_lambda_.15} parent=0 // pred_check
    _
  $region11: #{_lambda_.15} parent=0 // pred_check_branch
    %95 = sbr.rel (0) target = $region13
  $region12: #{_lambda_.15} parent=0 // pred_region
    _
  $region13: #{_lambda_.15} parent=0 // pred_fallthru
    _
  // Predicated region
  $region14: #{_lambda_.15} parent=0 // pred_check
    _
  $region15: #{_lambda_.15} parent=0 // pred_check_branch
    %97 = sbr.rel (0) target = $region17
  $region16: #{_lambda_.15} parent=0 // pred_region
    _
  $region17: #{_lambda_.15} parent=0 // pred_fallthru
    _
  // Predicated region
  $region18: #{_lambda_.15} parent=0 // pred_check
    _
  $region19: #{_lambda_.15} parent=0 // pred_check_branch
    %99 = sbr.rel (0) target = $region21
  $region20: #{_lambda_.15} parent=0 // pred_region
    _
  $region21: #{_lambda_.15} parent=0 // pred_fallthru
    _
  // Predicated region
  $region22: #{_lambda_.15} parent=0 // pred_check
    _
  $region23: #{_lambda_.15} parent=0 // pred_check_branch
    %101 = sbr.rel (0) target = $region25
  $region24: #{_lambda_.15} parent=0 // pred_region
    _
  $region25: #{_lambda_.15} parent=0 // pred_fallthru
    _

// kernel: _lambda_.16
$region0: #{_lambda_.16}
  #allocation0 [shape = 'u32[]', space=smem, size = 0x4, offset = 0x4, fixed_abs, tag = 'smem constant byte address 0x4 - core index']
  #allocation1 [shape = 'u32[144,128]{1,0:T(1,128)}', space=vmem, size = 0x12000, scoped, tag = 'internal scratch']
  %s0 = inlined_call_operand.vmem [shape: f32[8,256], index: 0, kind: input, shape index: {}]
  %s1 = inlined_call_operand.vmem [shape: f32[1,256], index: 1, kind: input, shape index: {}]
  %s2 = inlined_call_operand.vmem [shape: f32[1,256], index: 2, kind: input, shape index: {}]
  %s3 = inlined_call_operand.vmem [shape: bf16[8,256], index: 3, kind: output, shape index: {}]
  %s4 = sld [smem:[#allocation0]]
  $region22: #{_lambda_.16} parent=0
    _
  %s6 = ssub.s32 1, %s4
  %s7 = scalar_select 0, %s6, %s4
  // Predicated region
  $region2: #{_lambda_.16} parent=0 // pred_check
    _
  $region3: #{_lambda_.16} parent=0 // pred_check_branch
    %9 = sbr.rel (0) target = $region5
  $region4: #{_lambda_.16} parent=0 // pred_region
    _
  $region5: #{_lambda_.16} parent=0 // pred_fallthru
    _
  // Predicated region
  $region6: #{_lambda_.16} parent=0 // pred_check
    _
  $region7: #{_lambda_.16} parent=0 // pred_check_branch
    %11 = sbr.rel (0) target = $region9
  $region8: #{_lambda_.16} parent=0 // pred_region
    _
  $region9: #{_lambda_.16} parent=0 // pred_fallthru
    _
  // Predicated region
  $region10: #{_lambda_.16} parent=0 // pred_check
    _
  $region11: #{_lambda_.16} parent=0 // pred_check_branch
    %13 = sbr.rel (0) target = $region13
  $region12: #{_lambda_.16} parent=0 // pred_region
    _
  $region13: #{_lambda_.16} parent=0 // pred_fallthru
    _
  %v14 = vld [vmem:[%s0] sm:$0xff]
  %v15 = vld [vmem:[%s0 + $0x8] sm:$0xff]
  %v16 = vld [vmem:[%s1] sm:$0x3]
  %v18 = vlaneseq
  %v19 = vshrl.u32 %v18, 7
  %v20 = vsub.s32 0, %v19
  %v21 = vrot.slane %v16, %v20
  %v22 = vlaneseq
  %v23 = vshrl.u32 %v22, 7
  %v24 = vsub.s32 1, %v23
  %v25 = vrot.slane %v16, %v24
  %v28 = vmul.f32 %v14, %v21
  %v29 = vmul.f32 %v15, %v25
  %v30 = vld [vmem:[%s2] sm:$0x3]
  %v32 = vlaneseq
  %v33 = vshrl.u32 %v32, 7
  %v34 = vsub.s32 0, %v33
  %v35 = vrot.slane %v30, %v34
  %v36 = vlaneseq
  %v37 = vshrl.u32 %v36, 7
  %v38 = vsub.s32 1, %v37
  %v39 = vrot.slane %v30, %v38
  %v42 = vadd.f32 %v28, %v35
  %v43 = vadd.f32 %v29, %v39
  %v44 = vmax.f32 %v42, 0.0
  %v45 = vmax.f32 %v43, 0.0
  %v46 = vpack.c.bf16 %v44, %v44
  %v47 = vpack.c.bf16 %v45, %v45
  %v50 = vunpack.c.l.b16 %v46
  %v51 = vunpack.c.l.b16 %v47
  %v52 = vpack.c.b16 %v51, %v50
  %54 = vst [vmem:[%s3] sm:$0xff] %v52
  // Predicated region
  $region14: #{_lambda_.16} parent=0 // pred_check
    _
  $region15: #{_lambda_.16} parent=0 // pred_check_branch
    %56 = sbr.rel (0) target = $region17
  $region16: #{_lambda_.16} parent=0 // pred_region
    _
  $region17: #{_lambda_.16} parent=0 // pred_fallthru
    _
  // Predicated region
  $region18: #{_lambda_.16} parent=0 // pred_check
    _
  $region19: #{_lambda_.16} parent=0 // pred_check_branch
    %58 = sbr.rel (0) target = $region21
  $region20: #{_lambda_.16} parent=0 // pred_region
    _
  $region21: #{_lambda_.16} parent=0 // pred_fallthru
    _

// kernel: _lambda_.17
$region0: #{_lambda_.17}
  #allocation0 [shape = 'u32[]', space=smem, size = 0x4, offset = 0x4, fixed_abs, tag = 'smem constant byte address 0x4 - core index']
  #allocation1 [shape = 'u32[144,128]{1,0:T(1,128)}', space=vmem, size = 0x12000, scoped, tag = 'internal scratch']
  %s0 = inlined_call_operand.vmem [shape: bf16[32,64], index: 0, kind: input, shape index: {}]
  %s1 = inlined_call_operand.hbm [shape: bf16[64,512], index: 1, kind: input, shape index: {}]
  %s2 = inlined_call_operand.vmem [shape: f32[32,512], index: 2, kind: output, shape index: {}]
  %s3 = sld [smem:[#allocation0]]
  $region45: #{_lambda_.17} parent=0
    _
  %s5 = ssub.s32 1, %s3
  %s6 = scalar_select 0, %s5, %s3
  $region1: #{_lambda_.17} parent=0
    #allocation2 [shape = 'u8[65536]{0}', space=vmem, size = 0x10000, scoped, tag = 'input window, operand 1, single buffered']
    #allocation3 [shape = 's32[2]{0}', space=sflag, size = 0x8, scoped, tag = 'scoped memory for _lambda_.17']
    %7 = vsyncpa [#allocation3], 0
    loop: start=0, step=1, limit=4
    $region2: #{_lambda_.17} parent=1 // loop_pre_header
      _
    $region3: #{_lambda_.17} parent=1 // loop_header
      %s9 = sphi 0, %s13
      %p10 = scmp.ge.s32.totalorder %s9, 4
      %s16 = sphi 0, %s28
      %s17 = sphi 0, %s24
      %s18 = sphi 0, %s16
      %s19 = sphi 0, %s17
      %s20 = sphi 0, %s18
      %s21 = sphi 0, %s19
      %s31 = sphi 0, %s33
      %s34 = sphi 0, %s31
      %s35 = sphi 0, %s34
      %s51 = sphi 0, %s35
      %s57 = sphi 0, %s59
      %s60 = sphi 0, %s57
      %s61 = sphi 0, %s60
      %s77 = sphi 0, %s61
      %s85 = sphi 0, %s87
      %s88 = sphi 0, %s85
      %s89 = sphi 0, %s88
      %s105 = sphi 0, %s89
    $region4: #{_lambda_.17} parent=1 // loop_header_branch
      %12 = sbr.rel (%p10) target = $region8
    $region5: #{_lambda_.17} parent=1 // loop_body
      %s14 = ssub.s32 %s9, 1
      %s15 = ssub.s32 %s9, 2
      %s22 = sadd.s32 1, %s17
      %p23 = scmp.ge.s32.totalorder %s22, 1
      %s24 = scalar_select %p23, 0, %s22
      %s25 = sadd.s32 1, %s16
      %s26 = scalar_select %p23, %s25, %s16
      %p27 = scmp.ge.s32.totalorder %s26, 2
      %s28 = scalar_select %p27, 0, %s26
      %s29 = ssub.s32 %s16, %s28
      %p30 = scmp.eq.s32.totalorder %s29, 0
      %s32 = sadd.s32 %s31, 1
      %s33 = scalar_select %p30, %s31, %s32
      %p36 = pneg %p30
      %p37 = scmp.eq.s32.totalorder %s9, 1
      %p38 = por %p36, %p37
      %p39 = scmp.ne.s32.totalorder %s31, %s34
      %p40 = scmp.eq.s32.totalorder %s9, 0
      %p41 = por %p39, %p40
      %p42 = scmp.ne.s32.totalorder %s31, %s34
      %p43 = scmp.eq.s32.totalorder %s14, 1
      %p44 = por %p42, %p43
      %p45 = scmp.ne.s32.totalorder %s34, %s35
      %p46 = scmp.eq.s32.totalorder %s14, 0
      %p47 = por %p45, %p46
      %p48 = scmp.ne.s32.totalorder %s34, %s35
      %p49 = scmp.eq.s32.totalorder %s15, 1
      %p50 = por %p48, %p49
      %p52 = scmp.ne.s32.totalorder %s35, %s51
      %p53 = scmp.eq.s32.totalorder %s15, 0
      %p54 = por %p52, %p53
      %s55 = ssub.s32 %s17, %s24
      %p56 = scmp.eq.s32.totalorder %s55, 0
      %s58 = sadd.s32 %s57, 1
      %s59 = scalar_select %p56, %s57, %s58
      %p62 = pneg %p56
      %p63 = scmp.eq.s32.totalorder %s9, 1
      %p64 = por %p62, %p63
      %p65 = scmp.ne.s32.totalorder %s57, %s60
      %p66 = scmp.eq.s32.totalorder %s9, 0
      %p67 = por %p65, %p66
      %p68 = scmp.ne.s32.totalorder %s57, %s60
      %p69 = scmp.eq.s32.totalorder %s14, 1
      %p70 = por %p68, %p69
      %p71 = scmp.ne.s32.totalorder %s60, %s61
      %p72 = scmp.eq.s32.totalorder %s14, 0
      %p73 = por %p71, %p72
      %p74 = scmp.ne.s32.totalorder %s60, %s61
      %p75 = scmp.eq.s32.totalorder %s15, 1
      %p76 = por %p74, %p75
      %p78 = scmp.ne.s32.totalorder %s61, %s77
      %p79 = scmp.eq.s32.totalorder %s15, 0
      %p80 = por %p78, %p79
      %s81 = ssub.s32 %s16, %s28
      %s82 = ssub.s32 %s17, %s24
      %s83 = sor.u32 %s81, %s82
      %p84 = scmp.eq.s32.totalorder %s83, 0
      %s86 = sadd.s32 %s85, 1
      %s87 = scalar_select %p84, %s85, %s86
      %p90 = pneg %p84
      %p91 = scmp.eq.s32.totalorder %s9, 1
      %p92 = por %p90, %p91
      %p93 = scmp.ne.s32.totalorder %s85, %s88
      %p94 = scmp.eq.s32.totalorder %s9, 0
      %p95 = por %p93, %p94
      %p96 = scmp.ne.s32.totalorder %s85, %s88
      %p97 = scmp.eq.s32.totalorder %s14, 1
      %p98 = por %p96, %p97
      %p99 = scmp.ne.s32.totalorder %s88, %s89
      %p100 = scmp.eq.s32.totalorder %s14, 0
      %p101 = por %p99, %p100
      %p102 = scmp.ne.s32.totalorder %s88, %s89
      %p103 = scmp.eq.s32.totalorder %s15, 1
      %p104 = por %p102, %p103
      %p106 = scmp.ne.s32.totalorder %s89, %s105
      %p107 = scmp.eq.s32.totalorder %s15, 0
      %p108 = por %p106, %p107
      %p109 = scmp.le.s32.totalorder 1, %s9
      %p110 = scmp.lt.s32.totalorder %s9, 3
      %p111 = pnand %p109, %p110
      %p112 = pneg %p111
      // Predicated region
      $region9: #{_lambda_.17} parent=5 // pred_check
        _
      $region10: #{_lambda_.17} parent=5 // pred_check_branch
        %114 = sbr.rel (%p111) target = $region12
      $region11: #{_lambda_.17} parent=5 // pred_region
        %s115 = ssub.s32 %s9, 1
        // Predicated region
        $region13: #{_lambda_.17} parent=11 // pred_check
          %p116 = pneg %p73
        $region14: #{_lambda_.17} parent=11 // pred_check_branch
          %118 = sbr.rel (%p116) target = $region16
        $region15: #{_lambda_.17} parent=11 // pred_region
          %s119 = smul.u32 4, %s19
          %s121 = ssub.s32 2048, 2048
          %122 = vsyncadd [#allocation3], %s121
          %s123 = smul.addr %s119, 64
          %s124 = scalar_lea.hbm %s1, %s123
          %s125 = sshll.u32 [#allocation2], 4
          %s126 = int_to_ptr.vmem [resolvable:$true] %s125
          %131 = dma.hbm_to_vmem [thread:$0]  %s124, 2048, %s126, [#allocation3], 256, 256, 16
        $region16: #{_lambda_.17} parent=11 // pred_fallthru
          _
      $region12: #{_lambda_.17} parent=5 // pred_fallthru
        _
      %p132 = scmp.lt.s32.totalorder %s9, 2
      // Predicated region
      $region17: #{_lambda_.17} parent=5 // pred_check
        %p133 = pneg %p132
      $region18: #{_lambda_.17} parent=5 // pred_check_branch
        %135 = sbr.rel (%p133) target = $region20
      $region19: #{_lambda_.17} parent=5 // pred_region
        // Predicated region
        $region21: #{_lambda_.17} parent=19 // pred_check
          %p136 = pneg %p41
        $region22: #{_lambda_.17} parent=19 // pred_check_branch
          %138 = sbr.rel (%p136) target = $region24
        $region23: #{_lambda_.17} parent=19 // pred_region
          %s139 = smul.u32 2, %s16
          %p140 = scmp.lt.s32.totalorder %s139, 3
          %s141 = scalar_select %p140, %s139, 3
          %s142 = smul.addr %s141, 4
          %s143 = scalar_lea.vmem %s0, %s142
          %s144 = smul.u32 2, %s16
        $region24: #{_lambda_.17} parent=19 // pred_fallthru
          _
      $region20: #{_lambda_.17} parent=5 // pred_fallthru
        _
      %p145 = scmp.le.s32.totalorder 1, %s9
      %p146 = scmp.lt.s32.totalorder %s9, 3
      %p147 = pnand %p145, %p146
      %p148 = pneg %p147
      // Predicated region
      $region25: #{_lambda_.17} parent=5 // pred_check
        _
      $region26: #{_lambda_.17} parent=5 // pred_check_branch
        %150 = sbr.rel (%p147) target = $region28
      $region27: #{_lambda_.17} parent=5 // pred_region
        %s151 = ssub.s32 %s9, 1
        // Predicated region
        $region29: #{_lambda_.17} parent=27 // pred_check
          %p152 = pneg %p73
        $region30: #{_lambda_.17} parent=27 // pred_check_branch
          %154 = sbr.rel (%p152) target = $region32
        $region31: #{_lambda_.17} parent=27 // pred_region
          %155 = dma.done [#allocation3], 2048
        $region32: #{_lambda_.17} parent=27 // pred_fallthru
          _
        %s156 = smul.u32 2, %s18
        %p157 = scmp.lt.s32.totalorder %s156, 3
        %s158 = scalar_select %p157, %s156, 3
        %s159 = smul.addr %s158, 4
        %s160 = scalar_lea.vmem %s0, %s159
        %p161 = pneg %p47
        %p162 = pneg %p44
        %p163 = pneg %p73
        %p164 = pneg %p70
        %p165 = pneg %p101
        %p166 = pneg %p98
        %s167 = smul.u32 2, %s18
        %s168 = smul.u32 4, %s19
        %p169 = scmp.lt.s32.totalorder %s167, 3
        %s170 = scalar_select %p169, %s167, 3
        %p171 = scmp.lt.s32.totalorder %s168, 3
        %s172 = scalar_select %p171, %s168, 3
        %s173 = smul.addr %s170, 4
        %s174 = sadd.s32 %s172, %s173
        %s175 = smul.addr %s174, 8
        %s176 = scalar_lea.vmem %s2, %s175
        %s177 = smul.u32 2, %s18
        %p178 = scmp.lt.s32.totalorder %s177, 3
        %s179 = scalar_select %p178, %s177, 3
        %s180 = smul.addr %s179, 4
        %s181 = scalar_lea.vmem %s0, %s180
        %s182 = smul.u32 2, %s18
        %s183 = smul.u32 4, %s19
        %s184 = smul.u32 2, %s18
        %s185 = smul.u32 4, %s19
        %p186 = scmp.lt.s32.totalorder %s184, 3
        %s187 = scalar_select %p186, %s184, 3
        %p188 = scmp.lt.s32.totalorder %s185, 3
        %s189 = scalar_select %p188, %s185, 3
        %s190 = smul.addr %s187, 4
        %s191 = sadd.s32 %s189, %s190
        %s192 = smul.addr %s191, 8
        %s193 = scalar_lea.vmem %s2, %s192
        %s194 = smul.u32 2, %s18
        %s195 = smul.u32 4, %s19
        %v197 = vld [vmem:[%s181] sm:$0xf]
        %v198 = vld [vmem:[%s181 + $0x4] sm:$0xf]
        %v199 = vld [vmem:[#allocation2] sm:$0xff]
        %v200 = vld [vmem:[#allocation2 + $0x8] sm:$0xff]
        %v201 = vld [vmem:[#allocation2 + $0x10] sm:$0xff]
        %v202 = vld [vmem:[#allocation2 + $0x18] sm:$0xff]
        %v203 = vld [vmem:[#allocation2 + $0x20] sm:$0xff]
        %v204 = vld [vmem:[#allocation2 + $0x28] sm:$0xff]
        %v205 = vld [vmem:[#allocation2 + $0x30] sm:$0xff]
        %v206 = vld [vmem:[#allocation2 + $0x38] sm:$0xff]
        %v207 = vld [vmem:[#allocation2 + $0x40] sm:$0xff]
        %v208 = vld [vmem:[#allocation2 + $0x48] sm:$0xff]
        %v209 = vld [vmem:[#allocation2 + $0x50] sm:$0xff]
        %v210 = vld [vmem:[#allocation2 + $0x58] sm:$0xff]
        %v211 = vld [vmem:[#allocation2 + $0x60] sm:$0xff]
        %v212 = vld [vmem:[#allocation2 + $0x68] sm:$0xff]
        %v213 = vld [vmem:[#allocation2 + $0x70] sm:$0xff]
        %v214 = vld [vmem:[#allocation2 + $0x78] sm:$0xff]
        %v217 = vunpack.c.l.b16 %v197
        %v218 = vunpack.c.l.b16 %v198
        %v219 = vpack.c.b16 %v218, %v217
        %v236 = vunpack.c.l.b16 %v199
        %v237 = vunpack.c.h.b16 %v199
        %v238 = vunpack.c.l.b16 %v200
        %v239 = vunpack.c.h.b16 %v200
        %v240 = vunpack.c.l.b16 %v201
        %v241 = vunpack.c.h.b16 %v201
        %v242 = vunpack.c.l.b16 %v202
        %v243 = vunpack.c.h.b16 %v202
        %v244 = vunpack.c.l.b16 %v203
        %v245 = vunpack.c.h.b16 %v203
        %v246 = vunpack.c.l.b16 %v204
        %v247 = vunpack.c.h.b16 %v204
        %v248 = vunpack.c.l.b16 %v205
        %v249 = vunpack.c.h.b16 %v205
        %v250 = vunpack.c.l.b16 %v206
        %v251 = vunpack.c.h.b16 %v206
        %v252 = vunpack.c.l.b16 %v207
        %v253 = vunpack.c.h.b16 %v207
        %v254 = vunpack.c.l.b16 %v208
        %v255 = vunpack.c.h.b16 %v208
        %v256 = vunpack.c.l.b16 %v209
        %v257 = vunpack.c.h.b16 %v209
        %v258 = vunpack.c.l.b16 %v210
        %v259 = vunpack.c.h.b16 %v210
        %v260 = vunpack.c.l.b16 %v211
        %v261 = vunpack.c.h.b16 %v211
        %v262 = vunpack.c.l.b16 %v212
        %v263 = vunpack.c.h.b16 %v212
        %v264 = vunpack.c.l.b16 %v213
        %v265 = vunpack.c.h.b16 %v213
        %v266 = vunpack.c.l.b16 %v214
        %v267 = vunpack.c.h.b16 %v214
        %v268 = vpack.c.b16 %v240, %v236
        %v269 = vpack.c.b16 %v241, %v237
        %v270 = vpack.c.b16 %v242, %v238
        %v271 = vpack.c.b16 %v243, %v239
        %v272 = vpack.c.b16 %v248, %v244
        %v273 = vpack.c.b16 %v249, %v245
        %v274 = vpack.c.b16 %v250, %v246
        %v275 = vpack.c.b16 %v251, %v247
        %v276 = vpack.c.b16 %v256, %v252
        %v277 = vpack.c.b16 %v257, %v253
        %v278 = vpack.c.b16 %v258, %v254
        %v279 = vpack.c.b16 %v259, %v255
        %v280 = vpack.c.b16 %v264, %v260
        %v281 = vpack.c.b16 %v265, %v261
        %v282 = vpack.c.b16 %v266, %v262
        %v283 = vpack.c.b16 %v267, %v263
        %vm300 = vcmask 523264
        %v302 = vsel %vm300, %v219, 0
        %304 = vmatprep.subr.bf16.mxu0 0
        %305 = vmatpush1.bf16.msra.mxu0 0
        %306 = vmatprep.subr.bf16.mxu0 0
        %307 = vmatpush1.bf16.msra.mxu0 0
        %308 = vmatprep.subr.bf16.mxu0 0
        %309 = vmatpush1.bf16.msra.mxu0 0
        %310 = vmatprep.subr.bf16.mxu0 0
        %311 = vmatpush1.bf16.msra.mxu0 0
        %312 = vmatprep.subr.bf16.mxu0 %v281
        %313 = vmatpush1.bf16.msra.mxu0 %v280
        %314 = vmatprep.subr.bf16.mxu0 %v277
        %315 = vmatpush1.bf16.msra.mxu0 %v276
        %316 = vmatprep.subr.bf16.mxu0 %v273
        %317 = vmatpush1.bf16.msra.mxu0 %v272
        %318 = vmatprep.subr.bf16.mxu0 %v269
        %319 = vmatpush1.bf16.msra.mxu0 %v268
        %320 = vmatprep.subr.bf16.mxu0 0
        %321 = vmatpush2.bf16.msra.mxu0 0
        %322 = vmatprep.subr.bf16.mxu0 0
        %323 = vmatpush2.bf16.msra.mxu0 0
        %324 = vmatprep.subr.bf16.mxu0 0
        %325 = vmatpush2.bf16.msra.mxu0 0
        %326 = vmatprep.subr.bf16.mxu0 0
        %327 = vmatpush2.bf16.msra.mxu0 0
        %328 = vmatprep.subr.bf16.mxu0 0
        %329 = vmatpush2.bf16.msra.mxu0 0
        %330 = vmatprep.subr.bf16.mxu0 0
        %331 = vmatpush2.bf16.msra.mxu0 0
        %332 = vmatprep.subr.bf16.mxu0 0
        %333 = vmatpush2.bf16.msra.mxu0 0
        %334 = vmatprep.subr.bf16.mxu0 0
        %335 = vmatpush2.bf16.msra.mxu0 0
        %336 = vmatprep.mubr.bf16.mxu0 0
        %337 = vmatmul.mubr.bf16.gmra.mxu0 %v302
        %v338 = vpop.f32.mrf.mxu0
        %v339 = vadd.f32 0.0, %v338
        %v340 = vpop.f32.mrf.mxu0
        %v341 = vadd.f32 0.0, %v340
        %v342 = vpop.f32.mrf.mxu0
        %v343 = vadd.f32 0.0, %v342
        %v344 = vpop.f32.mrf.mxu0
        %v345 = vadd.f32 0.0, %v344
        %346 = vdwg.mxu0
        %347 = vmatprep.subr.bf16.mxu0 0
        %348 = vmatpush1.bf16.msra.mxu0 0
        %349 = vmatprep.subr.bf16.mxu0 0
        %350 = vmatpush1.bf16.msra.mxu0 0
        %351 = vmatprep.subr.bf16.mxu0 0
        %352 = vmatpush1.bf16.msra.mxu0 0
        %353 = vmatprep.subr.bf16.mxu0 0
        %354 = vmatpush1.bf16.msra.mxu0 0
        %355 = vmatprep.subr.bf16.mxu0 %v283
        %356 = vmatpush1.bf16.msra.mxu0 %v282
        %357 = vmatprep.subr.bf16.mxu0 %v279
        %358 = vmatpush1.bf16.msra.mxu0 %v278
        %359 = vmatprep.subr.bf16.mxu0 %v275
        %360 = vmatpush1.bf16.msra.mxu0 %v274
        %361 = vmatprep.subr.bf16.mxu0 %v271
        %362 = vmatpush1.bf16.msra.mxu0 %v270
        %363 = vmatprep.subr.bf16.mxu0 0
        %364 = vmatpush2.bf16.msra.mxu0 0
        %365 = vmatprep.subr.bf16.mxu0 0
        %366 = vmatpush2.bf16.msra.mxu0 0
        %367 = vmatprep.subr.bf16.mxu0 0
        %368 = vmatpush2.bf16.msra.mxu0 0
        %369 = vmatprep.subr.bf16.mxu0 0
        %370 = vmatpush2.bf16.msra.mxu0 0
        %371 = vmatprep.subr.bf16.mxu0 0
        %372 = vmatpush2.bf16.msra.mxu0 0
        %373 = vmatprep.subr.bf16.mxu0 0
        %374 = vmatpush2.bf16.msra.mxu0 0
        %375 = vmatprep.subr.bf16.mxu0 0
        %376 = vmatpush2.bf16.msra.mxu0 0
        %377 = vmatprep.subr.bf16.mxu0 0
        %378 = vmatpush2.bf16.msra.mxu0 0
        %379 = vmatprep.mubr.bf16.mxu0 0
        %380 = vmatmul.mubr.bf16.gmra.mxu0 %v302
        %v381 = vpop.f32.mrf.mxu0
        %v382 = vadd.f32 0.0, %v381
        %v383 = vpop.f32.mrf.mxu0
        %v384 = vadd.f32 0.0, %v383
        %v385 = vpop.f32.mrf.mxu0
        %v386 = vadd.f32 0.0, %v385
        %v387 = vpop.f32.mrf.mxu0
        %v388 = vadd.f32 0.0, %v387
        %389 = vdwg.mxu0
        %390 = vst [vmem:[%s193] sm:$0xff] %v339
        %391 = vst [vmem:[%s193 + $0x8] sm:$0xff] %v341
        %392 = vst [vmem:[%s193 + $0x10] sm:$0xff] %v382
        %393 = vst [vmem:[%s193 + $0x18] sm:$0xff] %v384
        %394 = vst [vmem:[%s193 + $0x20] sm:$0xff] %v343
        %395 = vst [vmem:[%s193 + $0x28] sm:$0xff] %v345
        %396 = vst [vmem:[%s193 + $0x30] sm:$0xff] %v386
        %397 = vst [vmem:[%s193 + $0x38] sm:$0xff] %v388
        %s398 = smul.u32 2, %s18
        %s399 = smul.u32 4, %s19
        %p400 = scmp.lt.s32.totalorder %s398, 3
        %s401 = scalar_select %p400, %s398, 3
        %p402 = scmp.lt.s32.totalorder %s399, 3
        %s403 = scalar_select %p402, %s399, 3
        %s404 = smul.addr %s401, 4
        %s405 = sadd.s32 %s403, %s404
        %s406 = smul.addr %s405, 8
        %s407 = scalar_lea.vmem %s2, %s406
        // Predicated region
        $region33: #{_lambda_.17} parent=27 // pred_check
          %p408 = pneg %p98
        $region34: #{_lambda_.17} parent=27 // pred_check_branch
          %410 = sbr.rel (%p408) target = $region36
        $region35: #{_lambda_.17} parent=27 // pred_region
          %s411 = smul.u32 2, %s18
          %s412 = smul.u32 4, %s19
        $region36: #{_lambda_.17} parent=27 // pred_fallthru
          _
      $region28: #{_lambda_.17} parent=5 // pred_fallthru
        _
      %p413 = scmp.le.s32.totalorder 2, %s9
      // Predicated region
      $region37: #{_lambda_.17} parent=5 // pred_check
        %p414 = pneg %p413
      $region38: #{_lambda_.17} parent=5 // pred_check_branch
        %416 = sbr.rel (%p414) target = $region40
      $region39: #{_lambda_.17} parent=5 // pred_region
        %s417 = ssub.s32 %s9, 2
        // Predicated region
        $region41: #{_lambda_.17} parent=39 // pred_check
          %p418 = pneg %p104
        $region42: #{_lambda_.17} parent=39 // pred_check_branch
          %420 = sbr.rel (%p418) target = $region44
        $region43: #{_lambda_.17} parent=39 // pred_region
          %s421 = smul.u32 2, %s20
          %s422 = smul.u32 4, %s21
          %p423 = scmp.lt.s32.totalorder %s421, 3
          %s424 = scalar_select %p423, %s421, 3
          %p425 = scmp.lt.s32.totalorder %s422, 3
          %s426 = scalar_select %p425, %s422, 3
          %s427 = smul.addr %s424, 4
          %s428 = sadd.s32 %s426, %s427
          %s429 = smul.addr %s428, 8
          %s430 = scalar_lea.vmem %s2, %s429
        $region44: #{_lambda_.17} parent=39 // pred_fallthru
          _
      $region40: #{_lambda_.17} parent=5 // pred_fallthru
        _
    $region6: #{_lambda_.17} parent=1 // loop_footer
      %s13 = sadd.s32 1, %s9
    $region7: #{_lambda_.17} parent=1 // loop_footer_branch
      %8 = sbr.rel target = $region3
    $region8: #{_lambda_.17} parent=1 // loop_exit
      _
    %431 = vsyncpa [#allocation3], 1
    %s432 = scalar_lea.sflag [#allocation3], 1
    %433 = vsyncpa %s432, 1

// kernel: _lambda_.18
$region0: #{_lambda_.18}
  #allocation0 [shape = 'u32[]', space=smem, size = 0x4, offset = 0x4, fixed_abs, tag = 'smem constant byte address 0x4 - core index']
  #allocation1 [shape = 'u32[144,128]{1,0:T(1,128)}', space=vmem, size = 0x12000, scoped, tag = 'internal scratch']
  %s0 = inlined_call_operand.vmem [shape: f32[16,256], index: 0, kind: input, shape index: {}]
  %s1 = inlined_call_operand.vmem [shape: f32[1,256], index: 1, kind: output, shape index: {0}]
  %s2 = inlined_call_operand.vmem [shape: f32[1,256], index: 2, kind: output, shape index: {1}]
  %3 = xla_tuple %s1, %s2
  %s4 = sld [smem:[#allocation0]]
  $region26: #{_lambda_.18} parent=0
    _
  %s6 = ssub.s32 1, %s4
  %s7 = scalar_select 0, %s6, %s4
  // Predicated region
  $region2: #{_lambda_.18} parent=0 // pred_check
    _
  $region3: #{_lambda_.18} parent=0 // pred_check_branch
    %9 = sbr.rel (0) target = $region5
  $region4: #{_lambda_.18} parent=0 // pred_region
    _
  $region5: #{_lambda_.18} parent=0 // pred_fallthru
    _
  %p10 = scmp.eq.s32.totalorder 0, 0
  // Predicated region
  $region6: #{_lambda_.18} parent=0 // pred_check
    %p11 = pneg %p10
  $region7: #{_lambda_.18} parent=0 // pred_check_branch
    %13 = sbr.rel (%p11) target = $region9
  $region8: #{_lambda_.18} parent=0 // pred_region
    %v14 = vlaneseq
    %vm15 = vcmp.ge.s32.totalorder %v14, 0
    %vm16 = vcmp.lt.s32.totalorder %v14, 256
    %vm17 = vmand %vm15, %vm16
    %18 = vst.msk [vmem:[%s1] sm:$0x3] %vm17, 0.0
    %19 = vst.msk [vmem:[%s2] sm:$0x3] %vm17, 0.0
  $region9: #{_lambda_.18} parent=0 // pred_fallthru
    _
  %v20 = vld [vmem:[%s0] sm:$0xff]
  %v21 = vld [vmem:[%s0 + $0x8] sm:$0xff]
  %v22 = vld [vmem:[%s0 + $0x10] sm:$0xff]
  %v23 = vld [vmem:[%s0 + $0x18] sm:$0xff]
  %v24 = vld [vmem:[%s1] sm:$0x3]
  %v25 = vadd.f32 %v20, %v22
  %v26 = vrot.slane %v25, 4
  %v27 = vadd.f32 %v25, %v26
  %v28 = vrot.slane %v27, 2
  %v29 = vadd.f32 %v27, %v28
  %v30 = vrot.slane %v29, 1
  %v31 = vadd.f32 %v29, %v30
  %v32 = vadd.f32 %v21, %v23
  %v33 = vrot.slane %v32, 4
  %v34 = vadd.f32 %v32, %v33
  %v35 = vrot.slane %v34, 2
  %v36 = vadd.f32 %v34, %v35
  %v37 = vrot.slane %v36, 1
  %v38 = vadd.f32 %v36, %v37
  %v41 = vcombine.low %v31, %v38
  %v43 = vunpack.c.l.s4 1966171168
  %v44 = vunpack.c.0.s8 %v43
  %v45 = vlaneseq
  %v46 = vshrl.u32 %v45, 7
  %v47 = vsub.s32 %v44, %v46
  %v48 = vrot.slane %v41, %v47
  %v50 = vunpack.c.l.s4 1966171168
  %v51 = vunpack.c.0.s8 %v50
  %v52 = vlaneseq
  %v53 = vshrl.u32 %v52, 7
  %v54 = vsub.s32 %v51, %v53
  %v55 = vrot.slane %v48, %v54
  %v57 = vadd.f32 %v24, %v55
  %v58 = vlaneseq
  %vm59 = vcmp.ge.s32.totalorder %v58, 0
  %vm60 = vcmp.lt.s32.totalorder %v58, 256
  %vm61 = vmand %vm59, %vm60
  %62 = vst.msk [vmem:[%s1] sm:$0x3] %vm61, %v57
  %v63 = vld [vmem:[%s2] sm:$0x3]
  %v64 = vmul.f32 %v20, %v20
  %v65 = vmul.f32 %v21, %v21
  %v66 = vmul.f32 %v22, %v22
  %v67 = vmul.f32 %v23, %v23
  %v68 = vadd.f32 %v64, %v66
  %v69 = vrot.slane %v68, 4
  %v70 = vadd.f32 %v68, %v69
  %v71 = vrot.slane %v70, 2
  %v72 = vadd.f32 %v70, %v71
  %v73 = vrot.slane %v72, 1
  %v74 = vadd.f32 %v72, %v73
  %v75 = vadd.f32 %v65, %v67
  %v76 = vrot.slane %v75, 4
  %v77 = vadd.f32 %v75, %v76
  %v78 = vrot.slane %v77, 2
  %v79 = vadd.f32 %v77, %v78
  %v80 = vrot.slane %v79, 1
  %v81 = vadd.f32 %v79, %v80
  %v84 = vcombine.low %v74, %v81
  %v86 = vunpack.c.l.s4 1966171168
  %v87 = vunpack.c.0.s8 %v86
  %v88 = vlaneseq
  %v89 = vshrl.u32 %v88, 7
  %v90 = vsub.s32 %v87, %v89
  %v91 = vrot.slane %v84, %v90
  %v93 = vunpack.c.l.s4 1966171168
  %v94 = vunpack.c.0.s8 %v93
  %v95 = vlaneseq
  %v96 = vshrl.u32 %v95, 7
  %v97 = vsub.s32 %v94, %v96
  %v98 = vrot.slane %v91, %v97
  %v100 = vadd.f32 %v63, %v98
  %101 = vst.msk [vmem:[%s2] sm:$0x3] %vm61, %v100
  // Predicated region
  $region10: #{_lambda_.18} parent=0 // pred_check
    _
  $region11: #{_lambda_.18} parent=0 // pred_check_branch
    %103 = sbr.rel (0) target = $region13
  $region12: #{_lambda_.18} parent=0 // pred_region
    _
  $region13: #{_lambda_.18} parent=0 // pred_fallthru
    _
  // Predicated region
  $region14: #{_lambda_.18} parent=0 // pred_check
    _
  $region15: #{_lambda_.18} parent=0 // pred_check_branch
    %105 = sbr.rel (0) target = $region17
  $region16: #{_lambda_.18} parent=0 // pred_region
    _
  $region17: #{_lambda_.18} parent=0 // pred_fallthru
    _
  // Predicated region
  $region18: #{_lambda_.18} parent=0 // pred_check
    _
  $region19: #{_lambda_.18} parent=0 // pred_check_branch
    %107 = sbr.rel (0) target = $region21
  $region20: #{_lambda_.18} parent=0 // pred_region
    _
  $region21: #{_lambda_.18} parent=0 // pred_fallthru
    _
  // Predicated region
  $region22: #{_lambda_.18} parent=0 // pred_check
    _
  $region23: #{_lambda_.18} parent=0 // pred_check_branch
    %109 = sbr.rel (0) target = $region25
  $region24: #{_lambda_.18} parent=0 // pred_region
    _
  $region25: #{_lambda_.18} parent=0 // pred_fallthru
    _

// kernel: _lambda_.19
$region0: #{_lambda_.19}
  #allocation0 [shape = 'u32[]', space=smem, size = 0x4, offset = 0x4, fixed_abs, tag = 'smem constant byte address 0x4 - core index']
  #allocation1 [shape = 'u32[144,128]{1,0:T(1,128)}', space=vmem, size = 0x12000, scoped, tag = 'internal scratch']
  %s0 = inlined_call_operand.vmem [shape: f32[16,256], index: 0, kind: input, shape index: {}]
  %s1 = inlined_call_operand.vmem [shape: f32[1,256], index: 1, kind: input, shape index: {}]
  %s2 = inlined_call_operand.vmem [shape: f32[1,256], index: 2, kind: input, shape index: {}]
  %s3 = inlined_call_operand.vmem [shape: bf16[16,256], index: 3, kind: output, shape index: {}]
  %s4 = sld [smem:[#allocation0]]
  $region22: #{_lambda_.19} parent=0
    _
  %s6 = ssub.s32 1, %s4
  %s7 = scalar_select 0, %s6, %s4
  // Predicated region
  $region2: #{_lambda_.19} parent=0 // pred_check
    _
  $region3: #{_lambda_.19} parent=0 // pred_check_branch
    %9 = sbr.rel (0) target = $region5
  $region4: #{_lambda_.19} parent=0 // pred_region
    _
  $region5: #{_lambda_.19} parent=0 // pred_fallthru
    _
  // Predicated region
  $region6: #{_lambda_.19} parent=0 // pred_check
    _
  $region7: #{_lambda_.19} parent=0 // pred_check_branch
    %11 = sbr.rel (0) target = $region9
  $region8: #{_lambda_.19} parent=0 // pred_region
    _
  $region9: #{_lambda_.19} parent=0 // pred_fallthru
    _
  // Predicated region
  $region10: #{_lambda_.19} parent=0 // pred_check
    _
  $region11: #{_lambda_.19} parent=0 // pred_check_branch
    %13 = sbr.rel (0) target = $region13
  $region12: #{_lambda_.19} parent=0 // pred_region
    _
  $region13: #{_lambda_.19} parent=0 // pred_fallthru
    _
  %v14 = vld [vmem:[%s0] sm:$0xff]
  %v15 = vld [vmem:[%s0 + $0x8] sm:$0xff]
  %v16 = vld [vmem:[%s0 + $0x10] sm:$0xff]
  %v17 = vld [vmem:[%s0 + $0x18] sm:$0xff]
  %v18 = vld [vmem:[%s1] sm:$0x3]
  %v20 = vlaneseq
  %v21 = vshrl.u32 %v20, 7
  %v22 = vsub.s32 0, %v21
  %v23 = vrot.slane %v18, %v22
  %v24 = vlaneseq
  %v25 = vshrl.u32 %v24, 7
  %v26 = vsub.s32 1, %v25
  %v27 = vrot.slane %v18, %v26
  %v30 = vmul.f32 %v14, %v23
  %v31 = vmul.f32 %v15, %v27
  %v32 = vmul.f32 %v16, %v23
  %v33 = vmul.f32 %v17, %v27
  %v34 = vld [vmem:[%s2] sm:$0x3]
  %v36 = vlaneseq
  %v37 = vshrl.u32 %v36, 7
  %v38 = vsub.s32 0, %v37
  %v39 = vrot.slane %v34, %v38
  %v40 = vlaneseq
  %v41 = vshrl.u32 %v40, 7
  %v42 = vsub.s32 1, %v41
  %v43 = vrot.slane %v34, %v42
  %v46 = vadd.f32 %v30, %v39
  %v47 = vadd.f32 %v31, %v43
  %v48 = vadd.f32 %v32, %v39
  %v49 = vadd.f32 %v33, %v43
  %v50 = vmax.f32 %v46, 0.0
  %v51 = vmax.f32 %v47, 0.0
  %v52 = vmax.f32 %v48, 0.0
  %v53 = vmax.f32 %v49, 0.0
  %v54 = vpack.c.bf16 %v52, %v50
  %v55 = vpack.c.bf16 %v53, %v51
  %v58 = vunpack.c.l.b16 %v54
  %v59 = vunpack.c.l.b16 %v55
  %v60 = vunpack.c.h.b16 %v54
  %v61 = vunpack.c.h.b16 %v55
  %v62 = vpack.c.b16 %v59, %v58
  %v63 = vpack.c.b16 %v61, %v60
  %66 = vst [vmem:[%s3] sm:$0xff] %v62
  %67 = vst [vmem:[%s3 + $0x8] sm:$0xff] %v63
  // Predicated region
  $region14: #{_lambda_.19} parent=0 // pred_check
    _
  $region15: #{_lambda_.19} parent=0 // pred_check_branch
    %69 = sbr.rel (0) target = $region17
  $region16: #{_lambda_.19} parent=0 // pred_region
    _
  $region17: #{_lambda_.19} parent=0 // pred_fallthru
    _
  // Predicated region
  $region18: #{_lambda_.19} parent=0 // pred_check
    _
  $region19: #{_lambda_.19} parent=0 // pred_check_branch
    %71 = sbr.rel (0) target = $region21
  $region20: #{_lambda_.19} parent=0 // pred_region
    _
  $region21: #{_lambda_.19} parent=0 // pred_fallthru
    _

// kernel: _lambda_.20
$region0: #{_lambda_.20}
  #allocation0 [shape = 'u32[]', space=smem, size = 0x4, offset = 0x4, fixed_abs, tag = 'smem constant byte address 0x4 - core index']
  #allocation1 [shape = 'u32[144,128]{1,0:T(1,128)}', space=vmem, size = 0x12000, scoped, tag = 'internal scratch']
  %s0 = inlined_call_operand.vmem [shape: bf16[128,32], index: 0, kind: input, shape index: {}]
  %s1 = inlined_call_operand.vmem [shape: bf16[32,256], index: 1, kind: input, shape index: {}]
  %s2 = inlined_call_operand.vmem [shape: f32[128,256], index: 2, kind: output, shape index: {}]
  %s3 = sld [smem:[#allocation0]]
  $region41: #{_lambda_.20} parent=0
    _
  %s5 = ssub.s32 1, %s3
  %s6 = scalar_select 0, %s5, %s3
  loop: start=0, step=1, limit=4
  $region2: #{_lambda_.20} parent=0 // loop_pre_header
    _
  $region3: #{_lambda_.20} parent=0 // loop_header
    %s8 = sphi 0, %s12
    %p9 = scmp.ge.s32.totalorder %s8, 4
    %s15 = sphi 0, %s27
    %s16 = sphi 0, %s23
    %s17 = sphi 0, %s15
    %s18 = sphi 0, %s16
    %s19 = sphi 0, %s17
    %s20 = sphi 0, %s18
    %s30 = sphi 0, %s32
    %s33 = sphi 0, %s30
    %s34 = sphi 0, %s33
    %s50 = sphi 0, %s34
    %s56 = sphi 0, %s58
    %s59 = sphi 0, %s56
    %s60 = sphi 0, %s59
    %s76 = sphi 0, %s60
    %s84 = sphi 0, %s86
    %s87 = sphi 0, %s84
    %s88 = sphi 0, %s87
    %s104 = sphi 0, %s88
  $region4: #{_lambda_.20} parent=0 // loop_header_branch
    %11 = sbr.rel (%p9) target = $region8
  $region5: #{_lambda_.20} parent=0 // loop_body
    %s13 = ssub.s32 %s8, 1
    %s14 = ssub.s32 %s8, 2
    %s21 = sadd.s32 1, %s16
    %p22 = scmp.ge.s32.totalorder %s21, 1
    %s23 = scalar_select %p22, 0, %s21
    %s24 = sadd.s32 1, %s15
    %s25 = scalar_select %p22, %s24, %s15
    %p26 = scmp.ge.s32.totalorder %s25, 2
    %s27 = scalar_select %p26, 0, %s25
    %s28 = ssub.s32 %s15, %s27
    %p29 = scmp.eq.s32.totalorder %s28, 0
    %s31 = sadd.s32 %s30, 1
    %s32 = scalar_select %p29, %s30, %s31
    %p35 = pneg %p29
    %p36 = scmp.eq.s32.totalorder %s8, 1
    %p37 = por %p35, %p36
    %p38 = scmp.ne.s32.totalorder %s30, %s33
    %p39 = scmp.eq.s32.totalorder %s8, 0
    %p40 = por %p38, %p39
    %p41 = scmp.ne.s32.totalorder %s30, %s33
    %p42 = scmp.eq.s32.totalorder %s13, 1
    %p43 = por %p41, %p42
    %p44 = scmp.ne.s32.totalorder %s33, %s34
    %p45 = scmp.eq.s32.totalorder %s13, 0
    %p46 = por %p44, %p45
    %p47 = scmp.ne.s32.totalorder %s33, %s34
    %p48 = scmp.eq.s32.totalorder %s14, 1
    %p49 = por %p47, %p48
    %p51 = scmp.ne.s32.totalorder %s34, %s50
    %p52 = scmp.eq.s32.totalorder %s14, 0
    %p53 = por %p51, %p52
    %s54 = ssub.s32 %s16, %s23
    %p55 = scmp.eq.s32.totalorder %s54, 0
    %s57 = sadd.s32 %s56, 1
    %s58 = scalar_select %p55, %s56, %s57
    %p61 = pneg %p55
    %p62 = scmp.eq.s32.totalorder %s8, 1
    %p63 = por %p61, %p62
    %p64 = scmp.ne.s32.totalorder %s56, %s59
    %p65 = scmp.eq.s32.totalorder %s8, 0
    %p66 = por %p64, %p65
    %p67 = scmp.ne.s32.totalorder %s56, %s59
    %p68 = scmp.eq.s32.totalorder %s13, 1
    %p69 = por %p67, %p68
    %p70 = scmp.ne.s32.totalorder %s59, %s60
    %p71 = scmp.eq.s32.totalorder %s13, 0
    %p72 = por %p70, %p71
    %p73 = scmp.ne.s32.totalorder %s59, %s60
    %p74 = scmp.eq.s32.totalorder %s14, 1
    %p75 = por %p73, %p74
    %p77 = scmp.ne.s32.totalorder %s60, %s76
    %p78 = scmp.eq.s32.totalorder %s14, 0
    %p79 = por %p77, %p78
    %s80 = ssub.s32 %s15, %s27
    %s81 = ssub.s32 %s16, %s23
    %s82 = sor.u32 %s80, %s81
    %p83 = scmp.eq.s32.totalorder %s82, 0
    %s85 = sadd.s32 %s84, 1
    %s86 = scalar_select %p83, %s84, %s85
    %p89 = pneg %p83
    %p90 = scmp.eq.s32.totalorder %s8, 1
    %p91 = por %p89, %p90
    %p92 = scmp.ne.s32.totalorder %s84, %s87
    %p93 = scmp.eq.s32.totalorder %s8, 0
    %p94 = por %p92, %p93
    %p95 = scmp.ne.s32.totalorder %s84, %s87
    %p96 = scmp.eq.s32.totalorder %s13, 1
    %p97 = por %p95, %p96
    %p98 = scmp.ne.s32.totalorder %s87, %s88
    %p99 = scmp.eq.s32.totalorder %s13, 0
    %p100 = por %p98, %p99
    %p101 = scmp.ne.s32.totalorder %s87, %s88
    %p102 = scmp.eq.s32.totalorder %s14, 1
    %p103 = por %p101, %p102
    %p105 = scmp.ne.s32.totalorder %s88, %s104
    %p106 = scmp.eq.s32.totalorder %s14, 0
    %p107 = por %p105, %p106
    %p108 = scmp.le.s32.totalorder 1, %s8
    %p109 = scmp.lt.s32.totalorder %s8, 3
    %p110 = pnand %p108, %p109
    %p111 = pneg %p110
    // Predicated region
    $region9: #{_lambda_.20} parent=5 // pred_check
      _
    $region10: #{_lambda_.20} parent=5 // pred_check_branch
      %113 = sbr.rel (%p110) target = $region12
    $region11: #{_lambda_.20} parent=5 // pred_region
      %s114 = ssub.s32 %s8, 1
      // Predicated region
      $region13: #{_lambda_.20} parent=11 // pred_check
        %p115 = pneg %p72
      $region14: #{_lambda_.20} parent=11 // pred_check_branch
        %117 = sbr.rel (%p115) target = $region16
      $region15: #{_lambda_.20} parent=11 // pred_region
        %s118 = smul.u32 2, %s18
        %p119 = scmp.lt.s32.totalorder %s118, 1
        %s120 = scalar_select %p119, %s118, 1
        %s121 = smul.addr %s120, 4
        %s122 = scalar_lea.vmem %s1, %s121
        %s123 = smul.u32 2, %s18
      $region16: #{_lambda_.20} parent=11 // pred_fallthru
        _
    $region12: #{_lambda_.20} parent=5 // pred_fallthru
      _
    %p124 = scmp.lt.s32.totalorder %s8, 2
    // Predicated region
    $region17: #{_lambda_.20} parent=5 // pred_check
      %p125 = pneg %p124
    $region18: #{_lambda_.20} parent=5 // pred_check_branch
      %127 = sbr.rel (%p125) target = $region20
    $region19: #{_lambda_.20} parent=5 // pred_region
      // Predicated region
      $region21: #{_lambda_.20} parent=19 // pred_check
        %p128 = pneg %p40
      $region22: #{_lambda_.20} parent=19 // pred_check_branch
        %130 = sbr.rel (%p128) target = $region24
      $region23: #{_lambda_.20} parent=19 // pred_region
        %s131 = smul.u32 8, %s15
        %p132 = scmp.lt.s32.totalorder %s131, 15
        %s133 = scalar_select %p132, %s131, 15
        %s134 = smul.addr %s133, 4
        %s135 = scalar_lea.vmem %s0, %s134
        %s136 = smul.u32 8, %s15
      $region24: #{_lambda_.20} parent=19 // pred_fallthru
        _
    $region20: #{_lambda_.20} parent=5 // pred_fallthru
      _
    %p137 = scmp.le.s32.totalorder 1, %s8
    %p138 = scmp.lt.s32.totalorder %s8, 3
    %p139 = pnand %p137, %p138
    %p140 = pneg %p139
    // Predicated region
    $region25: #{_lambda_.20} parent=5 // pred_check
      _
    $region26: #{_lambda_.20} parent=5 // pred_check_branch
      %142 = sbr.rel (%p139) target = $region28
    $region27: #{_lambda_.20} parent=5 // pred_region
      %s143 = ssub.s32 %s8, 1
      %s144 = smul.u32 8, %s17
      %p145 = scmp.lt.s32.totalorder %s144, 15
      %s146 = scalar_select %p145, %s144, 15
      %s147 = smul.addr %s146, 4
      %s148 = scalar_lea.vmem %s0, %s147
      %p149 = pneg %p46
      %p150 = pneg %p43
      %s151 = smul.u32 2, %s18
      %p152 = scmp.lt.s32.totalorder %s151, 1
      %s153 = scalar_select %p152, %s151, 1
      %s154 = smul.addr %s153, 4
      %s155 = scalar_lea.vmem %s1, %s154
      %p156 = pneg %p72
      %p157 = pneg %p69
      %p158 = pneg %p100
      %p159 = pneg %p97
      %s160 = smul.u32 8, %s17
      %s161 = smul.u32 2, %s18
      %p162 = scmp.lt.s32.totalorder %s160, 15
      %s163 = scalar_select %p162, %s160, 15
      %p164 = scmp.lt.s32.totalorder %s161, 1
      %s165 = scalar_select %p164, %s161, 1
      %s166 = smul.addr %s163, 2
      %s167 = sadd.s32 %s165, %s166
      %s168 = smul.addr %s167, 8
      %s169 = scalar_lea.vmem %s2, %s168
      %s170 = smul.u32 8, %s17
      %p171 = scmp.lt.s32.totalorder %s170, 15
      %s172 = scalar_select %p171, %s170, 15
      %s173 = smul.addr %s172, 4
      %s174 = scalar_lea.vmem %s0, %s173
      %s175 = smul.u32 8, %s17
      %s176 = smul.u32 2, %s18
      %p177 = scmp.lt.s32.totalorder %s176, 1
      %s178 = scalar_select %p177, %s176, 1
      %s179 = smul.addr %s178, 4
      %s180 = scalar_lea.vmem %s1, %s179
      %s181 = smul.u32 2, %s18
      %s182 = smul.u32 8, %s17
      %s183 = smul.u32 2, %s18
      %p184 = scmp.lt.s32.totalorder %s182, 15
      %s185 = scalar_select %p184, %s182, 15
      %p186 = scmp.lt.s32.totalorder %s183, 1
      %s187 = scalar_select %p186, %s183, 1
      %s188 = smul.addr %s185, 2
      %s189 = sadd.s32 %s187, %s188
      %s190 = smul.addr %s189, 8
      %s191 = scalar_lea.vmem %s2, %s190
      %s192 = smul.u32 8, %s17
      %s193 = smul.u32 2, %s18
      %v195 = vld [vmem:[%s174] sm:$0xf]
      %v196 = vld [vmem:[%s174 + $0x4] sm:$0xf]
      %v197 = vld [vmem:[%s174 + $0x8] sm:$0xf]
      %v198 = vld [vmem:[%s174 + $0xc] sm:$0xf]
      %v199 = vld [vmem:[%s174 + $0x10] sm:$0xf]
      %v200 = vld [vmem:[%s174 + $0x14] sm:$0xf]
      %v201 = vld [vmem:[%s174 + $0x18] sm:$0xf]
      %v202 = vld [vmem:[%s174 + $0x1c] sm:$0xf]
      %v203 = vld [vmem:[%s180] sm:$0xff]
      %v204 = vld [vmem:[%s180 + $0x8] sm:$0xff]
      %v205 = vld [vmem:[%s180 + $0x10] sm:$0xff]
      %v206 = vld [vmem:[%s180 + $0x18] sm:$0xff]
      %v215 = vunpack.c.l.b16 %v195
      %v216 = vunpack.c.l.b16 %v196
      %v217 = vunpack.c.l.b16 %v197
      %v218 = vunpack.c.l.b16 %v198
      %v219 = vunpack.c.l.b16 %v199
      %v220 = vunpack.c.l.b16 %v200
      %v221 = vunpack.c.l.b16 %v201
      %v222 = vunpack.c.l.b16 %v202
      %v223 = vpack.c.b16 %v216, %v215
      %v224 = vpack.c.b16 %v218, %v217
      %v225 = vpack.c.b16 %v220, %v219
      %v226 = vpack.c.b16 %v222, %v221
      %v231 = vunpack.c.l.b16 %v203
      %v232 = vunpack.c.h.b16 %v203
      %v233 = vunpack.c.l.b16 %v204
      %v234 = vunpack.c.h.b16 %v204
      %v235 = vunpack.c.l.b16 %v205
      %v236 = vunpack.c.h.b16 %v205
      %v237 = vunpack.c.l.b16 %v206
      %v238 = vunpack.c.h.b16 %v206
      %v239 = vpack.c.b16 %v233, %v231
      %v240 = vpack.c.b16 %v234, %v232
      %v241 = vpack.c.b16 %v237, %v235
      %v242 = vpack.c.b16 %v238, %v236
      %vm247 = vcmask 261120
      %v249 = vsel %vm247, %v223, 0
      %v252 = vsel %vm247, %v224, 0
      %v255 = vsel %vm247, %v225, 0
      %v258 = vsel %vm247, %v226, 0
      %260 = vmatprep.subr.bf16.mxu0 0
      %261 = vmatpush1.bf16.msra.mxu0 0
      %262 = vmatprep.subr.bf16.mxu0 0
      %263 = vmatpush1.bf16.msra.mxu0 0
      %264 = vmatprep.subr.bf16.mxu0 0
      %265 = vmatpush1.bf16.msra.mxu0 0
      %266 = vmatprep.subr.bf16.mxu0 0
      %267 = vmatpush1.bf16.msra.mxu0 0
      %268 = vmatprep.subr.bf16.mxu0 0
      %269 = vmatpush1.bf16.msra.mxu0 0
      %270 = vmatprep.subr.bf16.mxu0 0
      %271 = vmatpush1.bf16.msra.mxu0 0
      %272 = vmatprep.subr.bf16.mxu0 %v242
      %273 = vmatpush1.bf16.msra.mxu0 %v241
      %274 = vmatprep.subr.bf16.mxu0 %v240
      %275 = vmatpush1.bf16.msra.mxu0 %v239
      %276 = vmatprep.subr.bf16.mxu0 0
      %277 = vmatpush2.bf16.msra.mxu0 0
      %278 = vmatprep.subr.bf16.mxu0 0
      %279 = vmatpush2.bf16.msra.mxu0 0
      %280 = vmatprep.subr.bf16.mxu0 0
      %281 = vmatpush2.bf16.msra.mxu0 0
      %282 = vmatprep.subr.bf16.mxu0 0
      %283 = vmatpush2.bf16.msra.mxu0 0
      %284 = vmatprep.subr.bf16.mxu0 0
      %285 = vmatpush2.bf16.msra.mxu0 0
      %286 = vmatprep.subr.bf16.mxu0 0
      %287 = vmatpush2.bf16.msra.mxu0 0
      %288 = vmatprep.subr.bf16.mxu0 0
      %289 = vmatpush2.bf16.msra.mxu0 0
      %290 = vmatprep.subr.bf16.mxu0 0
      %291 = vmatpush2.bf16.msra.mxu0 0
      %292 = vmatprep.mubr.bf16.mxu0 0
      %293 = vmatmul.mubr.bf16.gmra.mxu0 %v249
      %v294 = vpop.f32.mrf.mxu0
      %v295 = vadd.f32 0.0, %v294
      %v296 = vpop.f32.mrf.mxu0
      %v297 = vadd.f32 0.0, %v296
      %v298 = vpop.f32.mrf.mxu0
      %v299 = vadd.f32 0.0, %v298
      %v300 = vpop.f32.mrf.mxu0
      %v301 = vadd.f32 0.0, %v300
      %302 = vmatprep.mubr.bf16.mxu0 0
      %303 = vmatmul.mubr.bf16.gmra.mxu0 %v252
      %v304 = vpop.f32.mrf.mxu0
      %v305 = vadd.f32 0.0, %v304
      %v306 = vpop.f32.mrf.mxu0
      %v307 = vadd.f32 0.0, %v306
      %v308 = vpop.f32.mrf.mxu0
      %v309 = vadd.f32 0.0, %v308
      %v310 = vpop.f32.mrf.mxu0
      %v311 = vadd.f32 0.0, %v310
      %312 = vmatprep.mubr.bf16.mxu0 0
      %313 = vmatmul.mubr.bf16.gmra.mxu0 %v255
      %v314 = vpop.f32.mrf.mxu0
      %v315 = vadd.f32 0.0, %v314
      %v316 = vpop.f32.mrf.mxu0
      %v317 = vadd.f32 0.0, %v316
      %v318 = vpop.f32.mrf.mxu0
      %v319 = vadd.f32 0.0, %v318
      %v320 = vpop.f32.mrf.mxu0
      %v321 = vadd.f32 0.0, %v320
      %322 = vmatprep.mubr.bf16.mxu0 0
      %323 = vmatmul.mubr.bf16.gmra.mxu0 %v258
      %v324 = vpop.f32.mrf.mxu0
      %v325 = vadd.f32 0.0, %v324
      %v326 = vpop.f32.mrf.mxu0
      %v327 = vadd.f32 0.0, %v326
      %v328 = vpop.f32.mrf.mxu0
      %v329 = vadd.f32 0.0, %v328
      %v330 = vpop.f32.mrf.mxu0
      %v331 = vadd.f32 0.0, %v330
      %332 = vdwg.mxu0
      %333 = vst [vmem:[%s191] sm:$0xff] %v295
      %334 = vst [vmem:[%s191 + $0x8] sm:$0xff] %v297
      %335 = vst [vmem:[%s191 + $0x10] sm:$0xff] %v299
      %336 = vst [vmem:[%s191 + $0x18] sm:$0xff] %v301
      %337 = vst [vmem:[%s191 + $0x20] sm:$0xff] %v305
      %338 = vst [vmem:[%s191 + $0x28] sm:$0xff] %v307
      %339 = vst [vmem:[%s191 + $0x30] sm:$0xff] %v309
      %340 = vst [vmem:[%s191 + $0x38] sm:$0xff] %v311
      %341 = vst [vmem:[%s191 + $0x40] sm:$0xff] %v315
      %342 = vst [vmem:[%s191 + $0x48] sm:$0xff] %v317
      %343 = vst [vmem:[%s191 + $0x50] sm:$0xff] %v319
      %344 = vst [vmem:[%s191 + $0x58] sm:$0xff] %v321
      %345 = vst [vmem:[%s191 + $0x60] sm:$0xff] %v325
      %346 = vst [vmem:[%s191 + $0x68] sm:$0xff] %v327
      %347 = vst [vmem:[%s191 + $0x70] sm:$0xff] %v329
      %348 = vst [vmem:[%s191 + $0x78] sm:$0xff] %v331
      %s349 = smul.u32 8, %s17
      %s350 = smul.u32 2, %s18
      %p351 = scmp.lt.s32.totalorder %s349, 15
      %s352 = scalar_select %p351, %s349, 15
      %p353 = scmp.lt.s32.totalorder %s350, 1
      %s354 = scalar_select %p353, %s350, 1
      %s355 = smul.addr %s352, 2
      %s356 = sadd.s32 %s354, %s355
      %s357 = smul.addr %s356, 8
      %s358 = scalar_lea.vmem %s2, %s357
      // Predicated region
      $region29: #{_lambda_.20} parent=27 // pred_check
        %p359 = pneg %p97
      $region30: #{_lambda_.20} parent=27 // pred_check_branch
        %361 = sbr.rel (%p359) target = $region32
      $region31: #{_lambda_.20} parent=27 // pred_region
        %s362 = smul.u32 8, %s17
        %s363 = smul.u32 2, %s18
      $region32: #{_lambda_.20} parent=27 // pred_fallthru
        _
    $region28: #{_lambda_.20} parent=5 // pred_fallthru
      _
    %p364 = scmp.le.s32.totalorder 2, %s8
    // Predicated region
    $region33: #{_lambda_.20} parent=5 // pred_check
      %p365 = pneg %p364
    $region34: #{_lambda_.20} parent=5 // pred_check_branch
      %367 = sbr.rel (%p365) target = $region36
    $region35: #{_lambda_.20} parent=5 // pred_region
      %s368 = ssub.s32 %s8, 2
      // Predicated region
      $region37: #{_lambda_.20} parent=35 // pred_check
        %p369 = pneg %p103
      $region38: #{_lambda_.20} parent=35 // pred_check_branch
        %371 = sbr.rel (%p369) target = $region40
      $region39: #{_lambda_.20} parent=35 // pred_region
        %s372 = smul.u32 8, %s19
        %s373 = smul.u32 2, %s20
        %p374 = scmp.lt.s32.totalorder %s372, 15
        %s375 = scalar_select %p374, %s372, 15
        %p376 = scmp.lt.s32.totalorder %s373, 1
        %s377 = scalar_select %p376, %s373, 1
        %s378 = smul.addr %s375, 2
        %s379 = sadd.s32 %s377, %s378
        %s380 = smul.addr %s379, 8
        %s381 = scalar_lea.vmem %s2, %s380
      $region40: #{_lambda_.20} parent=35 // pred_fallthru
        _
    $region36: #{_lambda_.20} parent=5 // pred_fallthru
      _
  $region6: #{_lambda_.20} parent=0 // loop_footer
    %s12 = sadd.s32 1, %s8
  $region7: #{_lambda_.20} parent=0 // loop_footer_branch
    %7 = sbr.rel target = $region3
  $region8: #{_lambda_.20} parent=0 // loop_exit
    _

// kernel: _lambda_.21
$region0: #{_lambda_.21}
  #allocation0 [shape = 'u32[]', space=smem, size = 0x4, offset = 0x4, fixed_abs, tag = 'smem constant byte address 0x4 - core index']
  #allocation1 [shape = 'u32[144,128]{1,0:T(1,128)}', space=vmem, size = 0x12000, scoped, tag = 'internal scratch']
  %s0 = inlined_call_operand.vmem [shape: f32[32,256], index: 0, kind: input, shape index: {}]
  %s1 = inlined_call_operand.vmem [shape: f32[1,256], index: 1, kind: output, shape index: {0}]
  %s2 = inlined_call_operand.vmem [shape: f32[1,256], index: 2, kind: output, shape index: {1}]
  %3 = xla_tuple %s1, %s2
  %s4 = sld [smem:[#allocation0]]
  $region49: #{_lambda_.21} parent=0
    _
  %s6 = ssub.s32 1, %s4
  %s7 = scalar_select 0, %s6, %s4
  loop: start=0, step=1, limit=4
  $region2: #{_lambda_.21} parent=0 // loop_pre_header
    _
  $region3: #{_lambda_.21} parent=0 // loop_header
    %s9 = sphi 0, %s13
    %p10 = scmp.ge.s32.totalorder %s9, 4
    %s19 = sphi 0, %s21
    %s22 = sphi 0, %s19
    %s23 = sphi 0, %s22
    %s39 = sphi 0, %s23
    %s43 = sphi 0, %s43
    %s45 = sphi 0, %s43
    %s46 = sphi 0, %s45
    %s60 = sphi 0, %s46
    %s64 = sphi 0, %s64
    %s66 = sphi 0, %s64
    %s67 = sphi 0, %s66
    %s81 = sphi 0, %s67
  $region4: #{_lambda_.21} parent=0 // loop_header_branch
    %12 = sbr.rel (%p10) target = $region8
  $region5: #{_lambda_.21} parent=0 // loop_body
    %s14 = ssub.s32 %s9, 1
    %s15 = ssub.s32 %s9, 2
    %s16 = sadd.s32 %s9, 1
    %s17 = ssub.s32 %s9, %s16
    %p18 = scmp.eq.s32.totalorder %s17, 0
    %s20 = sadd.s32 %s19, 1
    %s21 = scalar_select %p18, %s19, %s20
    %p24 = pneg %p18
    %p25 = scmp.eq.s32.totalorder %s9, 1
    %p26 = por %p24, %p25
    %p27 = scmp.ne.s32.totalorder %s19, %s22
    %p28 = scmp.eq.s32.totalorder %s9, 0
    %p29 = por %p27, %p28
    %p30 = scmp.ne.s32.totalorder %s19, %s22
    %p31 = scmp.eq.s32.totalorder %s14, 1
    %p32 = por %p30, %p31
    %p33 = scmp.ne.s32.totalorder %s22, %s23
    %p34 = scmp.eq.s32.totalorder %s14, 0
    %p35 = por %p33, %p34
    %p36 = scmp.ne.s32.totalorder %s22, %s23
    %p37 = scmp.eq.s32.totalorder %s15, 1
    %p38 = por %p36, %p37
    %p40 = scmp.ne.s32.totalorder %s23, %s39
    %p41 = scmp.eq.s32.totalorder %s15, 0
    %p42 = por %p40, %p41
    %s44 = sadd.s32 %s43, 1
    %p47 = scmp.eq.s32.totalorder %s9, 1
    %p48 = scmp.ne.s32.totalorder %s43, %s45
    %p49 = scmp.eq.s32.totalorder %s9, 0
    %p50 = por %p48, %p49
    %p51 = scmp.ne.s32.totalorder %s43, %s45
    %p52 = scmp.eq.s32.totalorder %s14, 1
    %p53 = por %p51, %p52
    %p54 = scmp.ne.s32.totalorder %s45, %s46
    %p55 = scmp.eq.s32.totalorder %s14, 0
    %p56 = por %p54, %p55
    %p57 = scmp.ne.s32.totalorder %s45, %s46
    %p58 = scmp.eq.s32.totalorder %s15, 1
    %p59 = por %p57, %p58
    %p61 = scmp.ne.s32.totalorder %s46, %s60
    %p62 = scmp.eq.s32.totalorder %s15, 0
    %p63 = por %p61, %p62
    %s65 = sadd.s32 %s64, 1
    %p68 = scmp.eq.s32.totalorder %s9, 1
    %p69 = scmp.ne.s32.totalorder %s64, %s66
    %p70 = scmp.eq.s32.totalorder %s9, 0
    %p71 = por %p69, %p70
    %p72 = scmp.ne.s32.totalorder %s64, %s66
    %p73 = scmp.eq.s32.totalorder %s14, 1
    %p74 = por %p72, %p73
    %p75 = scmp.ne.s32.totalorder %s66, %s67
    %p76 = scmp.eq.s32.totalorder %s14, 0
    %p77 = por %p75, %p76
    %p78 = scmp.ne.s32.totalorder %s66, %s67
    %p79 = scmp.eq.s32.totalorder %s15, 1
    %p80 = por %p78, %p79
    %p82 = scmp.ne.s32.totalorder %s67, %s81
    %p83 = scmp.eq.s32.totalorder %s15, 0
    %p84 = por %p82, %p83
    %p85 = scmp.le.s32.totalorder 1, %s9
    %p86 = scmp.lt.s32.totalorder %s9, 3
    %p87 = pnand %p85, %p86
    %p88 = pneg %p87
    // Predicated region
    $region9: #{_lambda_.21} parent=5 // pred_check
      _
    $region10: #{_lambda_.21} parent=5 // pred_check_branch
      %90 = sbr.rel (%p87) target = $region12
    $region11: #{_lambda_.21} parent=5 // pred_region
      %s91 = ssub.s32 %s9, 1
    $region12: #{_lambda_.21} parent=5 // pred_fallthru
      _
    %p92 = scmp.lt.s32.totalorder %s9, 2
    // Predicated region
    $region13: #{_lambda_.21} parent=5 // pred_check
      %p93 = pneg %p92
    $region14: #{_lambda_.21} parent=5 // pred_check_branch
      %95 = sbr.rel (%p93) target = $region16
    $region15: #{_lambda_.21} parent=5 // pred_region
      // Predicated region
      $region17: #{_lambda_.21} parent=15 // pred_check
        %p96 = pneg %p29
      $region18: #{_lambda_.21} parent=15 // pred_check_branch
        %98 = sbr.rel (%p96) target = $region20
      $region19: #{_lambda_.21} parent=15 // pred_region
        %s99 = smul.u32 2, %s9
        %p100 = scmp.lt.s32.totalorder %s99, 3
        %s101 = scalar_select %p100, %s99, 3
        %s102 = smul.addr %s101, 2
        %s103 = smul.addr %s102, 8
        %s104 = scalar_lea.vmem %s0, %s103
        %s105 = smul.u32 2, %s9
      $region20: #{_lambda_.21} parent=15 // pred_fallthru
        _
    $region16: #{_lambda_.21} parent=5 // pred_fallthru
      _
    %p106 = scmp.le.s32.totalorder 1, %s9
    %p107 = scmp.lt.s32.totalorder %s9, 3
    %p108 = pnand %p106, %p107
    %p109 = pneg %p108
    // Predicated region
    $region21: #{_lambda_.21} parent=5 // pred_check
      _
    $region22: #{_lambda_.21} parent=5 // pred_check_branch
      %111 = sbr.rel (%p108) target = $region24
    $region23: #{_lambda_.21} parent=5 // pred_region
      %s112 = ssub.s32 %s9, 1
      %s113 = smul.u32 2, %s14
      %p114 = scmp.lt.s32.totalorder %s113, 3
      %s115 = scalar_select %p114, %s113, 3
      %s116 = smul.addr %s115, 2
      %s117 = smul.addr %s116, 8
      %s118 = scalar_lea.vmem %s0, %s117
      %p119 = pneg %p35
      %p120 = pneg %p32
      %p121 = pneg %p56
      %p122 = pneg %p53
      %p123 = pneg %p77
      %p124 = pneg %p74
      %s125 = smul.u32 2, %s14
      %p126 = scmp.lt.s32.totalorder %s125, 3
      %s127 = scalar_select %p126, %s125, 3
      %s128 = smul.addr %s127, 2
      %s129 = smul.addr %s128, 8
      %s130 = scalar_lea.vmem %s0, %s129
      %s131 = smul.u32 2, %s14
      %p132 = scmp.eq.s32.totalorder %s14, 0
      // Predicated region
      $region25: #{_lambda_.21} parent=23 // pred_check
        %p133 = pneg %p132
      $region26: #{_lambda_.21} parent=23 // pred_check_branch
        %135 = sbr.rel (%p133) target = $region28
      $region27: #{_lambda_.21} parent=23 // pred_region
        %v136 = vlaneseq
        %vm137 = vcmp.ge.s32.totalorder %v136, 0
        %vm138 = vcmp.lt.s32.totalorder %v136, 256
        %vm139 = vmand %vm137, %vm138
        %140 = vst.msk [vmem:[%s1] sm:$0x3] %vm139, 0.0
        %141 = vst.msk [vmem:[%s2] sm:$0x3] %vm139, 0.0
      $region28: #{_lambda_.21} parent=23 // pred_fallthru
        _
      %v142 = vld [vmem:[%s130] sm:$0xff]
      %v143 = vld [vmem:[%s130 + $0x8] sm:$0xff]
      %v144 = vld [vmem:[%s130 + $0x10] sm:$0xff]
      %v145 = vld [vmem:[%s130 + $0x18] sm:$0xff]
      %v146 = vld [vmem:[%s1] sm:$0x3]
      %v147 = vadd.f32 %v142, %v144
      %v148 = vrot.slane %v147, 4
      %v149 = vadd.f32 %v147, %v148
      %v150 = vrot.slane %v149, 2
      %v151 = vadd.f32 %v149, %v150
      %v152 = vrot.slane %v151, 1
      %v153 = vadd.f32 %v151, %v152
      %v154 = vadd.f32 %v143, %v145
      %v155 = vrot.slane %v154, 4
      %v156 = vadd.f32 %v154, %v155
      %v157 = vrot.slane %v156, 2
      %v158 = vadd.f32 %v156, %v157
      %v159 = vrot.slane %v158, 1
      %v160 = vadd.f32 %v158, %v159
      %v163 = vcombine.low %v153, %v160
      %v165 = vunpack.c.l.s4 1966171168
      %v166 = vunpack.c.0.s8 %v165
      %v167 = vlaneseq
      %v168 = vshrl.u32 %v167, 7
      %v169 = vsub.s32 %v166, %v168
      %v170 = vrot.slane %v163, %v169
      %v172 = vunpack.c.l.s4 1966171168
      %v173 = vunpack.c.0.s8 %v172
      %v174 = vlaneseq
      %v175 = vshrl.u32 %v174, 7
      %v176 = vsub.s32 %v173, %v175
      %v177 = vrot.slane %v170, %v176
      %v179 = vadd.f32 %v146, %v177
      %v180 = vlaneseq
      %vm181 = vcmp.ge.s32.totalorder %v180, 0
      %vm182 = vcmp.lt.s32.totalorder %v180, 256
      %vm183 = vmand %vm181, %vm182
      %184 = vst.msk [vmem:[%s1] sm:$0x3] %vm183, %v179
      %v185 = vld [vmem:[%s2] sm:$0x3]
      %v186 = vmul.f32 %v142, %v142
      %v187 = vmul.f32 %v143, %v143
      %v188 = vmul.f32 %v144, %v144
      %v189 = vmul.f32 %v145, %v145
      %v190 = vadd.f32 %v186, %v188
      %v191 = vrot.slane %v190, 4
      %v192 = vadd.f32 %v190, %v191
      %v193 = vrot.slane %v192, 2
      %v194 = vadd.f32 %v192, %v193
      %v195 = vrot.slane %v194, 1
      %v196 = vadd.f32 %v194, %v195
      %v197 = vadd.f32 %v187, %v189
      %v198 = vrot.slane %v197, 4
      %v199 = vadd.f32 %v197, %v198
      %v200 = vrot.slane %v199, 2
      %v201 = vadd.f32 %v199, %v200
      %v202 = vrot.slane %v201, 1
      %v203 = vadd.f32 %v201, %v202
      %v206 = vcombine.low %v196, %v203
      %v208 = vunpack.c.l.s4 1966171168
      %v209 = vunpack.c.0.s8 %v208
      %v210 = vlaneseq
      %v211 = vshrl.u32 %v210, 7
      %v212 = vsub.s32 %v209, %v211
      %v213 = vrot.slane %v206, %v212
      %v215 = vunpack.c.l.s4 1966171168
      %v216 = vunpack.c.0.s8 %v215
      %v217 = vlaneseq
      %v218 = vshrl.u32 %v217, 7
      %v219 = vsub.s32 %v216, %v218
      %v220 = vrot.slane %v213, %v219
      %v222 = vadd.f32 %v185, %v220
      %223 = vst.msk [vmem:[%s2] sm:$0x3] %vm183, %v222
      // Predicated region
      $region29: #{_lambda_.21} parent=23 // pred_check
        %p224 = pneg %p53
      $region30: #{_lambda_.21} parent=23 // pred_check_branch
        %226 = sbr.rel (%p224) target = $region32
      $region31: #{_lambda_.21} parent=23 // pred_region
        _
      $region32: #{_lambda_.21} parent=23 // pred_fallthru
        _
      // Predicated region
      $region33: #{_lambda_.21} parent=23 // pred_check
        %p227 = pneg %p74
      $region34: #{_lambda_.21} parent=23 // pred_check_branch
        %229 = sbr.rel (%p227) target = $region36
      $region35: #{_lambda_.21} parent=23 // pred_region
        _
      $region36: #{_lambda_.21} parent=23 // pred_fallthru
        _
      // Predicated region
      $region37: #{_lambda_.21} parent=23 // pred_check
        %p230 = pneg %p53
      $region38: #{_lambda_.21} parent=23 // pred_check_branch
        %232 = sbr.rel (%p230) target = $region40
      $region39: #{_lambda_.21} parent=23 // pred_region
        _
      $region40: #{_lambda_.21} parent=23 // pred_fallthru
        _
      // Predicated region
      $region41: #{_lambda_.21} parent=23 // pred_check
        %p233 = pneg %p74
      $region42: #{_lambda_.21} parent=23 // pred_check_branch
        %235 = sbr.rel (%p233) target = $region44
      $region43: #{_lambda_.21} parent=23 // pred_region
        _
      $region44: #{_lambda_.21} parent=23 // pred_fallthru
        _
    $region24: #{_lambda_.21} parent=5 // pred_fallthru
      _
    %p236 = scmp.le.s32.totalorder 2, %s9
    // Predicated region
    $region45: #{_lambda_.21} parent=5 // pred_check
      %p237 = pneg %p236
    $region46: #{_lambda_.21} parent=5 // pred_check_branch
      %239 = sbr.rel (%p237) target = $region48
    $region47: #{_lambda_.21} parent=5 // pred_region
      %s240 = ssub.s32 %s9, 2
    $region48: #{_lambda_.21} parent=5 // pred_fallthru
      _
  $region6: #{_lambda_.21} parent=0 // loop_footer
    %s13 = sadd.s32 1, %s9
  $region7: #{_lambda_.21} parent=0 // loop_footer_branch
    %8 = sbr.rel target = $region3
  $region8: #{_lambda_.21} parent=0 // loop_exit
    _

// kernel: _lambda_.22
$region0: #{_lambda_.22}
  #allocation0 [shape = 'u32[]', space=smem, size = 0x4, offset = 0x4, fixed_abs, tag = 'smem constant byte address 0x4 - core index']
  #allocation1 [shape = 'u32[144,128]{1,0:T(1,128)}', space=vmem, size = 0x12000, scoped, tag = 'internal scratch']
  %s0 = inlined_call_operand.vmem [shape: f32[32,256], index: 0, kind: input, shape index: {}]
  %s1 = inlined_call_operand.vmem [shape: f32[1,256], index: 1, kind: input, shape index: {}]
  %s2 = inlined_call_operand.vmem [shape: f32[1,256], index: 2, kind: input, shape index: {}]
  %s3 = inlined_call_operand.vmem [shape: bf16[32,256], index: 3, kind: output, shape index: {}]
  %s4 = sld [smem:[#allocation0]]
  $region45: #{_lambda_.22} parent=0
    _
  %s6 = ssub.s32 1, %s4
  %s7 = scalar_select 0, %s6, %s4
  loop: start=0, step=1, limit=4
  $region2: #{_lambda_.22} parent=0 // loop_pre_header
    _
  $region3: #{_lambda_.22} parent=0 // loop_header
    %s9 = sphi 0, %s13
    %p10 = scmp.ge.s32.totalorder %s9, 4
    %s19 = sphi 0, %s21
    %s22 = sphi 0, %s19
    %s23 = sphi 0, %s22
    %s39 = sphi 0, %s23
    %s43 = sphi 0, %s43
    %s45 = sphi 0, %s43
    %s46 = sphi 0, %s45
    %s60 = sphi 0, %s46
    %s64 = sphi 0, %s64
    %s66 = sphi 0, %s64
    %s67 = sphi 0, %s66
    %s81 = sphi 0, %s67
    %s87 = sphi 0, %s89
    %s90 = sphi 0, %s87
    %s91 = sphi 0, %s90
    %s107 = sphi 0, %s91
  $region4: #{_lambda_.22} parent=0 // loop_header_branch
    %12 = sbr.rel (%p10) target = $region8
  $region5: #{_lambda_.22} parent=0 // loop_body
    %s14 = ssub.s32 %s9, 1
    %s15 = ssub.s32 %s9, 2
    %s16 = sadd.s32 %s9, 1
    %s17 = ssub.s32 %s9, %s16
    %p18 = scmp.eq.s32.totalorder %s17, 0
    %s20 = sadd.s32 %s19, 1
    %s21 = scalar_select %p18, %s19, %s20
    %p24 = pneg %p18
    %p25 = scmp.eq.s32.totalorder %s9, 1
    %p26 = por %p24, %p25
    %p27 = scmp.ne.s32.totalorder %s19, %s22
    %p28 = scmp.eq.s32.totalorder %s9, 0
    %p29 = por %p27, %p28
    %p30 = scmp.ne.s32.totalorder %s19, %s22
    %p31 = scmp.eq.s32.totalorder %s14, 1
    %p32 = por %p30, %p31
    %p33 = scmp.ne.s32.totalorder %s22, %s23
    %p34 = scmp.eq.s32.totalorder %s14, 0
    %p35 = por %p33, %p34
    %p36 = scmp.ne.s32.totalorder %s22, %s23
    %p37 = scmp.eq.s32.totalorder %s15, 1
    %p38 = por %p36, %p37
    %p40 = scmp.ne.s32.totalorder %s23, %s39
    %p41 = scmp.eq.s32.totalorder %s15, 0
    %p42 = por %p40, %p41
    %s44 = sadd.s32 %s43, 1
    %p47 = scmp.eq.s32.totalorder %s9, 1
    %p48 = scmp.ne.s32.totalorder %s43, %s45
    %p49 = scmp.eq.s32.totalorder %s9, 0
    %p50 = por %p48, %p49
    %p51 = scmp.ne.s32.totalorder %s43, %s45
    %p52 = scmp.eq.s32.totalorder %s14, 1
    %p53 = por %p51, %p52
    %p54 = scmp.ne.s32.totalorder %s45, %s46
    %p55 = scmp.eq.s32.totalorder %s14, 0
    %p56 = por %p54, %p55
    %p57 = scmp.ne.s32.totalorder %s45, %s46
    %p58 = scmp.eq.s32.totalorder %s15, 1
    %p59 = por %p57, %p58
    %p61 = scmp.ne.s32.totalorder %s46, %s60
    %p62 = scmp.eq.s32.totalorder %s15, 0
    %p63 = por %p61, %p62
    %s65 = sadd.s32 %s64, 1
    %p68 = scmp.eq.s32.totalorder %s9, 1
    %p69 = scmp.ne.s32.totalorder %s64, %s66
    %p70 = scmp.eq.s32.totalorder %s9, 0
    %p71 = por %p69, %p70
    %p72 = scmp.ne.s32.totalorder %s64, %s66
    %p73 = scmp.eq.s32.totalorder %s14, 1
    %p74 = por %p72, %p73
    %p75 = scmp.ne.s32.totalorder %s66, %s67
    %p76 = scmp.eq.s32.totalorder %s14, 0
    %p77 = por %p75, %p76
    %p78 = scmp.ne.s32.totalorder %s66, %s67
    %p79 = scmp.eq.s32.totalorder %s15, 1
    %p80 = por %p78, %p79
    %p82 = scmp.ne.s32.totalorder %s67, %s81
    %p83 = scmp.eq.s32.totalorder %s15, 0
    %p84 = por %p82, %p83
    %s85 = ssub.s32 %s9, %s16
    %p86 = scmp.eq.s32.totalorder %s85, 0
    %s88 = sadd.s32 %s87, 1
    %s89 = scalar_select %p86, %s87, %s88
    %p92 = pneg %p86
    %p93 = scmp.eq.s32.totalorder %s9, 1
    %p94 = por %p92, %p93
    %p95 = scmp.ne.s32.totalorder %s87, %s90
    %p96 = scmp.eq.s32.totalorder %s9, 0
    %p97 = por %p95, %p96
    %p98 = scmp.ne.s32.totalorder %s87, %s90
    %p99 = scmp.eq.s32.totalorder %s14, 1
    %p100 = por %p98, %p99
    %p101 = scmp.ne.s32.totalorder %s90, %s91
    %p102 = scmp.eq.s32.totalorder %s14, 0
    %p103 = por %p101, %p102
    %p104 = scmp.ne.s32.totalorder %s90, %s91
    %p105 = scmp.eq.s32.totalorder %s15, 1
    %p106 = por %p104, %p105
    %p108 = scmp.ne.s32.totalorder %s91, %s107
    %p109 = scmp.eq.s32.totalorder %s15, 0
    %p110 = por %p108, %p109
    %p111 = scmp.le.s32.totalorder 1, %s9
    %p112 = scmp.lt.s32.totalorder %s9, 3
    %p113 = pnand %p111, %p112
    %p114 = pneg %p113
    // Predicated region
    $region9: #{_lambda_.22} parent=5 // pred_check
      _
    $region10: #{_lambda_.22} parent=5 // pred_check_branch
      %116 = sbr.rel (%p113) target = $region12
    $region11: #{_lambda_.22} parent=5 // pred_region
      %s117 = ssub.s32 %s9, 1
      // Predicated region
      $region13: #{_lambda_.22} parent=11 // pred_check
        %p118 = pneg %p56
      $region14: #{_lambda_.22} parent=11 // pred_check_branch
        %120 = sbr.rel (%p118) target = $region16
      $region15: #{_lambda_.22} parent=11 // pred_region
        _
      $region16: #{_lambda_.22} parent=11 // pred_fallthru
        _
      // Predicated region
      $region17: #{_lambda_.22} parent=11 // pred_check
        %p121 = pneg %p77
      $region18: #{_lambda_.22} parent=11 // pred_check_branch
        %123 = sbr.rel (%p121) target = $region20
      $region19: #{_lambda_.22} parent=11 // pred_region
        _
      $region20: #{_lambda_.22} parent=11 // pred_fallthru
        _
    $region12: #{_lambda_.22} parent=5 // pred_fallthru
      _
    %p124 = scmp.lt.s32.totalorder %s9, 2
    // Predicated region
    $region21: #{_lambda_.22} parent=5 // pred_check
      %p125 = pneg %p124
    $region22: #{_lambda_.22} parent=5 // pred_check_branch
      %127 = sbr.rel (%p125) target = $region24
    $region23: #{_lambda_.22} parent=5 // pred_region
      // Predicated region
      $region25: #{_lambda_.22} parent=23 // pred_check
        %p128 = pneg %p29
      $region26: #{_lambda_.22} parent=23 // pred_check_branch
        %130 = sbr.rel (%p128) target = $region28
      $region27: #{_lambda_.22} parent=23 // pred_region
        %s131 = smul.u32 2, %s9
        %p132 = scmp.lt.s32.totalorder %s131, 3
        %s133 = scalar_select %p132, %s131, 3
        %s134 = smul.addr %s133, 2
        %s135 = smul.addr %s134, 8
        %s136 = scalar_lea.vmem %s0, %s135
        %s137 = smul.u32 2, %s9
      $region28: #{_lambda_.22} parent=23 // pred_fallthru
        _
    $region24: #{_lambda_.22} parent=5 // pred_fallthru
      _
    %p138 = scmp.le.s32.totalorder 1, %s9
    %p139 = scmp.lt.s32.totalorder %s9, 3
    %p140 = pnand %p138, %p139
    %p141 = pneg %p140
    // Predicated region
    $region29: #{_lambda_.22} parent=5 // pred_check
      _
    $region30: #{_lambda_.22} parent=5 // pred_check_branch
      %143 = sbr.rel (%p140) target = $region32
    $region31: #{_lambda_.22} parent=5 // pred_region
      %s144 = ssub.s32 %s9, 1
      %s145 = smul.u32 2, %s14
      %p146 = scmp.lt.s32.totalorder %s145, 3
      %s147 = scalar_select %p146, %s145, 3
      %s148 = smul.addr %s147, 2
      %s149 = smul.addr %s148, 8
      %s150 = scalar_lea.vmem %s0, %s149
      %p151 = pneg %p35
      %p152 = pneg %p32
      %p153 = pneg %p56
      %p154 = pneg %p53
      %p155 = pneg %p77
      %p156 = pneg %p74
      %p157 = pneg %p103
      %p158 = pneg %p100
      %s159 = smul.u32 2, %s14
      %p160 = scmp.lt.s32.totalorder %s159, 3
      %s161 = scalar_select %p160, %s159, 3
      %s162 = smul.addr %s161, 2
      %s163 = smul.addr %s162, 4
      %s164 = scalar_lea.vmem %s3, %s163
      %s165 = smul.u32 2, %s14
      %p166 = scmp.lt.s32.totalorder %s165, 3
      %s167 = scalar_select %p166, %s165, 3
      %s168 = smul.addr %s167, 2
      %s169 = smul.addr %s168, 8
      %s170 = scalar_lea.vmem %s0, %s169
      %s171 = smul.u32 2, %s14
      %s172 = smul.u32 2, %s14
      %p173 = scmp.lt.s32.totalorder %s172, 3
      %s174 = scalar_select %p173, %s172, 3
      %s175 = smul.addr %s174, 2
      %s176 = smul.addr %s175, 4
      %s177 = scalar_lea.vmem %s3, %s176
      %s178 = smul.u32 2, %s14
      %v179 = vld [vmem:[%s170] sm:$0xff]
      %v180 = vld [vmem:[%s170 + $0x8] sm:$0xff]
      %v181 = vld [vmem:[%s170 + $0x10] sm:$0xff]
      %v182 = vld [vmem:[%s170 + $0x18] sm:$0xff]
      %v183 = vld [vmem:[%s1] sm:$0x3]
      %v185 = vlaneseq
      %v186 = vshrl.u32 %v185, 7
      %v187 = vsub.s32 0, %v186
      %v188 = vrot.slane %v183, %v187
      %v189 = vlaneseq
      %v190 = vshrl.u32 %v189, 7
      %v191 = vsub.s32 1, %v190
      %v192 = vrot.slane %v183, %v191
      %v195 = vmul.f32 %v179, %v188
      %v196 = vmul.f32 %v180, %v192
      %v197 = vmul.f32 %v181, %v188
      %v198 = vmul.f32 %v182, %v192
      %v199 = vld [vmem:[%s2] sm:$0x3]
      %v201 = vlaneseq
      %v202 = vshrl.u32 %v201, 7
      %v203 = vsub.s32 0, %v202
      %v204 = vrot.slane %v199, %v203
      %v205 = vlaneseq
      %v206 = vshrl.u32 %v205, 7
      %v207 = vsub.s32 1, %v206
      %v208 = vrot.slane %v199, %v207
      %v211 = vadd.f32 %v195, %v204
      %v212 = vadd.f32 %v196, %v208
      %v213 = vadd.f32 %v197, %v204
      %v214 = vadd.f32 %v198, %v208
      %v215 = vmax.f32 %v211, 0.0
      %v216 = vmax.f32 %v212, 0.0
      %v217 = vmax.f32 %v213, 0.0
      %v218 = vmax.f32 %v214, 0.0
      %v219 = vpack.c.bf16 %v217, %v215
      %v220 = vpack.c.bf16 %v218, %v216
      %v223 = vunpack.c.l.b16 %v219
      %v224 = vunpack.c.l.b16 %v220
      %v225 = vunpack.c.h.b16 %v219
      %v226 = vunpack.c.h.b16 %v220
      %v227 = vpack.c.b16 %v224, %v223
      %v228 = vpack.c.b16 %v226, %v225
      %231 = vst [vmem:[%s177] sm:$0xff] %v227
      %232 = vst [vmem:[%s177 + $0x8] sm:$0xff] %v228
      %s233 = smul.u32 2, %s14
      %p234 = scmp.lt.s32.totalorder %s233, 3
      %s235 = scalar_select %p234, %s233, 3
      %s236 = smul.addr %s235, 2
      %s237 = smul.addr %s236, 4
      %s238 = scalar_lea.vmem %s3, %s237
      // Predicated region
      $region33: #{_lambda_.22} parent=31 // pred_check
        %p239 = pneg %p100
      $region34: #{_lambda_.22} parent=31 // pred_check_branch
        %241 = sbr.rel (%p239) target = $region36
      $region35: #{_lambda_.22} parent=31 // pred_region
        %s242 = smul.u32 2, %s14
      $region36: #{_lambda_.22} parent=31 // pred_fallthru
        _
    $region32: #{_lambda_.22} parent=5 // pred_fallthru
      _
    %p243 = scmp.le.s32.totalorder 2, %s9
    // Predicated region
    $region37: #{_lambda_.22} parent=5 // pred_check
      %p244 = pneg %p243
    $region38: #{_lambda_.22} parent=5 // pred_check_branch
      %246 = sbr.rel (%p244) target = $region40
    $region39: #{_lambda_.22} parent=5 // pred_region
      %s247 = ssub.s32 %s9, 2
      // Predicated region
      $region41: #{_lambda_.22} parent=39 // pred_check
        %p248 = pneg %p106
      $region42: #{_lambda_.22} parent=39 // pred_check_branch
        %250 = sbr.rel (%p248) target = $region44
      $region43: #{_lambda_.22} parent=39 // pred_region
        %s251 = smul.u32 2, %s15
        %p252 = scmp.lt.s32.totalorder %s251, 3
        %s253 = scalar_select %p252, %s251, 3
        %s254 = smul.addr %s253, 2
        %s255 = smul.addr %s254, 4
        %s256 = scalar_lea.vmem %s3, %s255
      $region44: #{_lambda_.22} parent=39 // pred_fallthru
        _
    $region40: #{_lambda_.22} parent=5 // pred_fallthru
      _
  $region6: #{_lambda_.22} parent=0 // loop_footer
    %s13 = sadd.s32 1, %s9
  $region7: #{_lambda_.22} parent=0 // loop_footer_branch
    %8 = sbr.rel target = $region3
  $region8: #{_lambda_.22} parent=0 // loop_exit
    _

// kernel: _lambda_.23
$region0: #{_lambda_.23}
  #allocation0 [shape = 'u32[]', space=smem, size = 0x4, offset = 0x4, fixed_abs, tag = 'smem constant byte address 0x4 - core index']
  #allocation1 [shape = 'u32[144,128]{1,0:T(1,128)}', space=vmem, size = 0x12000, scoped, tag = 'internal scratch']
  %s0 = inlined_call_operand.vmem [shape: bf16[512,16], index: 0, kind: input, shape index: {}]
  %s1 = inlined_call_operand.vmem [shape: bf16[16,128], index: 1, kind: input, shape index: {}]
  %s2 = inlined_call_operand.vmem [shape: f32[512,128], index: 2, kind: output, shape index: {}]
  %s3 = sld [smem:[#allocation0]]
  $region41: #{_lambda_.23} parent=0
    _
  %s5 = ssub.s32 1, %s3
  %s6 = scalar_select 0, %s5, %s3
  loop: start=0, step=1, limit=4
  $region2: #{_lambda_.23} parent=0 // loop_pre_header
    _
  $region3: #{_lambda_.23} parent=0 // loop_header
    %s8 = sphi 0, %s12
    %p9 = scmp.ge.s32.totalorder %s8, 4
    %s15 = sphi 0, %s27
    %s16 = sphi 0, %s23
    %s17 = sphi 0, %s15
    %s18 = sphi 0, %s16
    %s19 = sphi 0, %s17
    %s20 = sphi 0, %s18
    %s30 = sphi 0, %s32
    %s33 = sphi 0, %s30
    %s34 = sphi 0, %s33
    %s50 = sphi 0, %s34
    %s56 = sphi 0, %s58
    %s59 = sphi 0, %s56
    %s60 = sphi 0, %s59
    %s76 = sphi 0, %s60
    %s84 = sphi 0, %s86
    %s87 = sphi 0, %s84
    %s88 = sphi 0, %s87
    %s104 = sphi 0, %s88
  $region4: #{_lambda_.23} parent=0 // loop_header_branch
    %11 = sbr.rel (%p9) target = $region8
  $region5: #{_lambda_.23} parent=0 // loop_body
    %s13 = ssub.s32 %s8, 1
    %s14 = ssub.s32 %s8, 2
    %s21 = sadd.s32 1, %s16
    %p22 = scmp.ge.s32.totalorder %s21, 1
    %s23 = scalar_select %p22, 0, %s21
    %s24 = sadd.s32 1, %s15
    %s25 = scalar_select %p22, %s24, %s15
    %p26 = scmp.ge.s32.totalorder %s25, 2
    %s27 = scalar_select %p26, 0, %s25
    %s28 = ssub.s32 %s15, %s27
    %p29 = scmp.eq.s32.totalorder %s28, 0
    %s31 = sadd.s32 %s30, 1
    %s32 = scalar_select %p29, %s30, %s31
    %p35 = pneg %p29
    %p36 = scmp.eq.s32.totalorder %s8, 1
    %p37 = por %p35, %p36
    %p38 = scmp.ne.s32.totalorder %s30, %s33
    %p39 = scmp.eq.s32.totalorder %s8, 0
    %p40 = por %p38, %p39
    %p41 = scmp.ne.s32.totalorder %s30, %s33
    %p42 = scmp.eq.s32.totalorder %s13, 1
    %p43 = por %p41, %p42
    %p44 = scmp.ne.s32.totalorder %s33, %s34
    %p45 = scmp.eq.s32.totalorder %s13, 0
    %p46 = por %p44, %p45
    %p47 = scmp.ne.s32.totalorder %s33, %s34
    %p48 = scmp.eq.s32.totalorder %s14, 1
    %p49 = por %p47, %p48
    %p51 = scmp.ne.s32.totalorder %s34, %s50
    %p52 = scmp.eq.s32.totalorder %s14, 0
    %p53 = por %p51, %p52
    %s54 = ssub.s32 %s16, %s23
    %p55 = scmp.eq.s32.totalorder %s54, 0
    %s57 = sadd.s32 %s56, 1
    %s58 = scalar_select %p55, %s56, %s57
    %p61 = pneg %p55
    %p62 = scmp.eq.s32.totalorder %s8, 1
    %p63 = por %p61, %p62
    %p64 = scmp.ne.s32.totalorder %s56, %s59
    %p65 = scmp.eq.s32.totalorder %s8, 0
    %p66 = por %p64, %p65
    %p67 = scmp.ne.s32.totalorder %s56, %s59
    %p68 = scmp.eq.s32.totalorder %s13, 1
    %p69 = por %p67, %p68
    %p70 = scmp.ne.s32.totalorder %s59, %s60
    %p71 = scmp.eq.s32.totalorder %s13, 0
    %p72 = por %p70, %p71
    %p73 = scmp.ne.s32.totalorder %s59, %s60
    %p74 = scmp.eq.s32.totalorder %s14, 1
    %p75 = por %p73, %p74
    %p77 = scmp.ne.s32.totalorder %s60, %s76
    %p78 = scmp.eq.s32.totalorder %s14, 0
    %p79 = por %p77, %p78
    %s80 = ssub.s32 %s15, %s27
    %s81 = ssub.s32 %s16, %s23
    %s82 = sor.u32 %s80, %s81
    %p83 = scmp.eq.s32.totalorder %s82, 0
    %s85 = sadd.s32 %s84, 1
    %s86 = scalar_select %p83, %s84, %s85
    %p89 = pneg %p83
    %p90 = scmp.eq.s32.totalorder %s8, 1
    %p91 = por %p89, %p90
    %p92 = scmp.ne.s32.totalorder %s84, %s87
    %p93 = scmp.eq.s32.totalorder %s8, 0
    %p94 = por %p92, %p93
    %p95 = scmp.ne.s32.totalorder %s84, %s87
    %p96 = scmp.eq.s32.totalorder %s13, 1
    %p97 = por %p95, %p96
    %p98 = scmp.ne.s32.totalorder %s87, %s88
    %p99 = scmp.eq.s32.totalorder %s13, 0
    %p100 = por %p98, %p99
    %p101 = scmp.ne.s32.totalorder %s87, %s88
    %p102 = scmp.eq.s32.totalorder %s14, 1
    %p103 = por %p101, %p102
    %p105 = scmp.ne.s32.totalorder %s88, %s104
    %p106 = scmp.eq.s32.totalorder %s14, 0
    %p107 = por %p105, %p106
    %p108 = scmp.le.s32.totalorder 1, %s8
    %p109 = scmp.lt.s32.totalorder %s8, 3
    %p110 = pnand %p108, %p109
    %p111 = pneg %p110
    // Predicated region
    $region9: #{_lambda_.23} parent=5 // pred_check
      _
    $region10: #{_lambda_.23} parent=5 // pred_check_branch
      %113 = sbr.rel (%p110) target = $region12
    $region11: #{_lambda_.23} parent=5 // pred_region
      %s114 = ssub.s32 %s8, 1
      // Predicated region
      $region13: #{_lambda_.23} parent=11 // pred_check
        %p115 = pneg %p72
      $region14: #{_lambda_.23} parent=11 // pred_check_branch
        %117 = sbr.rel (%p115) target = $region16
      $region15: #{_lambda_.23} parent=11 // pred_region
        %p118 = scmp.lt.s32.totalorder %s18, 0
        %s119 = scalar_select %p118, %s18, 0
        %s120 = smul.addr %s119, 4
        %s121 = scalar_lea.vmem %s1, %s120
      $region16: #{_lambda_.23} parent=11 // pred_fallthru
        _
    $region12: #{_lambda_.23} parent=5 // pred_fallthru
      _
    %p122 = scmp.lt.s32.totalorder %s8, 2
    // Predicated region
    $region17: #{_lambda_.23} parent=5 // pred_check
      %p123 = pneg %p122
    $region18: #{_lambda_.23} parent=5 // pred_check_branch
      %125 = sbr.rel (%p123) target = $region20
    $region19: #{_lambda_.23} parent=5 // pred_region
      // Predicated region
      $region21: #{_lambda_.23} parent=19 // pred_check
        %p126 = pneg %p40
      $region22: #{_lambda_.23} parent=19 // pred_check_branch
        %128 = sbr.rel (%p126) target = $region24
      $region23: #{_lambda_.23} parent=19 // pred_region
        %s129 = smul.u32 32, %s15
        %p130 = scmp.lt.s32.totalorder %s129, 63
        %s131 = scalar_select %p130, %s129, 63
        %s132 = smul.addr %s131, 4
        %s133 = scalar_lea.vmem %s0, %s132
        %s134 = smul.u32 32, %s15
      $region24: #{_lambda_.23} parent=19 // pred_fallthru
        _
    $region20: #{_lambda_.23} parent=5 // pred_fallthru
      _
    %p135 = scmp.le.s32.totalorder 1, %s8
    %p136 = scmp.lt.s32.totalorder %s8, 3
    %p137 = pnand %p135, %p136
    %p138 = pneg %p137
    // Predicated region
    $region25: #{_lambda_.23} parent=5 // pred_check
      _
    $region26: #{_lambda_.23} parent=5 // pred_check_branch
      %140 = sbr.rel (%p137) target = $region28
    $region27: #{_lambda_.23} parent=5 // pred_region
      %s141 = ssub.s32 %s8, 1
      %s142 = smul.u32 32, %s17
      %p143 = scmp.lt.s32.totalorder %s142, 63
      %s144 = scalar_select %p143, %s142, 63
      %s145 = smul.addr %s144, 4
      %s146 = scalar_lea.vmem %s0, %s145
      %p147 = pneg %p46
      %p148 = pneg %p43
      %p149 = scmp.lt.s32.totalorder %s18, 0
      %s150 = scalar_select %p149, %s18, 0
      %s151 = smul.addr %s150, 4
      %s152 = scalar_lea.vmem %s1, %s151
      %p153 = pneg %p72
      %p154 = pneg %p69
      %p155 = pneg %p100
      %p156 = pneg %p97
      %s157 = smul.u32 32, %s17
      %p158 = scmp.lt.s32.totalorder %s157, 63
      %s159 = scalar_select %p158, %s157, 63
      %p160 = scmp.lt.s32.totalorder %s18, 0
      %s161 = scalar_select %p160, %s18, 0
      %s162 = sadd.s32 %s161, %s159
      %s163 = smul.addr %s162, 8
      %s164 = scalar_lea.vmem %s2, %s163
      %s165 = smul.u32 32, %s17
      %p166 = scmp.lt.s32.totalorder %s165, 63
      %s167 = scalar_select %p166, %s165, 63
      %s168 = smul.addr %s167, 4
      %s169 = scalar_lea.vmem %s0, %s168
      %s170 = smul.u32 32, %s17
      %p171 = scmp.lt.s32.totalorder %s18, 0
      %s172 = scalar_select %p171, %s18, 0
      %s173 = smul.addr %s172, 4
      %s174 = scalar_lea.vmem %s1, %s173
      %s175 = smul.u32 32, %s17
      %p176 = scmp.lt.s32.totalorder %s175, 63
      %s177 = scalar_select %p176, %s175, 63
      %p178 = scmp.lt.s32.totalorder %s18, 0
      %s179 = scalar_select %p178, %s18, 0
      %s180 = sadd.s32 %s179, %s177
      %s181 = smul.addr %s180, 8
      %s182 = scalar_lea.vmem %s2, %s181
      %s183 = smul.u32 32, %s17
      %v185 = vld [vmem:[%s169] sm:$0xf]
      %v186 = vld [vmem:[%s169 + $0x4] sm:$0xf]
      %v187 = vld [vmem:[%s169 + $0x8] sm:$0xf]
      %v188 = vld [vmem:[%s169 + $0xc] sm:$0xf]
      %v189 = vld [vmem:[%s169 + $0x10] sm:$0xf]
      %v190 = vld [vmem:[%s169 + $0x14] sm:$0xf]
      %v191 = vld [vmem:[%s169 + $0x18] sm:$0xf]
      %v192 = vld [vmem:[%s169 + $0x1c] sm:$0xf]
      %v193 = vld [vmem:[%s169 + $0x20] sm:$0xf]
      %v194 = vld [vmem:[%s169 + $0x24] sm:$0xf]
      %v195 = vld [vmem:[%s169 + $0x28] sm:$0xf]
      %v196 = vld [vmem:[%s169 + $0x2c] sm:$0xf]
      %v197 = vld [vmem:[%s169 + $0x30] sm:$0xf]
      %v198 = vld [vmem:[%s169 + $0x34] sm:$0xf]
      %v199 = vld [vmem:[%s169 + $0x38] sm:$0xf]
      %v200 = vld [vmem:[%s169 + $0x3c] sm:$0xf]
      %v201 = vld [vmem:[%s169 + $0x40] sm:$0xf]
      %v202 = vld [vmem:[%s169 + $0x44] sm:$0xf]
      %v203 = vld [vmem:[%s169 + $0x48] sm:$0xf]
      %v204 = vld [vmem:[%s169 + $0x4c] sm:$0xf]
      %v205 = vld [vmem:[%s169 + $0x50] sm:$0xf]
      %v206 = vld [vmem:[%s169 + $0x54] sm:$0xf]
      %v207 = vld [vmem:[%s169 + $0x58] sm:$0xf]
      %v208 = vld [vmem:[%s169 + $0x5c] sm:$0xf]
      %v209 = vld [vmem:[%s169 + $0x60] sm:$0xf]
      %v210 = vld [vmem:[%s169 + $0x64] sm:$0xf]
      %v211 = vld [vmem:[%s169 + $0x68] sm:$0xf]
      %v212 = vld [vmem:[%s169 + $0x6c] sm:$0xf]
      %v213 = vld [vmem:[%s169 + $0x70] sm:$0xf]
      %v214 = vld [vmem:[%s169 + $0x74] sm:$0xf]
      %v215 = vld [vmem:[%s169 + $0x78] sm:$0xf]
      %v216 = vld [vmem:[%s169 + $0x7c] sm:$0xf]
      %v217 = vld [vmem:[%s174] sm:$0xf]
      %v218 = vld [vmem:[%s174 + $0x4] sm:$0xf]
      %v251 = vunpack.c.l.b16 %v185
      %v252 = vunpack.c.l.b16 %v186
      %v253 = vunpack.c.l.b16 %v187
      %v254 = vunpack.c.l.b16 %v188
      %v255 = vunpack.c.l.b16 %v189
      %v256 = vunpack.c.l.b16 %v190
      %v257 = vunpack.c.l.b16 %v191
      %v258 = vunpack.c.l.b16 %v192
      %v259 = vunpack.c.l.b16 %v193
      %v260 = vunpack.c.l.b16 %v194
      %v261 = vunpack.c.l.b16 %v195
      %v262 = vunpack.c.l.b16 %v196
      %v263 = vunpack.c.l.b16 %v197
      %v264 = vunpack.c.l.b16 %v198
      %v265 = vunpack.c.l.b16 %v199
      %v266 = vunpack.c.l.b16 %v200
      %v267 = vunpack.c.l.b16 %v201
      %v268 = vunpack.c.l.b16 %v202
      %v269 = vunpack.c.l.b16 %v203
      %v270 = vunpack.c.l.b16 %v204
      %v271 = vunpack.c.l.b16 %v205
      %v272 = vunpack.c.l.b16 %v206
      %v273 = vunpack.c.l.b16 %v207
      %v274 = vunpack.c.l.b16 %v208
      %v275 = vunpack.c.l.b16 %v209
      %v276 = vunpack.c.l.b16 %v210
      %v277 = vunpack.c.l.b16 %v211
      %v278 = vunpack.c.l.b16 %v212
      %v279 = vunpack.c.l.b16 %v213
      %v280 = vunpack.c.l.b16 %v214
      %v281 = vunpack.c.l.b16 %v215
      %v282 = vunpack.c.l.b16 %v216
      %v283 = vpack.c.b16 %v252, %v251
      %v284 = vpack.c.b16 %v254, %v253
      %v285 = vpack.c.b16 %v256, %v255
      %v286 = vpack.c.b16 %v258, %v257
      %v287 = vpack.c.b16 %v260, %v259
      %v288 = vpack.c.b16 %v262, %v261
      %v289 = vpack.c.b16 %v264, %v263
      %v290 = vpack.c.b16 %v266, %v265
      %v291 = vpack.c.b16 %v268, %v267
      %v292 = vpack.c.b16 %v270, %v269
      %v293 = vpack.c.b16 %v272, %v271
      %v294 = vpack.c.b16 %v274, %v273
      %v295 = vpack.c.b16 %v276, %v275
      %v296 = vpack.c.b16 %v278, %v277
      %v297 = vpack.c.b16 %v280, %v279
      %v298 = vpack.c.b16 %v282, %v281
      %v301 = vunpack.c.l.b16 %v217
      %v302 = vunpack.c.l.b16 %v218
      %v303 = vpack.c.b16 %v302, %v301
      %vm305 = vcmask 130048
      %v307 = vsel %vm305, %v283, 0
      %v310 = vsel %vm305, %v284, 0
      %v313 = vsel %vm305, %v285, 0
      %v316 = vsel %vm305, %v286, 0
      %v319 = vsel %vm305, %v287, 0
      %v322 = vsel %vm305, %v288, 0
      %v325 = vsel %vm305, %v289, 0
      %v328 = vsel %vm305, %v290, 0
      %v331 = vsel %vm305, %v291, 0
      %v334 = vsel %vm305, %v292, 0
      %v337 = vsel %vm305, %v293, 0
      %v340 = vsel %vm305, %v294, 0
      %v343 = vsel %vm305, %v295, 0
      %v346 = vsel %vm305, %v296, 0
      %v349 = vsel %vm305, %v297, 0
      %v352 = vsel %vm305, %v298, 0
      %354 = vmatprep.subr.bf16.mxu0 0
      %355 = vmatpush1.bf16.msra.mxu0 0
      %356 = vmatprep.subr.bf16.mxu0 0
      %357 = vmatpush1.bf16.msra.mxu0 0
      %358 = vmatprep.subr.bf16.mxu0 0
      %359 = vmatpush1.bf16.msra.mxu0 0
      %360 = vmatprep.subr.bf16.mxu0 0
      %361 = vmatpush1.bf16.msra.mxu0 0
      %362 = vmatprep.subr.bf16.mxu0 0
      %363 = vmatpush1.bf16.msra.mxu0 0
      %364 = vmatprep.subr.bf16.mxu0 0
      %365 = vmatpush1.bf16.msra.mxu0 0
      %366 = vmatprep.subr.bf16.mxu0 0
      %367 = vmatpush1.bf16.msra.mxu0 0
      %368 = vmatprep.subr.bf16.mxu0 0
      %369 = vmatpush1.bf16.msra.mxu0 %v303
      %370 = vmatprep.subr.bf16.mxu0 0
      %371 = vmatpush2.bf16.msra.mxu0 0
      %372 = vmatprep.subr.bf16.mxu0 0
      %373 = vmatpush2.bf16.msra.mxu0 0
      %374 = vmatprep.subr.bf16.mxu0 0
      %375 = vmatpush2.bf16.msra.mxu0 0
      %376 = vmatprep.subr.bf16.mxu0 0
      %377 = vmatpush2.bf16.msra.mxu0 0
      %378 = vmatprep.subr.bf16.mxu0 0
      %379 = vmatpush2.bf16.msra.mxu0 0
      %380 = vmatprep.subr.bf16.mxu0 0
      %381 = vmatpush2.bf16.msra.mxu0 0
      %382 = vmatprep.subr.bf16.mxu0 0
      %383 = vmatpush2.bf16.msra.mxu0 0
      %384 = vmatprep.subr.bf16.mxu0 0
      %385 = vmatpush2.bf16.msra.mxu0 0
      %386 = vmatprep.mubr.bf16.mxu0 0
      %387 = vmatmul.mubr.bf16.gmra.mxu0 %v307
      %v388 = vpop.f32.mrf.mxu0
      %v389 = vadd.f32 0.0, %v388
      %v390 = vpop.f32.mrf.mxu0
      %v391 = vpop.f32.mrf.mxu0
      %v392 = vadd.f32 0.0, %v391
      %v393 = vpop.f32.mrf.mxu0
      %394 = vmatprep.mubr.bf16.mxu0 0
      %395 = vmatmul.mubr.bf16.gmra.mxu0 %v310
      %v396 = vpop.f32.mrf.mxu0
      %v397 = vadd.f32 0.0, %v396
      %v398 = vpop.f32.mrf.mxu0
      %v399 = vpop.f32.mrf.mxu0
      %v400 = vadd.f32 0.0, %v399
      %v401 = vpop.f32.mrf.mxu0
      %402 = vmatprep.mubr.bf16.mxu0 0
      %403 = vmatmul.mubr.bf16.gmra.mxu0 %v313
      %v404 = vpop.f32.mrf.mxu0
      %v405 = vadd.f32 0.0, %v404
      %v406 = vpop.f32.mrf.mxu0
      %v407 = vpop.f32.mrf.mxu0
      %v408 = vadd.f32 0.0, %v407
      %v409 = vpop.f32.mrf.mxu0
      %410 = vmatprep.mubr.bf16.mxu0 0
      %411 = vmatmul.mubr.bf16.gmra.mxu0 %v316
      %v412 = vpop.f32.mrf.mxu0
      %v413 = vadd.f32 0.0, %v412
      %v414 = vpop.f32.mrf.mxu0
      %v415 = vpop.f32.mrf.mxu0
      %v416 = vadd.f32 0.0, %v415
      %v417 = vpop.f32.mrf.mxu0
      %418 = vmatprep.mubr.bf16.mxu0 0
      %419 = vmatmul.mubr.bf16.gmra.mxu0 %v319
      %v420 = vpop.f32.mrf.mxu0
      %v421 = vadd.f32 0.0, %v420
      %v422 = vpop.f32.mrf.mxu0
      %v423 = vpop.f32.mrf.mxu0
      %v424 = vadd.f32 0.0, %v423
      %v425 = vpop.f32.mrf.mxu0
      %426 = vmatprep.mubr.bf16.mxu0 0
      %427 = vmatmul.mubr.bf16.gmra.mxu0 %v322
      %v428 = vpop.f32.mrf.mxu0
      %v429 = vadd.f32 0.0, %v428
      %v430 = vpop.f32.mrf.mxu0
      %v431 = vpop.f32.mrf.mxu0
      %v432 = vadd.f32 0.0, %v431
      %v433 = vpop.f32.mrf.mxu0
      %434 = vmatprep.mubr.bf16.mxu0 0
      %435 = vmatmul.mubr.bf16.gmra.mxu0 %v325
      %v436 = vpop.f32.mrf.mxu0
      %v437 = vadd.f32 0.0, %v436
      %v438 = vpop.f32.mrf.mxu0
      %v439 = vpop.f32.mrf.mxu0
      %v440 = vadd.f32 0.0, %v439
      %v441 = vpop.f32.mrf.mxu0
      %442 = vmatprep.mubr.bf16.mxu0 0
      %443 = vmatmul.mubr.bf16.gmra.mxu0 %v328
      %v444 = vpop.f32.mrf.mxu0
      %v445 = vadd.f32 0.0, %v444
      %v446 = vpop.f32.mrf.mxu0
      %v447 = vpop.f32.mrf.mxu0
      %v448 = vadd.f32 0.0, %v447
      %v449 = vpop.f32.mrf.mxu0
      %450 = vmatprep.mubr.bf16.mxu0 0
      %451 = vmatmul.mubr.bf16.gmra.mxu0 %v331
      %v452 = vpop.f32.mrf.mxu0
      %v453 = vadd.f32 0.0, %v452
      %v454 = vpop.f32.mrf.mxu0
      %v455 = vpop.f32.mrf.mxu0
      %v456 = vadd.f32 0.0, %v455
      %v457 = vpop.f32.mrf.mxu0
      %458 = vmatprep.mubr.bf16.mxu0 0
      %459 = vmatmul.mubr.bf16.gmra.mxu0 %v334
      %v460 = vpop.f32.mrf.mxu0
      %v461 = vadd.f32 0.0, %v460
      %v462 = vpop.f32.mrf.mxu0
      %v463 = vpop.f32.mrf.mxu0
      %v464 = vadd.f32 0.0, %v463
      %v465 = vpop.f32.mrf.mxu0
      %466 = vmatprep.mubr.bf16.mxu0 0
      %467 = vmatmul.mubr.bf16.gmra.mxu0 %v337
      %v468 = vpop.f32.mrf.mxu0
      %v469 = vadd.f32 0.0, %v468
      %v470 = vpop.f32.mrf.mxu0
      %v471 = vpop.f32.mrf.mxu0
      %v472 = vadd.f32 0.0, %v471
      %v473 = vpop.f32.mrf.mxu0
      %474 = vmatprep.mubr.bf16.mxu0 0
      %475 = vmatmul.mubr.bf16.gmra.mxu0 %v340
      %v476 = vpop.f32.mrf.mxu0
      %v477 = vadd.f32 0.0, %v476
      %v478 = vpop.f32.mrf.mxu0
      %v479 = vpop.f32.mrf.mxu0
      %v480 = vadd.f32 0.0, %v479
      %v481 = vpop.f32.mrf.mxu0
      %482 = vmatprep.mubr.bf16.mxu0 0
      %483 = vmatmul.mubr.bf16.gmra.mxu0 %v343
      %v484 = vpop.f32.mrf.mxu0
      %v485 = vadd.f32 0.0, %v484
      %v486 = vpop.f32.mrf.mxu0
      %v487 = vpop.f32.mrf.mxu0
      %v488 = vadd.f32 0.0, %v487
      %v489 = vpop.f32.mrf.mxu0
      %490 = vmatprep.mubr.bf16.mxu0 0
      %491 = vmatmul.mubr.bf16.gmra.mxu0 %v346
      %v492 = vpop.f32.mrf.mxu0
      %v493 = vadd.f32 0.0, %v492
      %v494 = vpop.f32.mrf.mxu0
      %v495 = vpop.f32.mrf.mxu0
      %v496 = vadd.f32 0.0, %v495
      %v497 = vpop.f32.mrf.mxu0
      %498 = vmatprep.mubr.bf16.mxu0 0
      %499 = vmatmul.mubr.bf16.gmra.mxu0 %v349
      %v500 = vpop.f32.mrf.mxu0
      %v501 = vadd.f32 0.0, %v500
      %v502 = vpop.f32.mrf.mxu0
      %v503 = vpop.f32.mrf.mxu0
      %v504 = vadd.f32 0.0, %v503
      %v505 = vpop.f32.mrf.mxu0
      %506 = vmatprep.mubr.bf16.mxu0 0
      %507 = vmatmul.mubr.bf16.gmra.mxu0 %v352
      %v508 = vpop.f32.mrf.mxu0
      %v509 = vadd.f32 0.0, %v508
      %v510 = vpop.f32.mrf.mxu0
      %v511 = vpop.f32.mrf.mxu0
      %v512 = vadd.f32 0.0, %v511
      %v513 = vpop.f32.mrf.mxu0
      %514 = vdwg.mxu0
      %515 = vst [vmem:[%s182] sm:$0xff] %v389
      %516 = vst [vmem:[%s182 + $0x8] sm:$0xff] %v392
      %517 = vst [vmem:[%s182 + $0x10] sm:$0xff] %v397
      %518 = vst [vmem:[%s182 + $0x18] sm:$0xff] %v400
      %519 = vst [vmem:[%s182 + $0x20] sm:$0xff] %v405
      %520 = vst [vmem:[%s182 + $0x28] sm:$0xff] %v408
      %521 = vst [vmem:[%s182 + $0x30] sm:$0xff] %v413
      %522 = vst [vmem:[%s182 + $0x38] sm:$0xff] %v416
      %523 = vst [vmem:[%s182 + $0x40] sm:$0xff] %v421
      %524 = vst [vmem:[%s182 + $0x48] sm:$0xff] %v424
      %525 = vst [vmem:[%s182 + $0x50] sm:$0xff] %v429
      %526 = vst [vmem:[%s182 + $0x58] sm:$0xff] %v432
      %527 = vst [vmem:[%s182 + $0x60] sm:$0xff] %v437
      %528 = vst [vmem:[%s182 + $0x68] sm:$0xff] %v440
      %529 = vst [vmem:[%s182 + $0x70] sm:$0xff] %v445
      %530 = vst [vmem:[%s182 + $0x78] sm:$0xff] %v448
      %531 = vst [vmem:[%s182 + $0x80] sm:$0xff] %v453
      %532 = vst [vmem:[%s182 + $0x88] sm:$0xff] %v456
      %533 = vst [vmem:[%s182 + $0x90] sm:$0xff] %v461
      %534 = vst [vmem:[%s182 + $0x98] sm:$0xff] %v464
      %535 = vst [vmem:[%s182 + $0xa0] sm:$0xff] %v469
      %536 = vst [vmem:[%s182 + $0xa8] sm:$0xff] %v472
      %537 = vst [vmem:[%s182 + $0xb0] sm:$0xff] %v477
      %538 = vst [vmem:[%s182 + $0xb8] sm:$0xff] %v480
      %539 = vst [vmem:[%s182 + $0xc0] sm:$0xff] %v485
      %540 = vst [vmem:[%s182 + $0xc8] sm:$0xff] %v488
      %541 = vst [vmem:[%s182 + $0xd0] sm:$0xff] %v493
      %542 = vst [vmem:[%s182 + $0xd8] sm:$0xff] %v496
      %543 = vst [vmem:[%s182 + $0xe0] sm:$0xff] %v501
      %544 = vst [vmem:[%s182 + $0xe8] sm:$0xff] %v504
      %545 = vst [vmem:[%s182 + $0xf0] sm:$0xff] %v509
      %546 = vst [vmem:[%s182 + $0xf8] sm:$0xff] %v512
      %s547 = smul.u32 32, %s17
      %p548 = scmp.lt.s32.totalorder %s547, 63
      %s549 = scalar_select %p548, %s547, 63
      %p550 = scmp.lt.s32.totalorder %s18, 0
      %s551 = scalar_select %p550, %s18, 0
      %s552 = sadd.s32 %s551, %s549
      %s553 = smul.addr %s552, 8
      %s554 = scalar_lea.vmem %s2, %s553
      // Predicated region
      $region29: #{_lambda_.23} parent=27 // pred_check
        %p555 = pneg %p97
      $region30: #{_lambda_.23} parent=27 // pred_check_branch
        %557 = sbr.rel (%p555) target = $region32
      $region31: #{_lambda_.23} parent=27 // pred_region
        %s558 = smul.u32 32, %s17
      $region32: #{_lambda_.23} parent=27 // pred_fallthru
        _
    $region28: #{_lambda_.23} parent=5 // pred_fallthru
      _
    %p559 = scmp.le.s32.totalorder 2, %s8
    // Predicated region
    $region33: #{_lambda_.23} parent=5 // pred_check
      %p560 = pneg %p559
    $region34: #{_lambda_.23} parent=5 // pred_check_branch
      %562 = sbr.rel (%p560) target = $region36
    $region35: #{_lambda_.23} parent=5 // pred_region
      %s563 = ssub.s32 %s8, 2
      // Predicated region
      $region37: #{_lambda_.23} parent=35 // pred_check
        %p564 = pneg %p103
      $region38: #{_lambda_.23} parent=35 // pred_check_branch
        %566 = sbr.rel (%p564) target = $region40
      $region39: #{_lambda_.23} parent=35 // pred_region
        %s567 = smul.u32 32, %s19
        %p568 = scmp.lt.s32.totalorder %s567, 63
        %s569 = scalar_select %p568, %s567, 63
        %p570 = scmp.lt.s32.totalorder %s20, 0
        %s571 = scalar_select %p570, %s20, 0
        %s572 = sadd.s32 %s571, %s569
        %s573 = smul.addr %s572, 8
        %s574 = scalar_lea.vmem %s2, %s573
      $region40: #{_lambda_.23} parent=35 // pred_fallthru
        _
    $region36: #{_lambda_.23} parent=5 // pred_fallthru
      _
  $region6: #{_lambda_.23} parent=0 // loop_footer
    %s12 = sadd.s32 1, %s8
  $region7: #{_lambda_.23} parent=0 // loop_footer_branch
    %7 = sbr.rel target = $region3
  $region8: #{_lambda_.23} parent=0 // loop_exit
    _

// kernel: _lambda_.24
$region0: #{_lambda_.24}
  #allocation0 [shape = 'u32[]', space=smem, size = 0x4, offset = 0x4, fixed_abs, tag = 'smem constant byte address 0x4 - core index']
  #allocation1 [shape = 'u32[144,128]{1,0:T(1,128)}', space=vmem, size = 0x12000, scoped, tag = 'internal scratch']
  %s0 = inlined_call_operand.vmem [shape: f32[64,256], index: 0, kind: input, shape index: {}]
  %s1 = inlined_call_operand.vmem [shape: f32[1,256], index: 1, kind: output, shape index: {0}]
  %s2 = inlined_call_operand.vmem [shape: f32[1,256], index: 2, kind: output, shape index: {1}]
  %3 = xla_tuple %s1, %s2
  %s4 = sld [smem:[#allocation0]]
  $region49: #{_lambda_.24} parent=0
    _
  %s6 = ssub.s32 1, %s4
  %s7 = scalar_select 0, %s6, %s4
  loop: start=0, step=1, limit=4
  $region2: #{_lambda_.24} parent=0 // loop_pre_header
    _
  $region3: #{_lambda_.24} parent=0 // loop_header
    %s9 = sphi 0, %s13
    %p10 = scmp.ge.s32.totalorder %s9, 4
    %s19 = sphi 0, %s21
    %s22 = sphi 0, %s19
    %s23 = sphi 0, %s22
    %s39 = sphi 0, %s23
    %s43 = sphi 0, %s43
    %s45 = sphi 0, %s43
    %s46 = sphi 0, %s45
    %s60 = sphi 0, %s46
    %s64 = sphi 0, %s64
    %s66 = sphi 0, %s64
    %s67 = sphi 0, %s66
    %s81 = sphi 0, %s67
  $region4: #{_lambda_.24} parent=0 // loop_header_branch
    %12 = sbr.rel (%p10) target = $region8
  $region5: #{_lambda_.24} parent=0 // loop_body
    %s14 = ssub.s32 %s9, 1
    %s15 = ssub.s32 %s9, 2
    %s16 = sadd.s32 %s9, 1
    %s17 = ssub.s32 %s9, %s16
    %p18 = scmp.eq.s32.totalorder %s17, 0
    %s20 = sadd.s32 %s19, 1
    %s21 = scalar_select %p18, %s19, %s20
    %p24 = pneg %p18
    %p25 = scmp.eq.s32.totalorder %s9, 1
    %p26 = por %p24, %p25
    %p27 = scmp.ne.s32.totalorder %s19, %s22
    %p28 = scmp.eq.s32.totalorder %s9, 0
    %p29 = por %p27, %p28
    %p30 = scmp.ne.s32.totalorder %s19, %s22
    %p31 = scmp.eq.s32.totalorder %s14, 1
    %p32 = por %p30, %p31
    %p33 = scmp.ne.s32.totalorder %s22, %s23
    %p34 = scmp.eq.s32.totalorder %s14, 0
    %p35 = por %p33, %p34
    %p36 = scmp.ne.s32.totalorder %s22, %s23
    %p37 = scmp.eq.s32.totalorder %s15, 1
    %p38 = por %p36, %p37
    %p40 = scmp.ne.s32.totalorder %s23, %s39
    %p41 = scmp.eq.s32.totalorder %s15, 0
    %p42 = por %p40, %p41
    %s44 = sadd.s32 %s43, 1
    %p47 = scmp.eq.s32.totalorder %s9, 1
    %p48 = scmp.ne.s32.totalorder %s43, %s45
    %p49 = scmp.eq.s32.totalorder %s9, 0
    %p50 = por %p48, %p49
    %p51 = scmp.ne.s32.totalorder %s43, %s45
    %p52 = scmp.eq.s32.totalorder %s14, 1
    %p53 = por %p51, %p52
    %p54 = scmp.ne.s32.totalorder %s45, %s46
    %p55 = scmp.eq.s32.totalorder %s14, 0
    %p56 = por %p54, %p55
    %p57 = scmp.ne.s32.totalorder %s45, %s46
    %p58 = scmp.eq.s32.totalorder %s15, 1
    %p59 = por %p57, %p58
    %p61 = scmp.ne.s32.totalorder %s46, %s60
    %p62 = scmp.eq.s32.totalorder %s15, 0
    %p63 = por %p61, %p62
    %s65 = sadd.s32 %s64, 1
    %p68 = scmp.eq.s32.totalorder %s9, 1
    %p69 = scmp.ne.s32.totalorder %s64, %s66
    %p70 = scmp.eq.s32.totalorder %s9, 0
    %p71 = por %p69, %p70
    %p72 = scmp.ne.s32.totalorder %s64, %s66
    %p73 = scmp.eq.s32.totalorder %s14, 1
    %p74 = por %p72, %p73
    %p75 = scmp.ne.s32.totalorder %s66, %s67
    %p76 = scmp.eq.s32.totalorder %s14, 0
    %p77 = por %p75, %p76
    %p78 = scmp.ne.s32.totalorder %s66, %s67
    %p79 = scmp.eq.s32.totalorder %s15, 1
    %p80 = por %p78, %p79
    %p82 = scmp.ne.s32.totalorder %s67, %s81
    %p83 = scmp.eq.s32.totalorder %s15, 0
    %p84 = por %p82, %p83
    %p85 = scmp.le.s32.totalorder 1, %s9
    %p86 = scmp.lt.s32.totalorder %s9, 3
    %p87 = pnand %p85, %p86
    %p88 = pneg %p87
    // Predicated region
    $region9: #{_lambda_.24} parent=5 // pred_check
      _
    $region10: #{_lambda_.24} parent=5 // pred_check_branch
      %90 = sbr.rel (%p87) target = $region12
    $region11: #{_lambda_.24} parent=5 // pred_region
      %s91 = ssub.s32 %s9, 1
    $region12: #{_lambda_.24} parent=5 // pred_fallthru
      _
    %p92 = scmp.lt.s32.totalorder %s9, 2
    // Predicated region
    $region13: #{_lambda_.24} parent=5 // pred_check
      %p93 = pneg %p92
    $region14: #{_lambda_.24} parent=5 // pred_check_branch
      %95 = sbr.rel (%p93) target = $region16
    $region15: #{_lambda_.24} parent=5 // pred_region
      // Predicated region
      $region17: #{_lambda_.24} parent=15 // pred_check
        %p96 = pneg %p29
      $region18: #{_lambda_.24} parent=15 // pred_check_branch
        %98 = sbr.rel (%p96) target = $region20
      $region19: #{_lambda_.24} parent=15 // pred_region
        %s99 = smul.u32 4, %s9
        %p100 = scmp.lt.s32.totalorder %s99, 7
        %s101 = scalar_select %p100, %s99, 7
        %s102 = smul.addr %s101, 2
        %s103 = smul.addr %s102, 8
        %s104 = scalar_lea.vmem %s0, %s103
        %s105 = smul.u32 4, %s9
      $region20: #{_lambda_.24} parent=15 // pred_fallthru
        _
    $region16: #{_lambda_.24} parent=5 // pred_fallthru
      _
    %p106 = scmp.le.s32.totalorder 1, %s9
    %p107 = scmp.lt.s32.totalorder %s9, 3
    %p108 = pnand %p106, %p107
    %p109 = pneg %p108
    // Predicated region
    $region21: #{_lambda_.24} parent=5 // pred_check
      _
    $region22: #{_lambda_.24} parent=5 // pred_check_branch
      %111 = sbr.rel (%p108) target = $region24
    $region23: #{_lambda_.24} parent=5 // pred_region
      %s112 = ssub.s32 %s9, 1
      %s113 = smul.u32 4, %s14
      %p114 = scmp.lt.s32.totalorder %s113, 7
      %s115 = scalar_select %p114, %s113, 7
      %s116 = smul.addr %s115, 2
      %s117 = smul.addr %s116, 8
      %s118 = scalar_lea.vmem %s0, %s117
      %p119 = pneg %p35
      %p120 = pneg %p32
      %p121 = pneg %p56
      %p122 = pneg %p53
      %p123 = pneg %p77
      %p124 = pneg %p74
      %s125 = smul.u32 4, %s14
      %p126 = scmp.lt.s32.totalorder %s125, 7
      %s127 = scalar_select %p126, %s125, 7
      %s128 = smul.addr %s127, 2
      %s129 = smul.addr %s128, 8
      %s130 = scalar_lea.vmem %s0, %s129
      %s131 = smul.u32 4, %s14
      %p132 = scmp.eq.s32.totalorder %s14, 0
      // Predicated region
      $region25: #{_lambda_.24} parent=23 // pred_check
        %p133 = pneg %p132
      $region26: #{_lambda_.24} parent=23 // pred_check_branch
        %135 = sbr.rel (%p133) target = $region28
      $region27: #{_lambda_.24} parent=23 // pred_region
        %v136 = vlaneseq
        %vm137 = vcmp.ge.s32.totalorder %v136, 0
        %vm138 = vcmp.lt.s32.totalorder %v136, 256
        %vm139 = vmand %vm137, %vm138
        %140 = vst.msk [vmem:[%s1] sm:$0x3] %vm139, 0.0
        %141 = vst.msk [vmem:[%s2] sm:$0x3] %vm139, 0.0
      $region28: #{_lambda_.24} parent=23 // pred_fallthru
        _
      %v142 = vld [vmem:[%s130] sm:$0xff]
      %v143 = vld [vmem:[%s130 + $0x8] sm:$0xff]
      %v144 = vld [vmem:[%s130 + $0x10] sm:$0xff]
      %v145 = vld [vmem:[%s130 + $0x18] sm:$0xff]
      %v146 = vld [vmem:[%s130 + $0x20] sm:$0xff]
      %v147 = vld [vmem:[%s130 + $0x28] sm:$0xff]
      %v148 = vld [vmem:[%s130 + $0x30] sm:$0xff]
      %v149 = vld [vmem:[%s130 + $0x38] sm:$0xff]
      %v150 = vld [vmem:[%s1] sm:$0x3]
      %v151 = vadd.f32 %v142, %v144
      %v152 = vadd.f32 %v151, %v146
      %v153 = vadd.f32 %v152, %v148
      %v154 = vrot.slane %v153, 4
      %v155 = vadd.f32 %v153, %v154
      %v156 = vrot.slane %v155, 2
      %v157 = vadd.f32 %v155, %v156
      %v158 = vrot.slane %v157, 1
      %v159 = vadd.f32 %v157, %v158
      %v160 = vadd.f32 %v143, %v145
      %v161 = vadd.f32 %v160, %v147
      %v162 = vadd.f32 %v161, %v149
      %v163 = vrot.slane %v162, 4
      %v164 = vadd.f32 %v162, %v163
      %v165 = vrot.slane %v164, 2
      %v166 = vadd.f32 %v164, %v165
      %v167 = vrot.slane %v166, 1
      %v168 = vadd.f32 %v166, %v167
      %v171 = vcombine.low %v159, %v168
      %v173 = vunpack.c.l.s4 1966171168
      %v174 = vunpack.c.0.s8 %v173
      %v175 = vlaneseq
      %v176 = vshrl.u32 %v175, 7
      %v177 = vsub.s32 %v174, %v176
      %v178 = vrot.slane %v171, %v177
      %v180 = vunpack.c.l.s4 1966171168
      %v181 = vunpack.c.0.s8 %v180
      %v182 = vlaneseq
      %v183 = vshrl.u32 %v182, 7
      %v184 = vsub.s32 %v181, %v183
      %v185 = vrot.slane %v178, %v184
      %v187 = vadd.f32 %v150, %v185
      %v188 = vlaneseq
      %vm189 = vcmp.ge.s32.totalorder %v188, 0
      %vm190 = vcmp.lt.s32.totalorder %v188, 256
      %vm191 = vmand %vm189, %vm190
      %192 = vst.msk [vmem:[%s1] sm:$0x3] %vm191, %v187
      %v193 = vld [vmem:[%s2] sm:$0x3]
      %v194 = vmul.f32 %v142, %v142
      %v195 = vmul.f32 %v143, %v143
      %v196 = vmul.f32 %v144, %v144
      %v197 = vmul.f32 %v145, %v145
      %v198 = vmul.f32 %v146, %v146
      %v199 = vmul.f32 %v147, %v147
      %v200 = vmul.f32 %v148, %v148
      %v201 = vmul.f32 %v149, %v149
      %v202 = vadd.f32 %v194, %v196
      %v203 = vadd.f32 %v202, %v198
      %v204 = vadd.f32 %v203, %v200
      %v205 = vrot.slane %v204, 4
      %v206 = vadd.f32 %v204, %v205
      %v207 = vrot.slane %v206, 2
      %v208 = vadd.f32 %v206, %v207
      %v209 = vrot.slane %v208, 1
      %v210 = vadd.f32 %v208, %v209
      %v211 = vadd.f32 %v195, %v197
      %v212 = vadd.f32 %v211, %v199
      %v213 = vadd.f32 %v212, %v201
      %v214 = vrot.slane %v213, 4
      %v215 = vadd.f32 %v213, %v214
      %v216 = vrot.slane %v215, 2
      %v217 = vadd.f32 %v215, %v216
      %v218 = vrot.slane %v217, 1
      %v219 = vadd.f32 %v217, %v218
      %v222 = vcombine.low %v210, %v219
      %v224 = vunpack.c.l.s4 1966171168
      %v225 = vunpack.c.0.s8 %v224
      %v226 = vlaneseq
      %v227 = vshrl.u32 %v226, 7
      %v228 = vsub.s32 %v225, %v227
      %v229 = vrot.slane %v222, %v228
      %v231 = vunpack.c.l.s4 1966171168
      %v232 = vunpack.c.0.s8 %v231
      %v233 = vlaneseq
      %v234 = vshrl.u32 %v233, 7
      %v235 = vsub.s32 %v232, %v234
      %v236 = vrot.slane %v229, %v235
      %v238 = vadd.f32 %v193, %v236
      %239 = vst.msk [vmem:[%s2] sm:$0x3] %vm191, %v238
      // Predicated region
      $region29: #{_lambda_.24} parent=23 // pred_check
        %p240 = pneg %p53
      $region30: #{_lambda_.24} parent=23 // pred_check_branch
        %242 = sbr.rel (%p240) target = $region32
      $region31: #{_lambda_.24} parent=23 // pred_region
        _
      $region32: #{_lambda_.24} parent=23 // pred_fallthru
        _
      // Predicated region
      $region33: #{_lambda_.24} parent=23 // pred_check
        %p243 = pneg %p74
      $region34: #{_lambda_.24} parent=23 // pred_check_branch
        %245 = sbr.rel (%p243) target = $region36
      $region35: #{_lambda_.24} parent=23 // pred_region
        _
      $region36: #{_lambda_.24} parent=23 // pred_fallthru
        _
      // Predicated region
      $region37: #{_lambda_.24} parent=23 // pred_check
        %p246 = pneg %p53
      $region38: #{_lambda_.24} parent=23 // pred_check_branch
        %248 = sbr.rel (%p246) target = $region40
      $region39: #{_lambda_.24} parent=23 // pred_region
        _
      $region40: #{_lambda_.24} parent=23 // pred_fallthru
        _
      // Predicated region
      $region41: #{_lambda_.24} parent=23 // pred_check
        %p249 = pneg %p74
      $region42: #{_lambda_.24} parent=23 // pred_check_branch
        %251 = sbr.rel (%p249) target = $region44
      $region43: #{_lambda_.24} parent=23 // pred_region
        _
      $region44: #{_lambda_.24} parent=23 // pred_fallthru
        _
    $region24: #{_lambda_.24} parent=5 // pred_fallthru
      _
    %p252 = scmp.le.s32.totalorder 2, %s9
    // Predicated region
    $region45: #{_lambda_.24} parent=5 // pred_check
      %p253 = pneg %p252
    $region46: #{_lambda_.24} parent=5 // pred_check_branch
      %255 = sbr.rel (%p253) target = $region48
    $region47: #{_lambda_.24} parent=5 // pred_region
      %s256 = ssub.s32 %s9, 2
    $region48: #{_lambda_.24} parent=5 // pred_fallthru
      _
  $region6: #{_lambda_.24} parent=0 // loop_footer
    %s13 = sadd.s32 1, %s9
  $region7: #{_lambda_.24} parent=0 // loop_footer_branch
    %8 = sbr.rel target = $region3
  $region8: #{_lambda_.24} parent=0 // loop_exit
    _

// kernel: _lambda_.25
$region0: #{_lambda_.25}
  #allocation0 [shape = 'u32[]', space=smem, size = 0x4, offset = 0x4, fixed_abs, tag = 'smem constant byte address 0x4 - core index']
  #allocation1 [shape = 'u32[144,128]{1,0:T(1,128)}', space=vmem, size = 0x12000, scoped, tag = 'internal scratch']
  %s0 = inlined_call_operand.vmem [shape: f32[64,256], index: 0, kind: input, shape index: {}]
  %s1 = inlined_call_operand.vmem [shape: f32[1,256], index: 1, kind: input, shape index: {}]
  %s2 = inlined_call_operand.vmem [shape: f32[1,256], index: 2, kind: input, shape index: {}]
  %s3 = inlined_call_operand.vmem [shape: bf16[64,256], index: 3, kind: output, shape index: {}]
  %s4 = sld [smem:[#allocation0]]
  $region45: #{_lambda_.25} parent=0
    _
  %s6 = ssub.s32 1, %s4
  %s7 = scalar_select 0, %s6, %s4
  loop: start=0, step=1, limit=4
  $region2: #{_lambda_.25} parent=0 // loop_pre_header
    _
  $region3: #{_lambda_.25} parent=0 // loop_header
    %s9 = sphi 0, %s13
    %p10 = scmp.ge.s32.totalorder %s9, 4
    %s19 = sphi 0, %s21
    %s22 = sphi 0, %s19
    %s23 = sphi 0, %s22
    %s39 = sphi 0, %s23
    %s43 = sphi 0, %s43
    %s45 = sphi 0, %s43
    %s46 = sphi 0, %s45
    %s60 = sphi 0, %s46
    %s64 = sphi 0, %s64
    %s66 = sphi 0, %s64
    %s67 = sphi 0, %s66
    %s81 = sphi 0, %s67
    %s87 = sphi 0, %s89
    %s90 = sphi 0, %s87
    %s91 = sphi 0, %s90
    %s107 = sphi 0, %s91
  $region4: #{_lambda_.25} parent=0 // loop_header_branch
    %12 = sbr.rel (%p10) target = $region8
  $region5: #{_lambda_.25} parent=0 // loop_body
    %s14 = ssub.s32 %s9, 1
    %s15 = ssub.s32 %s9, 2
    %s16 = sadd.s32 %s9, 1
    %s17 = ssub.s32 %s9, %s16
    %p18 = scmp.eq.s32.totalorder %s17, 0
    %s20 = sadd.s32 %s19, 1
    %s21 = scalar_select %p18, %s19, %s20
    %p24 = pneg %p18
    %p25 = scmp.eq.s32.totalorder %s9, 1
    %p26 = por %p24, %p25
    %p27 = scmp.ne.s32.totalorder %s19, %s22
    %p28 = scmp.eq.s32.totalorder %s9, 0
    %p29 = por %p27, %p28
    %p30 = scmp.ne.s32.totalorder %s19, %s22
    %p31 = scmp.eq.s32.totalorder %s14, 1
    %p32 = por %p30, %p31
    %p33 = scmp.ne.s32.totalorder %s22, %s23
    %p34 = scmp.eq.s32.totalorder %s14, 0
    %p35 = por %p33, %p34
    %p36 = scmp.ne.s32.totalorder %s22, %s23
    %p37 = scmp.eq.s32.totalorder %s15, 1
    %p38 = por %p36, %p37
    %p40 = scmp.ne.s32.totalorder %s23, %s39
    %p41 = scmp.eq.s32.totalorder %s15, 0
    %p42 = por %p40, %p41
    %s44 = sadd.s32 %s43, 1
    %p47 = scmp.eq.s32.totalorder %s9, 1
    %p48 = scmp.ne.s32.totalorder %s43, %s45
    %p49 = scmp.eq.s32.totalorder %s9, 0
    %p50 = por %p48, %p49
    %p51 = scmp.ne.s32.totalorder %s43, %s45
    %p52 = scmp.eq.s32.totalorder %s14, 1
    %p53 = por %p51, %p52
    %p54 = scmp.ne.s32.totalorder %s45, %s46
    %p55 = scmp.eq.s32.totalorder %s14, 0
    %p56 = por %p54, %p55
    %p57 = scmp.ne.s32.totalorder %s45, %s46
    %p58 = scmp.eq.s32.totalorder %s15, 1
    %p59 = por %p57, %p58
    %p61 = scmp.ne.s32.totalorder %s46, %s60
    %p62 = scmp.eq.s32.totalorder %s15, 0
    %p63 = por %p61, %p62
    %s65 = sadd.s32 %s64, 1
    %p68 = scmp.eq.s32.totalorder %s9, 1
    %p69 = scmp.ne.s32.totalorder %s64, %s66
    %p70 = scmp.eq.s32.totalorder %s9, 0
    %p71 = por %p69, %p70
    %p72 = scmp.ne.s32.totalorder %s64, %s66
    %p73 = scmp.eq.s32.totalorder %s14, 1
    %p74 = por %p72, %p73
    %p75 = scmp.ne.s32.totalorder %s66, %s67
    %p76 = scmp.eq.s32.totalorder %s14, 0
    %p77 = por %p75, %p76
    %p78 = scmp.ne.s32.totalorder %s66, %s67
    %p79 = scmp.eq.s32.totalorder %s15, 1
    %p80 = por %p78, %p79
    %p82 = scmp.ne.s32.totalorder %s67, %s81
    %p83 = scmp.eq.s32.totalorder %s15, 0
    %p84 = por %p82, %p83
    %s85 = ssub.s32 %s9, %s16
    %p86 = scmp.eq.s32.totalorder %s85, 0
    %s88 = sadd.s32 %s87, 1
    %s89 = scalar_select %p86, %s87, %s88
    %p92 = pneg %p86
    %p93 = scmp.eq.s32.totalorder %s9, 1
    %p94 = por %p92, %p93
    %p95 = scmp.ne.s32.totalorder %s87, %s90
    %p96 = scmp.eq.s32.totalorder %s9, 0
    %p97 = por %p95, %p96
    %p98 = scmp.ne.s32.totalorder %s87, %s90
    %p99 = scmp.eq.s32.totalorder %s14, 1
    %p100 = por %p98, %p99
    %p101 = scmp.ne.s32.totalorder %s90, %s91
    %p102 = scmp.eq.s32.totalorder %s14, 0
    %p103 = por %p101, %p102
    %p104 = scmp.ne.s32.totalorder %s90, %s91
    %p105 = scmp.eq.s32.totalorder %s15, 1
    %p106 = por %p104, %p105
    %p108 = scmp.ne.s32.totalorder %s91, %s107
    %p109 = scmp.eq.s32.totalorder %s15, 0
    %p110 = por %p108, %p109
    %p111 = scmp.le.s32.totalorder 1, %s9
    %p112 = scmp.lt.s32.totalorder %s9, 3
    %p113 = pnand %p111, %p112
    %p114 = pneg %p113
    // Predicated region
    $region9: #{_lambda_.25} parent=5 // pred_check
      _
    $region10: #{_lambda_.25} parent=5 // pred_check_branch
      %116 = sbr.rel (%p113) target = $region12
    $region11: #{_lambda_.25} parent=5 // pred_region
      %s117 = ssub.s32 %s9, 1
      // Predicated region
      $region13: #{_lambda_.25} parent=11 // pred_check
        %p118 = pneg %p56
      $region14: #{_lambda_.25} parent=11 // pred_check_branch
        %120 = sbr.rel (%p118) target = $region16
      $region15: #{_lambda_.25} parent=11 // pred_region
        _
      $region16: #{_lambda_.25} parent=11 // pred_fallthru
        _
      // Predicated region
      $region17: #{_lambda_.25} parent=11 // pred_check
        %p121 = pneg %p77
      $region18: #{_lambda_.25} parent=11 // pred_check_branch
        %123 = sbr.rel (%p121) target = $region20
      $region19: #{_lambda_.25} parent=11 // pred_region
        _
      $region20: #{_lambda_.25} parent=11 // pred_fallthru
        _
    $region12: #{_lambda_.25} parent=5 // pred_fallthru
      _
    %p124 = scmp.lt.s32.totalorder %s9, 2
    // Predicated region
    $region21: #{_lambda_.25} parent=5 // pred_check
      %p125 = pneg %p124
    $region22: #{_lambda_.25} parent=5 // pred_check_branch
      %127 = sbr.rel (%p125) target = $region24
    $region23: #{_lambda_.25} parent=5 // pred_region
      // Predicated region
      $region25: #{_lambda_.25} parent=23 // pred_check
        %p128 = pneg %p29
      $region26: #{_lambda_.25} parent=23 // pred_check_branch
        %130 = sbr.rel (%p128) target = $region28
      $region27: #{_lambda_.25} parent=23 // pred_region
        %s131 = smul.u32 4, %s9
        %p132 = scmp.lt.s32.totalorder %s131, 7
        %s133 = scalar_select %p132, %s131, 7
        %s134 = smul.addr %s133, 2
        %s135 = smul.addr %s134, 8
        %s136 = scalar_lea.vmem %s0, %s135
        %s137 = smul.u32 4, %s9
      $region28: #{_lambda_.25} parent=23 // pred_fallthru
        _
    $region24: #{_lambda_.25} parent=5 // pred_fallthru
      _
    %p138 = scmp.le.s32.totalorder 1, %s9
    %p139 = scmp.lt.s32.totalorder %s9, 3
    %p140 = pnand %p138, %p139
    %p141 = pneg %p140
    // Predicated region
    $region29: #{_lambda_.25} parent=5 // pred_check
      _
    $region30: #{_lambda_.25} parent=5 // pred_check_branch
      %143 = sbr.rel (%p140) target = $region32
    $region31: #{_lambda_.25} parent=5 // pred_region
      %s144 = ssub.s32 %s9, 1
      %s145 = smul.u32 4, %s14
      %p146 = scmp.lt.s32.totalorder %s145, 7
      %s147 = scalar_select %p146, %s145, 7
      %s148 = smul.addr %s147, 2
      %s149 = smul.addr %s148, 8
      %s150 = scalar_lea.vmem %s0, %s149
      %p151 = pneg %p35
      %p152 = pneg %p32
      %p153 = pneg %p56
      %p154 = pneg %p53
      %p155 = pneg %p77
      %p156 = pneg %p74
      %p157 = pneg %p103
      %p158 = pneg %p100
      %s159 = smul.u32 4, %s14
      %p160 = scmp.lt.s32.totalorder %s159, 7
      %s161 = scalar_select %p160, %s159, 7
      %s162 = smul.addr %s161, 2
      %s163 = smul.addr %s162, 4
      %s164 = scalar_lea.vmem %s3, %s163
      %s165 = smul.u32 4, %s14
      %p166 = scmp.lt.s32.totalorder %s165, 7
      %s167 = scalar_select %p166, %s165, 7
      %s168 = smul.addr %s167, 2
      %s169 = smul.addr %s168, 8
      %s170 = scalar_lea.vmem %s0, %s169
      %s171 = smul.u32 4, %s14
      %s172 = smul.u32 4, %s14
      %p173 = scmp.lt.s32.totalorder %s172, 7
      %s174 = scalar_select %p173, %s172, 7
      %s175 = smul.addr %s174, 2
      %s176 = smul.addr %s175, 4
      %s177 = scalar_lea.vmem %s3, %s176
      %s178 = smul.u32 4, %s14
      %v179 = vld [vmem:[%s170] sm:$0xff]
      %v180 = vld [vmem:[%s170 + $0x8] sm:$0xff]
      %v181 = vld [vmem:[%s170 + $0x10] sm:$0xff]
      %v182 = vld [vmem:[%s170 + $0x18] sm:$0xff]
      %v183 = vld [vmem:[%s170 + $0x20] sm:$0xff]
      %v184 = vld [vmem:[%s170 + $0x28] sm:$0xff]
      %v185 = vld [vmem:[%s170 + $0x30] sm:$0xff]
      %v186 = vld [vmem:[%s170 + $0x38] sm:$0xff]
      %v187 = vld [vmem:[%s1] sm:$0x3]
      %v189 = vlaneseq
      %v190 = vshrl.u32 %v189, 7
      %v191 = vsub.s32 0, %v190
      %v192 = vrot.slane %v187, %v191
      %v193 = vlaneseq
      %v194 = vshrl.u32 %v193, 7
      %v195 = vsub.s32 1, %v194
      %v196 = vrot.slane %v187, %v195
      %v199 = vmul.f32 %v179, %v192
      %v200 = vmul.f32 %v180, %v196
      %v201 = vmul.f32 %v181, %v192
      %v202 = vmul.f32 %v182, %v196
      %v203 = vmul.f32 %v183, %v192
      %v204 = vmul.f32 %v184, %v196
      %v205 = vmul.f32 %v185, %v192
      %v206 = vmul.f32 %v186, %v196
      %v207 = vld [vmem:[%s2] sm:$0x3]
      %v209 = vlaneseq
      %v210 = vshrl.u32 %v209, 7
      %v211 = vsub.s32 0, %v210
      %v212 = vrot.slane %v207, %v211
      %v213 = vlaneseq
      %v214 = vshrl.u32 %v213, 7
      %v215 = vsub.s32 1, %v214
      %v216 = vrot.slane %v207, %v215
      %v219 = vadd.f32 %v199, %v212
      %v220 = vadd.f32 %v200, %v216
      %v221 = vadd.f32 %v201, %v212
      %v222 = vadd.f32 %v202, %v216
      %v223 = vadd.f32 %v203, %v212
      %v224 = vadd.f32 %v204, %v216
      %v225 = vadd.f32 %v205, %v212
      %v226 = vadd.f32 %v206, %v216
      %v227 = vmax.f32 %v219, 0.0
      %v228 = vmax.f32 %v220, 0.0
      %v229 = vmax.f32 %v221, 0.0
      %v230 = vmax.f32 %v222, 0.0
      %v231 = vmax.f32 %v223, 0.0
      %v232 = vmax.f32 %v224, 0.0
      %v233 = vmax.f32 %v225, 0.0
      %v234 = vmax.f32 %v226, 0.0
      %v235 = vpack.c.bf16 %v229, %v227
      %v236 = vpack.c.bf16 %v230, %v228
      %v237 = vpack.c.bf16 %v233, %v231
      %v238 = vpack.c.bf16 %v234, %v232
      %v243 = vunpack.c.l.b16 %v235
      %v244 = vunpack.c.l.b16 %v236
      %v245 = vunpack.c.h.b16 %v235
      %v246 = vunpack.c.h.b16 %v236
      %v247 = vunpack.c.l.b16 %v237
      %v248 = vunpack.c.l.b16 %v238
      %v249 = vunpack.c.h.b16 %v237
      %v250 = vunpack.c.h.b16 %v238
      %v251 = vpack.c.b16 %v244, %v243
      %v252 = vpack.c.b16 %v246, %v245
      %v253 = vpack.c.b16 %v248, %v247
      %v254 = vpack.c.b16 %v250, %v249
      %259 = vst [vmem:[%s177] sm:$0xff] %v251
      %260 = vst [vmem:[%s177 + $0x8] sm:$0xff] %v252
      %261 = vst [vmem:[%s177 + $0x10] sm:$0xff] %v253
      %262 = vst [vmem:[%s177 + $0x18] sm:$0xff] %v254
      %s263 = smul.u32 4, %s14
      %p264 = scmp.lt.s32.totalorder %s263, 7
      %s265 = scalar_select %p264, %s263, 7
      %s266 = smul.addr %s265, 2
      %s267 = smul.addr %s266, 4
      %s268 = scalar_lea.vmem %s3, %s267
      // Predicated region
      $region33: #{_lambda_.25} parent=31 // pred_check
        %p269 = pneg %p100
      $region34: #{_lambda_.25} parent=31 // pred_check_branch
        %271 = sbr.rel (%p269) target = $region36
      $region35: #{_lambda_.25} parent=31 // pred_region
        %s272 = smul.u32 4, %s14
      $region36: #{_lambda_.25} parent=31 // pred_fallthru
        _
    $region32: #{_lambda_.25} parent=5 // pred_fallthru
      _
    %p273 = scmp.le.s32.totalorder 2, %s9
    // Predicated region
    $region37: #{_lambda_.25} parent=5 // pred_check
      %p274 = pneg %p273
    $region38: #{_lambda_.25} parent=5 // pred_check_branch
      %276 = sbr.rel (%p274) target = $region40
    $region39: #{_lambda_.25} parent=5 // pred_region
      %s277 = ssub.s32 %s9, 2
      // Predicated region
      $region41: #{_lambda_.25} parent=39 // pred_check
        %p278 = pneg %p106
      $region42: #{_lambda_.25} parent=39 // pred_check_branch
        %280 = sbr.rel (%p278) target = $region44
      $region43: #{_lambda_.25} parent=39 // pred_region
        %s281 = smul.u32 4, %s15
        %p282 = scmp.lt.s32.totalorder %s281, 7
        %s283 = scalar_select %p282, %s281, 7
        %s284 = smul.addr %s283, 2
        %s285 = smul.addr %s284, 4
        %s286 = scalar_lea.vmem %s3, %s285
      $region44: #{_lambda_.25} parent=39 // pred_fallthru
        _
    $region40: #{_lambda_.25} parent=5 // pred_fallthru
      _
  $region6: #{_lambda_.25} parent=0 // loop_footer
    %s13 = sadd.s32 1, %s9
  $region7: #{_lambda_.25} parent=0 // loop_footer_branch
    %8 = sbr.rel target = $region3
  $region8: #{_lambda_.25} parent=0 // loop_exit
    _

// kernel: _lambda_.26
$region0: #{_lambda_.26}
  #allocation0 [shape = 'u32[]', space=smem, size = 0x4, offset = 0x4, fixed_abs, tag = 'smem constant byte address 0x4 - core index']
  #allocation1 [shape = 'u32[144,128]{1,0:T(1,128)}', space=vmem, size = 0x12000, scoped, tag = 'internal scratch']
  %s0 = inlined_call_operand.vmem [shape: bf16[2048,8], index: 0, kind: input, shape index: {}]
  %s1 = inlined_call_operand.vmem [shape: bf16[8,128], index: 1, kind: input, shape index: {}]
  %s2 = inlined_call_operand.vmem [shape: f32[2048,128], index: 2, kind: output, shape index: {}]
  %s3 = sld [smem:[#allocation0]]
  $region41: #{_lambda_.26} parent=0
    _
  %s5 = ssub.s32 1, %s3
  %s6 = scalar_select 0, %s5, %s3
  loop: start=0, step=1, limit=6
  $region2: #{_lambda_.26} parent=0 // loop_pre_header
    _
  $region3: #{_lambda_.26} parent=0 // loop_header
    %s8 = sphi 0, %s12
    %p9 = scmp.ge.s32.totalorder %s8, 6
    %s15 = sphi 0, %s27
    %s16 = sphi 0, %s23
    %s17 = sphi 0, %s15
    %s18 = sphi 0, %s16
    %s19 = sphi 0, %s17
    %s20 = sphi 0, %s18
    %s30 = sphi 0, %s32
    %s33 = sphi 0, %s30
    %s34 = sphi 0, %s33
    %s50 = sphi 0, %s34
    %s56 = sphi 0, %s58
    %s59 = sphi 0, %s56
    %s60 = sphi 0, %s59
    %s76 = sphi 0, %s60
    %s84 = sphi 0, %s86
    %s87 = sphi 0, %s84
    %s88 = sphi 0, %s87
    %s104 = sphi 0, %s88
  $region4: #{_lambda_.26} parent=0 // loop_header_branch
    %11 = sbr.rel (%p9) target = $region8
  $region5: #{_lambda_.26} parent=0 // loop_body
    %s13 = ssub.s32 %s8, 1
    %s14 = ssub.s32 %s8, 2
    %s21 = sadd.s32 1, %s16
    %p22 = scmp.ge.s32.totalorder %s21, 1
    %s23 = scalar_select %p22, 0, %s21
    %s24 = sadd.s32 1, %s15
    %s25 = scalar_select %p22, %s24, %s15
    %p26 = scmp.ge.s32.totalorder %s25, 4
    %s27 = scalar_select %p26, 0, %s25
    %s28 = ssub.s32 %s15, %s27
    %p29 = scmp.eq.s32.totalorder %s28, 0
    %s31 = sadd.s32 %s30, 1
    %s32 = scalar_select %p29, %s30, %s31
    %p35 = pneg %p29
    %p36 = scmp.eq.s32.totalorder %s8, 3
    %p37 = por %p35, %p36
    %p38 = scmp.ne.s32.totalorder %s30, %s33
    %p39 = scmp.eq.s32.totalorder %s8, 0
    %p40 = por %p38, %p39
    %p41 = scmp.ne.s32.totalorder %s30, %s33
    %p42 = scmp.eq.s32.totalorder %s13, 3
    %p43 = por %p41, %p42
    %p44 = scmp.ne.s32.totalorder %s33, %s34
    %p45 = scmp.eq.s32.totalorder %s13, 0
    %p46 = por %p44, %p45
    %p47 = scmp.ne.s32.totalorder %s33, %s34
    %p48 = scmp.eq.s32.totalorder %s14, 3
    %p49 = por %p47, %p48
    %p51 = scmp.ne.s32.totalorder %s34, %s50
    %p52 = scmp.eq.s32.totalorder %s14, 0
    %p53 = por %p51, %p52
    %s54 = ssub.s32 %s16, %s23
    %p55 = scmp.eq.s32.totalorder %s54, 0
    %s57 = sadd.s32 %s56, 1
    %s58 = scalar_select %p55, %s56, %s57
    %p61 = pneg %p55
    %p62 = scmp.eq.s32.totalorder %s8, 3
    %p63 = por %p61, %p62
    %p64 = scmp.ne.s32.totalorder %s56, %s59
    %p65 = scmp.eq.s32.totalorder %s8, 0
    %p66 = por %p64, %p65
    %p67 = scmp.ne.s32.totalorder %s56, %s59
    %p68 = scmp.eq.s32.totalorder %s13, 3
    %p69 = por %p67, %p68
    %p70 = scmp.ne.s32.totalorder %s59, %s60
    %p71 = scmp.eq.s32.totalorder %s13, 0
    %p72 = por %p70, %p71
    %p73 = scmp.ne.s32.totalorder %s59, %s60
    %p74 = scmp.eq.s32.totalorder %s14, 3
    %p75 = por %p73, %p74
    %p77 = scmp.ne.s32.totalorder %s60, %s76
    %p78 = scmp.eq.s32.totalorder %s14, 0
    %p79 = por %p77, %p78
    %s80 = ssub.s32 %s15, %s27
    %s81 = ssub.s32 %s16, %s23
    %s82 = sor.u32 %s80, %s81
    %p83 = scmp.eq.s32.totalorder %s82, 0
    %s85 = sadd.s32 %s84, 1
    %s86 = scalar_select %p83, %s84, %s85
    %p89 = pneg %p83
    %p90 = scmp.eq.s32.totalorder %s8, 3
    %p91 = por %p89, %p90
    %p92 = scmp.ne.s32.totalorder %s84, %s87
    %p93 = scmp.eq.s32.totalorder %s8, 0
    %p94 = por %p92, %p93
    %p95 = scmp.ne.s32.totalorder %s84, %s87
    %p96 = scmp.eq.s32.totalorder %s13, 3
    %p97 = por %p95, %p96
    %p98 = scmp.ne.s32.totalorder %s87, %s88
    %p99 = scmp.eq.s32.totalorder %s13, 0
    %p100 = por %p98, %p99
    %p101 = scmp.ne.s32.totalorder %s87, %s88
    %p102 = scmp.eq.s32.totalorder %s14, 3
    %p103 = por %p101, %p102
    %p105 = scmp.ne.s32.totalorder %s88, %s104
    %p106 = scmp.eq.s32.totalorder %s14, 0
    %p107 = por %p105, %p106
    %p108 = scmp.le.s32.totalorder 1, %s8
    %p109 = scmp.lt.s32.totalorder %s8, 5
    %p110 = pnand %p108, %p109
    %p111 = pneg %p110
    // Predicated region
    $region9: #{_lambda_.26} parent=5 // pred_check
      _
    $region10: #{_lambda_.26} parent=5 // pred_check_branch
      %113 = sbr.rel (%p110) target = $region12
    $region11: #{_lambda_.26} parent=5 // pred_region
      %s114 = ssub.s32 %s8, 1
      // Predicated region
      $region13: #{_lambda_.26} parent=11 // pred_check
        %p115 = pneg %p72
      $region14: #{_lambda_.26} parent=11 // pred_check_branch
        %117 = sbr.rel (%p115) target = $region16
      $region15: #{_lambda_.26} parent=11 // pred_region
        %p118 = scmp.lt.s32.totalorder %s18, 0
        %s119 = scalar_select %p118, %s18, 0
        %s120 = smul.addr %s119, 4
        %s121 = scalar_lea.vmem %s1, %s120
      $region16: #{_lambda_.26} parent=11 // pred_fallthru
        _
    $region12: #{_lambda_.26} parent=5 // pred_fallthru
      _
    %p122 = scmp.lt.s32.totalorder %s8, 4
    // Predicated region
    $region17: #{_lambda_.26} parent=5 // pred_check
      %p123 = pneg %p122
    $region18: #{_lambda_.26} parent=5 // pred_check_branch
      %125 = sbr.rel (%p123) target = $region20
    $region19: #{_lambda_.26} parent=5 // pred_region
      // Predicated region
      $region21: #{_lambda_.26} parent=19 // pred_check
        %p126 = pneg %p40
      $region22: #{_lambda_.26} parent=19 // pred_check_branch
        %128 = sbr.rel (%p126) target = $region24
      $region23: #{_lambda_.26} parent=19 // pred_region
        %s129 = smul.u32 64, %s15
        %p130 = scmp.lt.s32.totalorder %s129, 255
        %s131 = scalar_select %p130, %s129, 255
        %s132 = smul.addr %s131, 4
        %s133 = scalar_lea.vmem %s0, %s132
        %s134 = smul.u32 64, %s15
      $region24: #{_lambda_.26} parent=19 // pred_fallthru
        _
    $region20: #{_lambda_.26} parent=5 // pred_fallthru
      _
    %p135 = scmp.le.s32.totalorder 1, %s8
    %p136 = scmp.lt.s32.totalorder %s8, 5
    %p137 = pnand %p135, %p136
    %p138 = pneg %p137
    // Predicated region
    $region25: #{_lambda_.26} parent=5 // pred_check
      _
    $region26: #{_lambda_.26} parent=5 // pred_check_branch
      %140 = sbr.rel (%p137) target = $region28
    $region27: #{_lambda_.26} parent=5 // pred_region
      %s141 = ssub.s32 %s8, 1
      %s142 = smul.u32 64, %s17
      %p143 = scmp.lt.s32.totalorder %s142, 255
      %s144 = scalar_select %p143, %s142, 255
      %s145 = smul.addr %s144, 4
      %s146 = scalar_lea.vmem %s0, %s145
      %p147 = pneg %p46
      %p148 = pneg %p43
      %p149 = scmp.lt.s32.totalorder %s18, 0
      %s150 = scalar_select %p149, %s18, 0
      %s151 = smul.addr %s150, 4
      %s152 = scalar_lea.vmem %s1, %s151
      %p153 = pneg %p72
      %p154 = pneg %p69
      %p155 = pneg %p100
      %p156 = pneg %p97
      %s157 = smul.u32 64, %s17
      %p158 = scmp.lt.s32.totalorder %s157, 255
      %s159 = scalar_select %p158, %s157, 255
      %p160 = scmp.lt.s32.totalorder %s18, 0
      %s161 = scalar_select %p160, %s18, 0
      %s162 = sadd.s32 %s161, %s159
      %s163 = smul.addr %s162, 8
      %s164 = scalar_lea.vmem %s2, %s163
      %s165 = smul.u32 64, %s17
      %p166 = scmp.lt.s32.totalorder %s165, 255
      %s167 = scalar_select %p166, %s165, 255
      %s168 = smul.addr %s167, 4
      %s169 = scalar_lea.vmem %s0, %s168
      %s170 = smul.u32 64, %s17
      %p171 = scmp.lt.s32.totalorder %s18, 0
      %s172 = scalar_select %p171, %s18, 0
      %s173 = smul.addr %s172, 4
      %s174 = scalar_lea.vmem %s1, %s173
      %s175 = smul.u32 64, %s17
      %p176 = scmp.lt.s32.totalorder %s175, 255
      %s177 = scalar_select %p176, %s175, 255
      %p178 = scmp.lt.s32.totalorder %s18, 0
      %s179 = scalar_select %p178, %s18, 0
      %s180 = sadd.s32 %s179, %s177
      %s181 = smul.addr %s180, 8
      %s182 = scalar_lea.vmem %s2, %s181
      %s183 = smul.u32 64, %s17
      %v185 = vld [vmem:[%s169] sm:$0xf]
      %v186 = vld [vmem:[%s169 + $0x4] sm:$0xf]
      %v187 = vld [vmem:[%s169 + $0x8] sm:$0xf]
      %v188 = vld [vmem:[%s169 + $0xc] sm:$0xf]
      %v189 = vld [vmem:[%s169 + $0x10] sm:$0xf]
      %v190 = vld [vmem:[%s169 + $0x14] sm:$0xf]
      %v191 = vld [vmem:[%s169 + $0x18] sm:$0xf]
      %v192 = vld [vmem:[%s169 + $0x1c] sm:$0xf]
      %v193 = vld [vmem:[%s169 + $0x20] sm:$0xf]
      %v194 = vld [vmem:[%s169 + $0x24] sm:$0xf]
      %v195 = vld [vmem:[%s169 + $0x28] sm:$0xf]
      %v196 = vld [vmem:[%s169 + $0x2c] sm:$0xf]
      %v197 = vld [vmem:[%s169 + $0x30] sm:$0xf]
      %v198 = vld [vmem:[%s169 + $0x34] sm:$0xf]
      %v199 = vld [vmem:[%s169 + $0x38] sm:$0xf]
      %v200 = vld [vmem:[%s169 + $0x3c] sm:$0xf]
      %v201 = vld [vmem:[%s169 + $0x40] sm:$0xf]
      %v202 = vld [vmem:[%s169 + $0x44] sm:$0xf]
      %v203 = vld [vmem:[%s169 + $0x48] sm:$0xf]
      %v204 = vld [vmem:[%s169 + $0x4c] sm:$0xf]
      %v205 = vld [vmem:[%s169 + $0x50] sm:$0xf]
      %v206 = vld [vmem:[%s169 + $0x54] sm:$0xf]
      %v207 = vld [vmem:[%s169 + $0x58] sm:$0xf]
      %v208 = vld [vmem:[%s169 + $0x5c] sm:$0xf]
      %v209 = vld [vmem:[%s169 + $0x60] sm:$0xf]
      %v210 = vld [vmem:[%s169 + $0x64] sm:$0xf]
      %v211 = vld [vmem:[%s169 + $0x68] sm:$0xf]
      %v212 = vld [vmem:[%s169 + $0x6c] sm:$0xf]
      %v213 = vld [vmem:[%s169 + $0x70] sm:$0xf]
      %v214 = vld [vmem:[%s169 + $0x74] sm:$0xf]
      %v215 = vld [vmem:[%s169 + $0x78] sm:$0xf]
      %v216 = vld [vmem:[%s169 + $0x7c] sm:$0xf]
      %v217 = vld [vmem:[%s169 + $0x80] sm:$0xf]
      %v218 = vld [vmem:[%s169 + $0x84] sm:$0xf]
      %v219 = vld [vmem:[%s169 + $0x88] sm:$0xf]
      %v220 = vld [vmem:[%s169 + $0x8c] sm:$0xf]
      %v221 = vld [vmem:[%s169 + $0x90] sm:$0xf]
      %v222 = vld [vmem:[%s169 + $0x94] sm:$0xf]
      %v223 = vld [vmem:[%s169 + $0x98] sm:$0xf]
      %v224 = vld [vmem:[%s169 + $0x9c] sm:$0xf]
      %v225 = vld [vmem:[%s169 + $0xa0] sm:$0xf]
      %v226 = vld [vmem:[%s169 + $0xa4] sm:$0xf]
      %v227 = vld [vmem:[%s169 + $0xa8] sm:$0xf]
      %v228 = vld [vmem:[%s169 + $0xac] sm:$0xf]
      %v229 = vld [vmem:[%s169 + $0xb0] sm:$0xf]
      %v230 = vld [vmem:[%s169 + $0xb4] sm:$0xf]
      %v231 = vld [vmem:[%s169 + $0xb8] sm:$0xf]
      %v232 = vld [vmem:[%s169 + $0xbc] sm:$0xf]
      %v233 = vld [vmem:[%s169 + $0xc0] sm:$0xf]
      %v234 = vld [vmem:[%s169 + $0xc4] sm:$0xf]
      %v235 = vld [vmem:[%s169 + $0xc8] sm:$0xf]
      %v236 = vld [vmem:[%s169 + $0xcc] sm:$0xf]
      %v237 = vld [vmem:[%s169 + $0xd0] sm:$0xf]
      %v238 = vld [vmem:[%s169 + $0xd4] sm:$0xf]
      %v239 = vld [vmem:[%s169 + $0xd8] sm:$0xf]
      %v240 = vld [vmem:[%s169 + $0xdc] sm:$0xf]
      %v241 = vld [vmem:[%s169 + $0xe0] sm:$0xf]
      %v242 = vld [vmem:[%s169 + $0xe4] sm:$0xf]
      %v243 = vld [vmem:[%s169 + $0xe8] sm:$0xf]
      %v244 = vld [vmem:[%s169 + $0xec] sm:$0xf]
      %v245 = vld [vmem:[%s169 + $0xf0] sm:$0xf]
      %v246 = vld [vmem:[%s169 + $0xf4] sm:$0xf]
      %v247 = vld [vmem:[%s169 + $0xf8] sm:$0xf]
      %v248 = vld [vmem:[%s169 + $0xfc] sm:$0xf]
      %v249 = vld [vmem:[%s174] sm:$0xf]
      %v314 = vunpack.c.l.b16 %v185
      %v315 = vunpack.c.l.b16 %v186
      %v316 = vunpack.c.l.b16 %v187
      %v317 = vunpack.c.l.b16 %v188
      %v318 = vunpack.c.l.b16 %v189
      %v319 = vunpack.c.l.b16 %v190
      %v320 = vunpack.c.l.b16 %v191
      %v321 = vunpack.c.l.b16 %v192
      %v322 = vunpack.c.l.b16 %v193
      %v323 = vunpack.c.l.b16 %v194
      %v324 = vunpack.c.l.b16 %v195
      %v325 = vunpack.c.l.b16 %v196
      %v326 = vunpack.c.l.b16 %v197
      %v327 = vunpack.c.l.b16 %v198
      %v328 = vunpack.c.l.b16 %v199
      %v329 = vunpack.c.l.b16 %v200
      %v330 = vunpack.c.l.b16 %v201
      %v331 = vunpack.c.l.b16 %v202
      %v332 = vunpack.c.l.b16 %v203
      %v333 = vunpack.c.l.b16 %v204
      %v334 = vunpack.c.l.b16 %v205
      %v335 = vunpack.c.l.b16 %v206
      %v336 = vunpack.c.l.b16 %v207
      %v337 = vunpack.c.l.b16 %v208
      %v338 = vunpack.c.l.b16 %v209
      %v339 = vunpack.c.l.b16 %v210
      %v340 = vunpack.c.l.b16 %v211
      %v341 = vunpack.c.l.b16 %v212
      %v342 = vunpack.c.l.b16 %v213
      %v343 = vunpack.c.l.b16 %v214
      %v344 = vunpack.c.l.b16 %v215
      %v345 = vunpack.c.l.b16 %v216
      %v346 = vunpack.c.l.b16 %v217
      %v347 = vunpack.c.l.b16 %v218
      %v348 = vunpack.c.l.b16 %v219
      %v349 = vunpack.c.l.b16 %v220
      %v350 = vunpack.c.l.b16 %v221
      %v351 = vunpack.c.l.b16 %v222
      %v352 = vunpack.c.l.b16 %v223
      %v353 = vunpack.c.l.b16 %v224
      %v354 = vunpack.c.l.b16 %v225
      %v355 = vunpack.c.l.b16 %v226
      %v356 = vunpack.c.l.b16 %v227
      %v357 = vunpack.c.l.b16 %v228
      %v358 = vunpack.c.l.b16 %v229
      %v359 = vunpack.c.l.b16 %v230
      %v360 = vunpack.c.l.b16 %v231
      %v361 = vunpack.c.l.b16 %v232
      %v362 = vunpack.c.l.b16 %v233
      %v363 = vunpack.c.l.b16 %v234
      %v364 = vunpack.c.l.b16 %v235
      %v365 = vunpack.c.l.b16 %v236
      %v366 = vunpack.c.l.b16 %v237
      %v367 = vunpack.c.l.b16 %v238
      %v368 = vunpack.c.l.b16 %v239
      %v369 = vunpack.c.l.b16 %v240
      %v370 = vunpack.c.l.b16 %v241
      %v371 = vunpack.c.l.b16 %v242
      %v372 = vunpack.c.l.b16 %v243
      %v373 = vunpack.c.l.b16 %v244
      %v374 = vunpack.c.l.b16 %v245
      %v375 = vunpack.c.l.b16 %v246
      %v376 = vunpack.c.l.b16 %v247
      %v377 = vunpack.c.l.b16 %v248
      %v378 = vpack.c.b16 %v315, %v314
      %v379 = vpack.c.b16 %v317, %v316
      %v380 = vpack.c.b16 %v319, %v318
      %v381 = vpack.c.b16 %v321, %v320
      %v382 = vpack.c.b16 %v323, %v322
      %v383 = vpack.c.b16 %v325, %v324
      %v384 = vpack.c.b16 %v327, %v326
      %v385 = vpack.c.b16 %v329, %v328
      %v386 = vpack.c.b16 %v331, %v330
      %v387 = vpack.c.b16 %v333, %v332
      %v388 = vpack.c.b16 %v335, %v334
      %v389 = vpack.c.b16 %v337, %v336
      %v390 = vpack.c.b16 %v339, %v338
      %v391 = vpack.c.b16 %v341, %v340
      %v392 = vpack.c.b16 %v343, %v342
      %v393 = vpack.c.b16 %v345, %v344
      %v394 = vpack.c.b16 %v347, %v346
      %v395 = vpack.c.b16 %v349, %v348
      %v396 = vpack.c.b16 %v351, %v350
      %v397 = vpack.c.b16 %v353, %v352
      %v398 = vpack.c.b16 %v355, %v354
      %v399 = vpack.c.b16 %v357, %v356
      %v400 = vpack.c.b16 %v359, %v358
      %v401 = vpack.c.b16 %v361, %v360
      %v402 = vpack.c.b16 %v363, %v362
      %v403 = vpack.c.b16 %v365, %v364
      %v404 = vpack.c.b16 %v367, %v366
      %v405 = vpack.c.b16 %v369, %v368
      %v406 = vpack.c.b16 %v371, %v370
      %v407 = vpack.c.b16 %v373, %v372
      %v408 = vpack.c.b16 %v375, %v374
      %v409 = vpack.c.b16 %v377, %v376
      %vm410 = vcmask 64512
      %v412 = vsel %vm410, %v378, 0
      %v415 = vsel %vm410, %v379, 0
      %v418 = vsel %vm410, %v380, 0
      %v421 = vsel %vm410, %v381, 0
      %v424 = vsel %vm410, %v382, 0
      %v427 = vsel %vm410, %v383, 0
      %v430 = vsel %vm410, %v384, 0
      %v433 = vsel %vm410, %v385, 0
      %v436 = vsel %vm410, %v386, 0
      %v439 = vsel %vm410, %v387, 0
      %v442 = vsel %vm410, %v388, 0
      %v445 = vsel %vm410, %v389, 0
      %v448 = vsel %vm410, %v390, 0
      %v451 = vsel %vm410, %v391, 0
      %v454 = vsel %vm410, %v392, 0
      %v457 = vsel %vm410, %v393, 0
      %v460 = vsel %vm410, %v394, 0
      %v463 = vsel %vm410, %v395, 0
      %v466 = vsel %vm410, %v396, 0
      %v469 = vsel %vm410, %v397, 0
      %v472 = vsel %vm410, %v398, 0
      %v475 = vsel %vm410, %v399, 0
      %v478 = vsel %vm410, %v400, 0
      %v481 = vsel %vm410, %v401, 0
      %v484 = vsel %vm410, %v402, 0
      %v487 = vsel %vm410, %v403, 0
      %v490 = vsel %vm410, %v404, 0
      %v493 = vsel %vm410, %v405, 0
      %v496 = vsel %vm410, %v406, 0
      %v499 = vsel %vm410, %v407, 0
      %v502 = vsel %vm410, %v408, 0
      %v505 = vsel %vm410, %v409, 0
      %vm507 = vcmask 1043456
      %v509 = vsel %vm507, %v249, 0
      %511 = vmatprep.subr.bf16.mxu0 0
      %512 = vmatpush1.bf16.msra.mxu0 0
      %513 = vmatprep.subr.bf16.mxu0 0
      %514 = vmatpush1.bf16.msra.mxu0 0
      %515 = vmatprep.subr.bf16.mxu0 0
      %516 = vmatpush1.bf16.msra.mxu0 0
      %517 = vmatprep.subr.bf16.mxu0 0
      %518 = vmatpush1.bf16.msra.mxu0 0
      %519 = vmatprep.subr.bf16.mxu0 0
      %520 = vmatpush1.bf16.msra.mxu0 0
      %521 = vmatprep.subr.bf16.mxu0 0
      %522 = vmatpush1.bf16.msra.mxu0 0
      %523 = vmatprep.subr.bf16.mxu0 0
      %524 = vmatpush1.bf16.msra.mxu0 0
      %525 = vmatprep.subr.bf16.mxu0 0
      %526 = vmatpush1.bf16.msra.mxu0 %v509
      %527 = vmatprep.subr.bf16.mxu0 0
      %528 = vmatpush2.bf16.msra.mxu0 0
      %529 = vmatprep.subr.bf16.mxu0 0
      %530 = vmatpush2.bf16.msra.mxu0 0
      %531 = vmatprep.subr.bf16.mxu0 0
      %532 = vmatpush2.bf16.msra.mxu0 0
      %533 = vmatprep.subr.bf16.mxu0 0
      %534 = vmatpush2.bf16.msra.mxu0 0
      %535 = vmatprep.subr.bf16.mxu0 0
      %536 = vmatpush2.bf16.msra.mxu0 0
      %537 = vmatprep.subr.bf16.mxu0 0
      %538 = vmatpush2.bf16.msra.mxu0 0
      %539 = vmatprep.subr.bf16.mxu0 0
      %540 = vmatpush2.bf16.msra.mxu0 0
      %541 = vmatprep.subr.bf16.mxu0 0
      %542 = vmatpush2.bf16.msra.mxu0 0
      %543 = vmatprep.mubr.bf16.mxu0 0
      %544 = vmatmul.mubr.bf16.gmra.mxu0 %v412
      %v545 = vpop.f32.mrf.mxu0
      %v546 = vadd.f32 0.0, %v545
      %v547 = vpop.f32.mrf.mxu0
      %v548 = vpop.f32.mrf.mxu0
      %v549 = vadd.f32 0.0, %v548
      %v550 = vpop.f32.mrf.mxu0
      %551 = vmatprep.mubr.bf16.mxu0 0
      %552 = vmatmul.mubr.bf16.gmra.mxu0 %v415
      %v553 = vpop.f32.mrf.mxu0
      %v554 = vadd.f32 0.0, %v553
      %v555 = vpop.f32.mrf.mxu0
      %v556 = vpop.f32.mrf.mxu0
      %v557 = vadd.f32 0.0, %v556
      %v558 = vpop.f32.mrf.mxu0
      %559 = vmatprep.mubr.bf16.mxu0 0
      %560 = vmatmul.mubr.bf16.gmra.mxu0 %v418
      %v561 = vpop.f32.mrf.mxu0
      %v562 = vadd.f32 0.0, %v561
      %v563 = vpop.f32.mrf.mxu0
      %v564 = vpop.f32.mrf.mxu0
      %v565 = vadd.f32 0.0, %v564
      %v566 = vpop.f32.mrf.mxu0
      %567 = vmatprep.mubr.bf16.mxu0 0
      %568 = vmatmul.mubr.bf16.gmra.mxu0 %v421
      %v569 = vpop.f32.mrf.mxu0
      %v570 = vadd.f32 0.0, %v569
      %v571 = vpop.f32.mrf.mxu0
      %v572 = vpop.f32.mrf.mxu0
      %v573 = vadd.f32 0.0, %v572
      %v574 = vpop.f32.mrf.mxu0
      %575 = vmatprep.mubr.bf16.mxu0 0
      %576 = vmatmul.mubr.bf16.gmra.mxu0 %v424
      %v577 = vpop.f32.mrf.mxu0
      %v578 = vadd.f32 0.0, %v577
      %v579 = vpop.f32.mrf.mxu0
      %v580 = vpop.f32.mrf.mxu0
      %v581 = vadd.f32 0.0, %v580
      %v582 = vpop.f32.mrf.mxu0
      %583 = vmatprep.mubr.bf16.mxu0 0
      %584 = vmatmul.mubr.bf16.gmra.mxu0 %v427
      %v585 = vpop.f32.mrf.mxu0
      %v586 = vadd.f32 0.0, %v585
      %v587 = vpop.f32.mrf.mxu0
      %v588 = vpop.f32.mrf.mxu0
      %v589 = vadd.f32 0.0, %v588
      %v590 = vpop.f32.mrf.mxu0
      %591 = vmatprep.mubr.bf16.mxu0 0
      %592 = vmatmul.mubr.bf16.gmra.mxu0 %v430
      %v593 = vpop.f32.mrf.mxu0
      %v594 = vadd.f32 0.0, %v593
      %v595 = vpop.f32.mrf.mxu0
      %v596 = vpop.f32.mrf.mxu0
      %v597 = vadd.f32 0.0, %v596
      %v598 = vpop.f32.mrf.mxu0
      %599 = vmatprep.mubr.bf16.mxu0 0
      %600 = vmatmul.mubr.bf16.gmra.mxu0 %v433
      %v601 = vpop.f32.mrf.mxu0
      %v602 = vadd.f32 0.0, %v601
      %v603 = vpop.f32.mrf.mxu0
      %v604 = vpop.f32.mrf.mxu0
      %v605 = vadd.f32 0.0, %v604
      %v606 = vpop.f32.mrf.mxu0
      %607 = vmatprep.mubr.bf16.mxu0 0
      %608 = vmatmul.mubr.bf16.gmra.mxu0 %v436
      %v609 = vpop.f32.mrf.mxu0
      %v610 = vadd.f32 0.0, %v609
      %v611 = vpop.f32.mrf.mxu0
      %v612 = vpop.f32.mrf.mxu0
      %v613 = vadd.f32 0.0, %v612
      %v614 = vpop.f32.mrf.mxu0
      %615 = vmatprep.mubr.bf16.mxu0 0
      %616 = vmatmul.mubr.bf16.gmra.mxu0 %v439
      %v617 = vpop.f32.mrf.mxu0
      %v618 = vadd.f32 0.0, %v617
      %v619 = vpop.f32.mrf.mxu0
      %v620 = vpop.f32.mrf.mxu0
      %v621 = vadd.f32 0.0, %v620
      %v622 = vpop.f32.mrf.mxu0
      %623 = vmatprep.mubr.bf16.mxu0 0
      %624 = vmatmul.mubr.bf16.gmra.mxu0 %v442
      %v625 = vpop.f32.mrf.mxu0
      %v626 = vadd.f32 0.0, %v625
      %v627 = vpop.f32.mrf.mxu0
      %v628 = vpop.f32.mrf.mxu0
      %v629 = vadd.f32 0.0, %v628
      %v630 = vpop.f32.mrf.mxu0
      %631 = vmatprep.mubr.bf16.mxu0 0
      %632 = vmatmul.mubr.bf16.gmra.mxu0 %v445
      %v633 = vpop.f32.mrf.mxu0
      %v634 = vadd.f32 0.0, %v633
      %v635 = vpop.f32.mrf.mxu0
      %v636 = vpop.f32.mrf.mxu0
      %v637 = vadd.f32 0.0, %v636
      %v638 = vpop.f32.mrf.mxu0
      %639 = vmatprep.mubr.bf16.mxu0 0
      %640 = vmatmul.mubr.bf16.gmra.mxu0 %v448
      %v641 = vpop.f32.mrf.mxu0
      %v642 = vadd.f32 0.0, %v641
      %v643 = vpop.f32.mrf.mxu0
      %v644 = vpop.f32.mrf.mxu0
      %v645 = vadd.f32 0.0, %v644
      %v646 = vpop.f32.mrf.mxu0
      %647 = vmatprep.mubr.bf16.mxu0 0
      %648 = vmatmul.mubr.bf16.gmra.mxu0 %v451
      %v649 = vpop.f32.mrf.mxu0
      %v650 = vadd.f32 0.0, %v649
      %v651 = vpop.f32.mrf.mxu0
      %v652 = vpop.f32.mrf.mxu0
      %v653 = vadd.f32 0.0, %v652
      %v654 = vpop.f32.mrf.mxu0
      %655 = vmatprep.mubr.bf16.mxu0 0
      %656 = vmatmul.mubr.bf16.gmra.mxu0 %v454
      %v657 = vpop.f32.mrf.mxu0
      %v658 = vadd.f32 0.0, %v657
      %v659 = vpop.f32.mrf.mxu0
      %v660 = vpop.f32.mrf.mxu0
      %v661 = vadd.f32 0.0, %v660
      %v662 = vpop.f32.mrf.mxu0
      %663 = vmatprep.mubr.bf16.mxu0 0
      %664 = vmatmul.mubr.bf16.gmra.mxu0 %v457
      %v665 = vpop.f32.mrf.mxu0
      %v666 = vadd.f32 0.0, %v665
      %v667 = vpop.f32.mrf.mxu0
      %v668 = vpop.f32.mrf.mxu0
      %v669 = vadd.f32 0.0, %v668
      %v670 = vpop.f32.mrf.mxu0
      %671 = vmatprep.mubr.bf16.mxu0 0
      %672 = vmatmul.mubr.bf16.gmra.mxu0 %v460
      %v673 = vpop.f32.mrf.mxu0
      %v674 = vadd.f32 0.0, %v673
      %v675 = vpop.f32.mrf.mxu0
      %v676 = vpop.f32.mrf.mxu0
      %v677 = vadd.f32 0.0, %v676
      %v678 = vpop.f32.mrf.mxu0
      %679 = vmatprep.mubr.bf16.mxu0 0
      %680 = vmatmul.mubr.bf16.gmra.mxu0 %v463
      %v681 = vpop.f32.mrf.mxu0
      %v682 = vadd.f32 0.0, %v681
      %v683 = vpop.f32.mrf.mxu0
      %v684 = vpop.f32.mrf.mxu0
      %v685 = vadd.f32 0.0, %v684
      %v686 = vpop.f32.mrf.mxu0
      %687 = vmatprep.mubr.bf16.mxu0 0
      %688 = vmatmul.mubr.bf16.gmra.mxu0 %v466
      %v689 = vpop.f32.mrf.mxu0
      %v690 = vadd.f32 0.0, %v689
      %v691 = vpop.f32.mrf.mxu0
      %v692 = vpop.f32.mrf.mxu0
      %v693 = vadd.f32 0.0, %v692
      %v694 = vpop.f32.mrf.mxu0
      %695 = vmatprep.mubr.bf16.mxu0 0
      %696 = vmatmul.mubr.bf16.gmra.mxu0 %v469
      %v697 = vpop.f32.mrf.mxu0
      %v698 = vadd.f32 0.0, %v697
      %v699 = vpop.f32.mrf.mxu0
      %v700 = vpop.f32.mrf.mxu0
      %v701 = vadd.f32 0.0, %v700
      %v702 = vpop.f32.mrf.mxu0
      %703 = vmatprep.mubr.bf16.mxu0 0
      %704 = vmatmul.mubr.bf16.gmra.mxu0 %v472
      %v705 = vpop.f32.mrf.mxu0
      %v706 = vadd.f32 0.0, %v705
      %v707 = vpop.f32.mrf.mxu0
      %v708 = vpop.f32.mrf.mxu0
      %v709 = vadd.f32 0.0, %v708
      %v710 = vpop.f32.mrf.mxu0
      %711 = vmatprep.mubr.bf16.mxu0 0
      %712 = vmatmul.mubr.bf16.gmra.mxu0 %v475
      %v713 = vpop.f32.mrf.mxu0
      %v714 = vadd.f32 0.0, %v713
      %v715 = vpop.f32.mrf.mxu0
      %v716 = vpop.f32.mrf.mxu0
      %v717 = vadd.f32 0.0, %v716
      %v718 = vpop.f32.mrf.mxu0
      %719 = vmatprep.mubr.bf16.mxu0 0
      %720 = vmatmul.mubr.bf16.gmra.mxu0 %v478
      %v721 = vpop.f32.mrf.mxu0
      %v722 = vadd.f32 0.0, %v721
      %v723 = vpop.f32.mrf.mxu0
      %v724 = vpop.f32.mrf.mxu0
      %v725 = vadd.f32 0.0, %v724
      %v726 = vpop.f32.mrf.mxu0
      %727 = vmatprep.mubr.bf16.mxu0 0
      %728 = vmatmul.mubr.bf16.gmra.mxu0 %v481
      %v729 = vpop.f32.mrf.mxu0
      %v730 = vadd.f32 0.0, %v729
      %v731 = vpop.f32.mrf.mxu0
      %v732 = vpop.f32.mrf.mxu0
      %v733 = vadd.f32 0.0, %v732
      %v734 = vpop.f32.mrf.mxu0
      %735 = vmatprep.mubr.bf16.mxu0 0
      %736 = vmatmul.mubr.bf16.gmra.mxu0 %v484
      %v737 = vpop.f32.mrf.mxu0
      %v738 = vadd.f32 0.0, %v737
      %v739 = vpop.f32.mrf.mxu0
      %v740 = vpop.f32.mrf.mxu0
      %v741 = vadd.f32 0.0, %v740
      %v742 = vpop.f32.mrf.mxu0
      %743 = vmatprep.mubr.bf16.mxu0 0
      %744 = vmatmul.mubr.bf16.gmra.mxu0 %v487
      %v745 = vpop.f32.mrf.mxu0
      %v746 = vadd.f32 0.0, %v745
      %v747 = vpop.f32.mrf.mxu0
      %v748 = vpop.f32.mrf.mxu0
      %v749 = vadd.f32 0.0, %v748
      %v750 = vpop.f32.mrf.mxu0
      %751 = vmatprep.mubr.bf16.mxu0 0
      %752 = vmatmul.mubr.bf16.gmra.mxu0 %v490
      %v753 = vpop.f32.mrf.mxu0
      %v754 = vadd.f32 0.0, %v753
      %v755 = vpop.f32.mrf.mxu0
      %v756 = vpop.f32.mrf.mxu0
      %v757 = vadd.f32 0.0, %v756
      %v758 = vpop.f32.mrf.mxu0
      %759 = vmatprep.mubr.bf16.mxu0 0
      %760 = vmatmul.mubr.bf16.gmra.mxu0 %v493
      %v761 = vpop.f32.mrf.mxu0
      %v762 = vadd.f32 0.0, %v761
      %v763 = vpop.f32.mrf.mxu0
      %v764 = vpop.f32.mrf.mxu0
      %v765 = vadd.f32 0.0, %v764
      %v766 = vpop.f32.mrf.mxu0
      %767 = vmatprep.mubr.bf16.mxu0 0
      %768 = vmatmul.mubr.bf16.gmra.mxu0 %v496
      %v769 = vpop.f32.mrf.mxu0
      %v770 = vadd.f32 0.0, %v769
      %v771 = vpop.f32.mrf.mxu0
      %v772 = vpop.f32.mrf.mxu0
      %v773 = vadd.f32 0.0, %v772
      %v774 = vpop.f32.mrf.mxu0
      %775 = vmatprep.mubr.bf16.mxu0 0
      %776 = vmatmul.mubr.bf16.gmra.mxu0 %v499
      %v777 = vpop.f32.mrf.mxu0
      %v778 = vadd.f32 0.0, %v777
      %v779 = vpop.f32.mrf.mxu0
      %v780 = vpop.f32.mrf.mxu0
      %v781 = vadd.f32 0.0, %v780
      %v782 = vpop.f32.mrf.mxu0
      %783 = vmatprep.mubr.bf16.mxu0 0
      %784 = vmatmul.mubr.bf16.gmra.mxu0 %v502
      %v785 = vpop.f32.mrf.mxu0
      %v786 = vadd.f32 0.0, %v785
      %v787 = vpop.f32.mrf.mxu0
      %v788 = vpop.f32.mrf.mxu0
      %v789 = vadd.f32 0.0, %v788
      %v790 = vpop.f32.mrf.mxu0
      %791 = vmatprep.mubr.bf16.mxu0 0
      %792 = vmatmul.mubr.bf16.gmra.mxu0 %v505
      %v793 = vpop.f32.mrf.mxu0
      %v794 = vadd.f32 0.0, %v793
      %v795 = vpop.f32.mrf.mxu0
      %v796 = vpop.f32.mrf.mxu0
      %v797 = vadd.f32 0.0, %v796
      %v798 = vpop.f32.mrf.mxu0
      %799 = vdwg.mxu0
      %800 = vst [vmem:[%s182] sm:$0xff] %v546
      %801 = vst [vmem:[%s182 + $0x8] sm:$0xff] %v549
      %802 = vst [vmem:[%s182 + $0x10] sm:$0xff] %v554
      %803 = vst [vmem:[%s182 + $0x18] sm:$0xff] %v557
      %804 = vst [vmem:[%s182 + $0x20] sm:$0xff] %v562
      %805 = vst [vmem:[%s182 + $0x28] sm:$0xff] %v565
      %806 = vst [vmem:[%s182 + $0x30] sm:$0xff] %v570
      %807 = vst [vmem:[%s182 + $0x38] sm:$0xff] %v573
      %808 = vst [vmem:[%s182 + $0x40] sm:$0xff] %v578
      %809 = vst [vmem:[%s182 + $0x48] sm:$0xff] %v581
      %810 = vst [vmem:[%s182 + $0x50] sm:$0xff] %v586
      %811 = vst [vmem:[%s182 + $0x58] sm:$0xff] %v589
      %812 = vst [vmem:[%s182 + $0x60] sm:$0xff] %v594
      %813 = vst [vmem:[%s182 + $0x68] sm:$0xff] %v597
      %814 = vst [vmem:[%s182 + $0x70] sm:$0xff] %v602
      %815 = vst [vmem:[%s182 + $0x78] sm:$0xff] %v605
      %816 = vst [vmem:[%s182 + $0x80] sm:$0xff] %v610
      %817 = vst [vmem:[%s182 + $0x88] sm:$0xff] %v613
      %818 = vst [vmem:[%s182 + $0x90] sm:$0xff] %v618
      %819 = vst [vmem:[%s182 + $0x98] sm:$0xff] %v621
      %820 = vst [vmem:[%s182 + $0xa0] sm:$0xff] %v626
      %821 = vst [vmem:[%s182 + $0xa8] sm:$0xff] %v629
      %822 = vst [vmem:[%s182 + $0xb0] sm:$0xff] %v634
      %823 = vst [vmem:[%s182 + $0xb8] sm:$0xff] %v637
      %824 = vst [vmem:[%s182 + $0xc0] sm:$0xff] %v642
      %825 = vst [vmem:[%s182 + $0xc8] sm:$0xff] %v645
      %826 = vst [vmem:[%s182 + $0xd0] sm:$0xff] %v650
      %827 = vst [vmem:[%s182 + $0xd8] sm:$0xff] %v653
      %828 = vst [vmem:[%s182 + $0xe0] sm:$0xff] %v658
      %829 = vst [vmem:[%s182 + $0xe8] sm:$0xff] %v661
      %830 = vst [vmem:[%s182 + $0xf0] sm:$0xff] %v666
      %831 = vst [vmem:[%s182 + $0xf8] sm:$0xff] %v669
      %832 = vst [vmem:[%s182 + $0x100] sm:$0xff] %v674
      %833 = vst [vmem:[%s182 + $0x108] sm:$0xff] %v677
      %834 = vst [vmem:[%s182 + $0x110] sm:$0xff] %v682
      %835 = vst [vmem:[%s182 + $0x118] sm:$0xff] %v685
      %836 = vst [vmem:[%s182 + $0x120] sm:$0xff] %v690
      %837 = vst [vmem:[%s182 + $0x128] sm:$0xff] %v693
      %838 = vst [vmem:[%s182 + $0x130] sm:$0xff] %v698
      %839 = vst [vmem:[%s182 + $0x138] sm:$0xff] %v701
      %840 = vst [vmem:[%s182 + $0x140] sm:$0xff] %v706
      %841 = vst [vmem:[%s182 + $0x148] sm:$0xff] %v709
      %842 = vst [vmem:[%s182 + $0x150] sm:$0xff] %v714
      %843 = vst [vmem:[%s182 + $0x158] sm:$0xff] %v717
      %844 = vst [vmem:[%s182 + $0x160] sm:$0xff] %v722
      %845 = vst [vmem:[%s182 + $0x168] sm:$0xff] %v725
      %846 = vst [vmem:[%s182 + $0x170] sm:$0xff] %v730
      %847 = vst [vmem:[%s182 + $0x178] sm:$0xff] %v733
      %848 = vst [vmem:[%s182 + $0x180] sm:$0xff] %v738
      %849 = vst [vmem:[%s182 + $0x188] sm:$0xff] %v741
      %850 = vst [vmem:[%s182 + $0x190] sm:$0xff] %v746
      %851 = vst [vmem:[%s182 + $0x198] sm:$0xff] %v749
      %852 = vst [vmem:[%s182 + $0x1a0] sm:$0xff] %v754
      %853 = vst [vmem:[%s182 + $0x1a8] sm:$0xff] %v757
      %854 = vst [vmem:[%s182 + $0x1b0] sm:$0xff] %v762
      %855 = vst [vmem:[%s182 + $0x1b8] sm:$0xff] %v765
      %856 = vst [vmem:[%s182 + $0x1c0] sm:$0xff] %v770
      %857 = vst [vmem:[%s182 + $0x1c8] sm:$0xff] %v773
      %858 = vst [vmem:[%s182 + $0x1d0] sm:$0xff] %v778
      %859 = vst [vmem:[%s182 + $0x1d8] sm:$0xff] %v781
      %860 = vst [vmem:[%s182 + $0x1e0] sm:$0xff] %v786
      %861 = vst [vmem:[%s182 + $0x1e8] sm:$0xff] %v789
      %862 = vst [vmem:[%s182 + $0x1f0] sm:$0xff] %v794
      %863 = vst [vmem:[%s182 + $0x1f8] sm:$0xff] %v797
      %s864 = smul.u32 64, %s17
      %p865 = scmp.lt.s32.totalorder %s864, 255
      %s866 = scalar_select %p865, %s864, 255
      %p867 = scmp.lt.s32.totalorder %s18, 0
      %s868 = scalar_select %p867, %s18, 0
      %s869 = sadd.s32 %s868, %s866
      %s870 = smul.addr %s869, 8
      %s871 = scalar_lea.vmem %s2, %s870
      // Predicated region
      $region29: #{_lambda_.26} parent=27 // pred_check
        %p872 = pneg %p97
      $region30: #{_lambda_.26} parent=27 // pred_check_branch
        %874 = sbr.rel (%p872) target = $region32
      $region31: #{_lambda_.26} parent=27 // pred_region
        %s875 = smul.u32 64, %s17
      $region32: #{_lambda_.26} parent=27 // pred_fallthru
        _
    $region28: #{_lambda_.26} parent=5 // pred_fallthru
      _
    %p876 = scmp.le.s32.totalorder 2, %s8
    // Predicated region
    $region33: #{_lambda_.26} parent=5 // pred_check
      %p877 = pneg %p876
    $region34: #{_lambda_.26} parent=5 // pred_check_branch
      %879 = sbr.rel (%p877) target = $region36
    $region35: #{_lambda_.26} parent=5 // pred_region
      %s880 = ssub.s32 %s8, 2
      // Predicated region
      $region37: #{_lambda_.26} parent=35 // pred_check
        %p881 = pneg %p103
      $region38: #{_lambda_.26} parent=35 // pred_check_branch
        %883 = sbr.rel (%p881) target = $region40
      $region39: #{_lambda_.26} parent=35 // pred_region
        %s884 = smul.u32 64, %s19
        %p885 = scmp.lt.s32.totalorder %s884, 255
        %s886 = scalar_select %p885, %s884, 255
        %p887 = scmp.lt.s32.totalorder %s20, 0
        %s888 = scalar_select %p887, %s20, 0
        %s889 = sadd.s32 %s888, %s886
        %s890 = smul.addr %s889, 8
        %s891 = scalar_lea.vmem %s2, %s890
      $region40: #{_lambda_.26} parent=35 // pred_fallthru
        _
    $region36: #{_lambda_.26} parent=5 // pred_fallthru
      _
  $region6: #{_lambda_.26} parent=0 // loop_footer
    %s12 = sadd.s32 1, %s8
  $region7: #{_lambda_.26} parent=0 // loop_footer_branch
    %7 = sbr.rel target = $region3
  $region8: #{_lambda_.26} parent=0 // loop_exit
    _

// kernel: _lambda_.27
$region0: #{_lambda_.27}
  #allocation0 [shape = 'u32[]', space=smem, size = 0x4, offset = 0x4, fixed_abs, tag = 'smem constant byte address 0x4 - core index']
  #allocation1 [shape = 'u32[144,128]{1,0:T(1,128)}', space=vmem, size = 0x12000, scoped, tag = 'internal scratch']
  %s0 = inlined_call_operand.vmem [shape: f32[192,288], index: 0, kind: input, shape index: {}]
  %s1 = inlined_call_operand.vmem [shape: f32[192,288], index: 1, kind: output, shape index: {}]
  %s2 = sld [smem:[#allocation0]]
  $region37: #{_lambda_.27} parent=0
    _
  %s4 = ssub.s32 1, %s2
  %s5 = scalar_select 0, %s4, %s2
  loop: start=0, step=1, limit=4
  $region2: #{_lambda_.27} parent=0 // loop_pre_header
    _
  $region3: #{_lambda_.27} parent=0 // loop_header
    %s7 = sphi 0, %s11
    %p8 = scmp.ge.s32.totalorder %s7, 4
    %s17 = sphi 0, %s19
    %s20 = sphi 0, %s17
    %s21 = sphi 0, %s20
    %s37 = sphi 0, %s21
    %s43 = sphi 0, %s45
    %s46 = sphi 0, %s43
    %s47 = sphi 0, %s46
    %s63 = sphi 0, %s47
  $region4: #{_lambda_.27} parent=0 // loop_header_branch
    %10 = sbr.rel (%p8) target = $region8
  $region5: #{_lambda_.27} parent=0 // loop_body
    %s12 = ssub.s32 %s7, 1
    %s13 = ssub.s32 %s7, 2
    %s14 = sadd.s32 %s7, 1
    %s15 = ssub.s32 %s7, %s14
    %p16 = scmp.eq.s32.totalorder %s15, 0
    %s18 = sadd.s32 %s17, 1
    %s19 = scalar_select %p16, %s17, %s18
    %p22 = pneg %p16
    %p23 = scmp.eq.s32.totalorder %s7, 1
    %p24 = por %p22, %p23
    %p25 = scmp.ne.s32.totalorder %s17, %s20
    %p26 = scmp.eq.s32.totalorder %s7, 0
    %p27 = por %p25, %p26
    %p28 = scmp.ne.s32.totalorder %s17, %s20
    %p29 = scmp.eq.s32.totalorder %s12, 1
    %p30 = por %p28, %p29
    %p31 = scmp.ne.s32.totalorder %s20, %s21
    %p32 = scmp.eq.s32.totalorder %s12, 0
    %p33 = por %p31, %p32
    %p34 = scmp.ne.s32.totalorder %s20, %s21
    %p35 = scmp.eq.s32.totalorder %s13, 1
    %p36 = por %p34, %p35
    %p38 = scmp.ne.s32.totalorder %s21, %s37
    %p39 = scmp.eq.s32.totalorder %s13, 0
    %p40 = por %p38, %p39
    %s41 = ssub.s32 %s7, %s14
    %p42 = scmp.eq.s32.totalorder %s41, 0
    %s44 = sadd.s32 %s43, 1
    %s45 = scalar_select %p42, %s43, %s44
    %p48 = pneg %p42
    %p49 = scmp.eq.s32.totalorder %s7, 1
    %p50 = por %p48, %p49
    %p51 = scmp.ne.s32.totalorder %s43, %s46
    %p52 = scmp.eq.s32.totalorder %s7, 0
    %p53 = por %p51, %p52
    %p54 = scmp.ne.s32.totalorder %s43, %s46
    %p55 = scmp.eq.s32.totalorder %s12, 1
    %p56 = por %p54, %p55
    %p57 = scmp.ne.s32.totalorder %s46, %s47
    %p58 = scmp.eq.s32.totalorder %s12, 0
    %p59 = por %p57, %p58
    %p60 = scmp.ne.s32.totalorder %s46, %s47
    %p61 = scmp.eq.s32.totalorder %s13, 1
    %p62 = por %p60, %p61
    %p64 = scmp.ne.s32.totalorder %s47, %s63
    %p65 = scmp.eq.s32.totalorder %s13, 0
    %p66 = por %p64, %p65
    %p67 = scmp.le.s32.totalorder 1, %s7
    %p68 = scmp.lt.s32.totalorder %s7, 3
    %p69 = pnand %p67, %p68
    %p70 = pneg %p69
    // Predicated region
    $region9: #{_lambda_.27} parent=5 // pred_check
      _
    $region10: #{_lambda_.27} parent=5 // pred_check_branch
      %72 = sbr.rel (%p69) target = $region12
    $region11: #{_lambda_.27} parent=5 // pred_region
      %s73 = ssub.s32 %s7, 1
    $region12: #{_lambda_.27} parent=5 // pred_fallthru
      _
    %p74 = scmp.lt.s32.totalorder %s7, 2
    // Predicated region
    $region13: #{_lambda_.27} parent=5 // pred_check
      %p75 = pneg %p74
    $region14: #{_lambda_.27} parent=5 // pred_check_branch
      %77 = sbr.rel (%p75) target = $region16
    $region15: #{_lambda_.27} parent=5 // pred_region
      // Predicated region
      $region17: #{_lambda_.27} parent=15 // pred_check
        %p78 = pneg %p27
      $region18: #{_lambda_.27} parent=15 // pred_check_branch
        %80 = sbr.rel (%p78) target = $region20
      $region19: #{_lambda_.27} parent=15 // pred_region
        %s81 = smul.u32 12, %s7
        %p82 = scmp.lt.s32.totalorder %s81, 23
        %s83 = scalar_select %p82, %s81, 23
        %s84 = smul.addr %s83, 3
        %s85 = smul.addr %s84, 8
        %s86 = scalar_lea.vmem %s0, %s85
        %s87 = smul.u32 12, %s7
      $region20: #{_lambda_.27} parent=15 // pred_fallthru
        _
    $region16: #{_lambda_.27} parent=5 // pred_fallthru
      _
    %p88 = scmp.le.s32.totalorder 1, %s7
    %p89 = scmp.lt.s32.totalorder %s7, 3
    %p90 = pnand %p88, %p89
    %p91 = pneg %p90
    // Predicated region
    $region21: #{_lambda_.27} parent=5 // pred_check
      _
    $region22: #{_lambda_.27} parent=5 // pred_check_branch
      %93 = sbr.rel (%p90) target = $region24
    $region23: #{_lambda_.27} parent=5 // pred_region
      %s94 = ssub.s32 %s7, 1
      %s95 = smul.u32 12, %s12
      %p96 = scmp.lt.s32.totalorder %s95, 23
      %s97 = scalar_select %p96, %s95, 23
      %s98 = smul.addr %s97, 3
      %s99 = smul.addr %s98, 8
      %s100 = scalar_lea.vmem %s0, %s99
      %p101 = pneg %p33
      %p102 = pneg %p30
      %p103 = pneg %p59
      %p104 = pneg %p56
      %s105 = smul.u32 12, %s12
      %p106 = scmp.lt.s32.totalorder %s105, 23
      %s107 = scalar_select %p106, %s105, 23
      %s108 = smul.addr %s107, 3
      %s109 = smul.addr %s108, 8
      %s110 = scalar_lea.vmem %s1, %s109
      %s111 = smul.u32 12, %s12
      %p112 = scmp.lt.s32.totalorder %s111, 23
      %s113 = scalar_select %p112, %s111, 23
      %s114 = smul.addr %s113, 3
      %s115 = smul.addr %s114, 8
      %s116 = scalar_lea.vmem %s0, %s115
      %s117 = smul.u32 12, %s12
      %s118 = smul.u32 12, %s12
      %p119 = scmp.lt.s32.totalorder %s118, 23
      %s120 = scalar_select %p119, %s118, 23
      %s121 = smul.addr %s120, 3
      %s122 = smul.addr %s121, 8
      %s123 = scalar_lea.vmem %s1, %s122
      %s124 = smul.u32 12, %s12
      %v125 = vld [vmem:[%s116] sm:$0xff]
      %v126 = vld [vmem:[%s116 + $0x8] sm:$0xff]
      %v127 = vld [vmem:[%s116 + $0x10] sm:$0xff]
      %v128 = vld [vmem:[%s116 + $0x18] sm:$0xff]
      %v129 = vld [vmem:[%s116 + $0x20] sm:$0xff]
      %v130 = vld [vmem:[%s116 + $0x28] sm:$0xff]
      %v131 = vld [vmem:[%s116 + $0x30] sm:$0xff]
      %v132 = vld [vmem:[%s116 + $0x38] sm:$0xff]
      %v133 = vld [vmem:[%s116 + $0x40] sm:$0xff]
      %v134 = vld [vmem:[%s116 + $0x48] sm:$0xff]
      %v135 = vld [vmem:[%s116 + $0x50] sm:$0xff]
      %v136 = vld [vmem:[%s116 + $0x58] sm:$0xff]
      %v137 = vld [vmem:[%s116 + $0x60] sm:$0xff]
      %v138 = vld [vmem:[%s116 + $0x68] sm:$0xff]
      %v139 = vld [vmem:[%s116 + $0x70] sm:$0xff]
      %v140 = vld [vmem:[%s116 + $0x78] sm:$0xff]
      %v141 = vld [vmem:[%s116 + $0x80] sm:$0xff]
      %v142 = vld [vmem:[%s116 + $0x88] sm:$0xff]
      %v143 = vld [vmem:[%s116 + $0x90] sm:$0xff]
      %v144 = vld [vmem:[%s116 + $0x98] sm:$0xff]
      %v145 = vld [vmem:[%s116 + $0xa0] sm:$0xff]
      %v146 = vld [vmem:[%s116 + $0xa8] sm:$0xff]
      %v147 = vld [vmem:[%s116 + $0xb0] sm:$0xff]
      %v148 = vld [vmem:[%s116 + $0xb8] sm:$0xff]
      %v149 = vld [vmem:[%s116 + $0xc0] sm:$0xff]
      %v150 = vld [vmem:[%s116 + $0xc8] sm:$0xff]
      %v151 = vld [vmem:[%s116 + $0xd0] sm:$0xff]
      %v152 = vld [vmem:[%s116 + $0xd8] sm:$0xff]
      %v153 = vld [vmem:[%s116 + $0xe0] sm:$0xff]
      %v154 = vld [vmem:[%s116 + $0xe8] sm:$0xff]
      %v155 = vld [vmem:[%s116 + $0xf0] sm:$0xff]
      %v156 = vld [vmem:[%s116 + $0xf8] sm:$0xff]
      %v157 = vld [vmem:[%s116 + $0x100] sm:$0xff]
      %v158 = vld [vmem:[%s116 + $0x108] sm:$0xff]
      %v159 = vld [vmem:[%s116 + $0x110] sm:$0xff]
      %v160 = vld [vmem:[%s116 + $0x118] sm:$0xff]
      %v161 = vtanh.pop %v125
      %v162 = vtanh.pop %v126
      %v163 = vtanh.pop %v127
      %v164 = vtanh.pop %v128
      %v165 = vtanh.pop %v129
      %v166 = vtanh.pop %v130
      %v167 = vtanh.pop %v131
      %v168 = vtanh.pop %v132
      %v169 = vtanh.pop %v133
      %v170 = vtanh.pop %v134
      %v171 = vtanh.pop %v135
      %v172 = vtanh.pop %v136
      %v173 = vtanh.pop %v137
      %v174 = vtanh.pop %v138
      %v175 = vtanh.pop %v139
      %v176 = vtanh.pop %v140
      %v177 = vtanh.pop %v141
      %v178 = vtanh.pop %v142
      %v179 = vtanh.pop %v143
      %v180 = vtanh.pop %v144
      %v181 = vtanh.pop %v145
      %v182 = vtanh.pop %v146
      %v183 = vtanh.pop %v147
      %v184 = vtanh.pop %v148
      %v185 = vtanh.pop %v149
      %v186 = vtanh.pop %v150
      %v187 = vtanh.pop %v151
      %v188 = vtanh.pop %v152
      %v189 = vtanh.pop %v153
      %v190 = vtanh.pop %v154
      %v191 = vtanh.pop %v155
      %v192 = vtanh.pop %v156
      %v193 = vtanh.pop %v157
      %v194 = vtanh.pop %v158
      %v195 = vtanh.pop %v159
      %v196 = vtanh.pop %v160
      %197 = vst [vmem:[%s123] sm:$0xff] %v161
      %198 = vst [vmem:[%s123 + $0x8] sm:$0xff] %v162
      %vm199 = vcmask 261120
      %200 = vst.msk [vmem:[%s123 + $0x10] sm:$0xff] %vm199, %v163
      %201 = vst [vmem:[%s123 + $0x18] sm:$0xff] %v164
      %202 = vst [vmem:[%s123 + $0x20] sm:$0xff] %v165
      %203 = vst.msk [vmem:[%s123 + $0x28] sm:$0xff] %vm199, %v166
      %204 = vst [vmem:[%s123 + $0x30] sm:$0xff] %v167
      %205 = vst [vmem:[%s123 + $0x38] sm:$0xff] %v168
      %206 = vst.msk [vmem:[%s123 + $0x40] sm:$0xff] %vm199, %v169
      %207 = vst [vmem:[%s123 + $0x48] sm:$0xff] %v170
      %208 = vst [vmem:[%s123 + $0x50] sm:$0xff] %v171
      %209 = vst.msk [vmem:[%s123 + $0x58] sm:$0xff] %vm199, %v172
      %210 = vst [vmem:[%s123 + $0x60] sm:$0xff] %v173
      %211 = vst [vmem:[%s123 + $0x68] sm:$0xff] %v174
      %212 = vst.msk [vmem:[%s123 + $0x70] sm:$0xff] %vm199, %v175
      %213 = vst [vmem:[%s123 + $0x78] sm:$0xff] %v176
      %214 = vst [vmem:[%s123 + $0x80] sm:$0xff] %v177
      %215 = vst.msk [vmem:[%s123 + $0x88] sm:$0xff] %vm199, %v178
      %216 = vst [vmem:[%s123 + $0x90] sm:$0xff] %v179
      %217 = vst [vmem:[%s123 + $0x98] sm:$0xff] %v180
      %218 = vst.msk [vmem:[%s123 + $0xa0] sm:$0xff] %vm199, %v181
      %219 = vst [vmem:[%s123 + $0xa8] sm:$0xff] %v182
      %220 = vst [vmem:[%s123 + $0xb0] sm:$0xff] %v183
      %221 = vst.msk [vmem:[%s123 + $0xb8] sm:$0xff] %vm199, %v184
      %222 = vst [vmem:[%s123 + $0xc0] sm:$0xff] %v185
      %223 = vst [vmem:[%s123 + $0xc8] sm:$0xff] %v186
      %224 = vst.msk [vmem:[%s123 + $0xd0] sm:$0xff] %vm199, %v187
      %225 = vst [vmem:[%s123 + $0xd8] sm:$0xff] %v188
      %226 = vst [vmem:[%s123 + $0xe0] sm:$0xff] %v189
      %227 = vst.msk [vmem:[%s123 + $0xe8] sm:$0xff] %vm199, %v190
      %228 = vst [vmem:[%s123 + $0xf0] sm:$0xff] %v191
      %229 = vst [vmem:[%s123 + $0xf8] sm:$0xff] %v192
      %230 = vst.msk [vmem:[%s123 + $0x100] sm:$0xff] %vm199, %v193
      %231 = vst [vmem:[%s123 + $0x108] sm:$0xff] %v194
      %232 = vst [vmem:[%s123 + $0x110] sm:$0xff] %v195
      %233 = vst.msk [vmem:[%s123 + $0x118] sm:$0xff] %vm199, %v196
      %s234 = smul.u32 12, %s12
      %p235 = scmp.lt.s32.totalorder %s234, 23
      %s236 = scalar_select %p235, %s234, 23
      %s237 = smul.addr %s236, 3
      %s238 = smul.addr %s237, 8
      %s239 = scalar_lea.vmem %s1, %s238
      // Predicated region
      $region25: #{_lambda_.27} parent=23 // pred_check
        %p240 = pneg %p56
      $region26: #{_lambda_.27} parent=23 // pred_check_branch
        %242 = sbr.rel (%p240) target = $region28
      $region27: #{_lambda_.27} parent=23 // pred_region
        %s243 = smul.u32 12, %s12
      $region28: #{_lambda_.27} parent=23 // pred_fallthru
        _
    $region24: #{_lambda_.27} parent=5 // pred_fallthru
      _
    %p244 = scmp.le.s32.totalorder 2, %s7
    // Predicated region
    $region29: #{_lambda_.27} parent=5 // pred_check
      %p245 = pneg %p244
    $region30: #{_lambda_.27} parent=5 // pred_check_branch
      %247 = sbr.rel (%p245) target = $region32
    $region31: #{_lambda_.27} parent=5 // pred_region
      %s248 = ssub.s32 %s7, 2
      // Predicated region
      $region33: #{_lambda_.27} parent=31 // pred_check
        %p249 = pneg %p62
      $region34: #{_lambda_.27} parent=31 // pred_check_branch
        %251 = sbr.rel (%p249) target = $region36
      $region35: #{_lambda_.27} parent=31 // pred_region
        %s252 = smul.u32 12, %s13
        %p253 = scmp.lt.s32.totalorder %s252, 23
        %s254 = scalar_select %p253, %s252, 23
        %s255 = smul.addr %s254, 3
        %s256 = smul.addr %s255, 8
        %s257 = scalar_lea.vmem %s1, %s256
      $region36: #{_lambda_.27} parent=31 // pred_fallthru
        _
    $region32: #{_lambda_.27} parent=5 // pred_fallthru
      _
  $region6: #{_lambda_.27} parent=0 // loop_footer
    %s11 = sadd.s32 1, %s7
  $region7: #{_lambda_.27} parent=0 // loop_footer_branch
    %6 = sbr.rel target = $region3
  $region8: #{_lambda_.27} parent=0 // loop_exit
    _

</llo_original>
